<compile_context>
chip_gen: v7x
topology: tpu7x:2x2x1
jax: 0.10.0
libtpu: 0.0.40
codegen_flags: <defaults>
</compile_context>

<pallas_src>
import functools

import jax
import jax.numpy as jnp
from jax import lax
from jax.experimental import pallas as pl
from jax.experimental.pallas import tpu as pltpu


# ---------------------------------------------------------------------------
# Fused 3x3 conv + bias + ReLU + 2x2 max-pool (one image per grid step)
# ---------------------------------------------------------------------------
def _conv_relu_pool_kernel(x_ref, w_ref, b_ref, o_ref, *, hp, wp, cin2, cout):
    """x_ref: (1, H, W//2, 2*Cin) bf16   (w-phase packed input, one image)
       w_ref: (3, 2, 2*Cin, 2*Cout) bf16 (w-phase packed 3x3 weights)
       b_ref: (1, 2*Cout) f32            (bias tiled for both w-phases)
       o_ref: (1, HP, WP, Cout) bf16     (pooled output)"""

    def conv_row(h):
        # Packed conv row h: acc[j, q*Cout + c] == conv[h, 2*j + q, c]
        acc = jnp.zeros((wp, 2 * cout), jnp.float32)
        for dy in range(3):
            for s in range(2):
                lhs = x_ref[0, h + dy, s:s + wp, :]            # (WP, 2*Cin) bf16
                if cin2 <= 4:
                    # conv1 (Cin=1): K is tiny -> VPU broadcast multiply-adds.
                    lhs32 = lhs.astype(jnp.float32)
                    w32 = w_ref[dy, s].astype(jnp.float32)     # (2*Cin, 2*Cout)
                    for u in range(cin2):
                        acc += lhs32[:, u:u + 1] * w32[u:u + 1, :]
                else:
                    # conv2: (WP,64)@(64,128) on the MXU, f32 accumulate.
                    acc += jnp.dot(lhs, w_ref[dy, s],
                                   preferred_element_type=jnp.float32)
        return acc

    def body(i, carry):
        r0 = conv_row(2 * i)
        r1 = conv_row(2 * i + 1)
        m = jnp.maximum(r0, r1)                        # pool over the H row-pair
        m = jnp.maximum(m + b_ref[...], 0.0)           # bias + ReLU (f32)
        pooled = jnp.maximum(m[:, :cout], m[:, cout:])  # pool over the two w-phases
        o_ref[0, i] = pooled.astype(o_ref.dtype)
        return carry

    lax.fori_loop(0, hp, body, 0)


def conv3x3_relu_pool(x2, w_packed, bias2, *, cout):
    """x2: (N, H, W//2, 2*Cin) bf16 -> pooled NHWC output (N, HP, WP, Cout) bf16."""
    n, h, w2, cin2 = x2.shape
    assert (h - 2) % 2 == 0
    hp = (h - 2) // 2
    wp = w2 - 1
    kernel = functools.partial(_conv_relu_pool_kernel,
                               hp=hp, wp=wp, cin2=cin2, cout=cout)
    return pl.pallas_call(
        kernel,
        out_shape=jax.ShapeDtypeStruct((n, hp, wp, cout), jnp.bfloat16),
        grid_spec=pltpu.PrefetchScalarGridSpec(
            num_scalar_prefetch=0,
            grid=(n,),
            in_specs=[
                pl.BlockSpec((1, h, w2, cin2), lambda i: (i, 0, 0, 0)),
                pl.BlockSpec((3, 2, cin2, 2 * cout), lambda i: (0, 0, 0, 0)),
                pl.BlockSpec((1, 2 * cout), lambda i: (0, 0)),
            ],
            out_specs=pl.BlockSpec((1, hp, wp, cout), lambda i: (i, 0, 0, 0)),
        ),
        compiler_params=pltpu.CompilerParams(dimension_semantics=("parallel",)),
    )(x2, w_packed, bias2)


# ---------------------------------------------------------------------------
# Fused fc1 (K-tiled, f32 accumulator) + ReLU + fc2 epilogue
# ---------------------------------------------------------------------------
def _fc_fused_kernel(x_ref, w1_ref, b1_ref, w2_ref, b2_ref, o_ref, acc_ref):
    k = pl.program_id(1)

    @pl.when(k == 0)
    def _():
        acc_ref[...] = jnp.zeros_like(acc_ref)

    acc_ref[...] += jnp.dot(x_ref[...], w1_ref[...],
                            preferred_element_type=jnp.float32)

    @pl.when(k == pl.num_programs(1) - 1)
    def _():
        hid = jnp.maximum(acc_ref[...] + b1_ref[...], 0.0)        # fc1 + ReLU (f32)
        out = jnp.dot(hid.astype(w2_ref.dtype), w2_ref[...],
                      preferred_element_type=jnp.float32) + b2_ref[...]
        o_ref[...] = out.astype(o_ref.dtype)


def fc1_relu_fc2(x, w1, b1, w2, b2, *, kt=2048):
    """x: (M, Kp) bf16 (zero-padded to Kp = w1.shape[0]) -> (M, C) f32."""
    m, kp = x.shape
    hdim = w1.shape[1]
    c = w2.shape[1]
    assert kp % kt == 0
    tm = m if m <= 256 else 256
    pad_m = (-m) % tm
    if pad_m:
        x = jnp.pad(x, ((0, pad_m), (0, 0)))
    mp = m + pad_m
    out = pl.pallas_call(
        _fc_fused_kernel,
        out_shape=jax.ShapeDtypeStruct((mp, c), jnp.float32),
        grid_spec=pltpu.PrefetchScalarGridSpec(
            num_scalar_prefetch=0,
            grid=(mp // tm, kp // kt),
            in_specs=[
                pl.BlockSpec((tm, kt), lambda i, k: (i, k)),
                pl.BlockSpec((kt, hdim), lambda i, k: (k, 0)),
                pl.BlockSpec((1, hdim), lambda i, k: (0, 0)),
                pl.BlockSpec((hdim, c), lambda i, k: (0, 0)),
                pl.BlockSpec((1, c), lambda i, k: (0, 0)),
            ],
            out_specs=pl.BlockSpec((tm, c), lambda i, k: (i, 0)),
            scratch_shapes=[pltpu.VMEM((tm, hdim), jnp.float32)],
        ),
        compiler_params=pltpu.CompilerParams(
            dimension_semantics=("parallel", "arbitrary")),
    )(x, w1, b1, w2, b2)
    return out[:m]


# ---------------------------------------------------------------------------
# One-time parameter packing (parameter-load time, not per forward step)
# ---------------------------------------------------------------------------
def _pack_conv_weight(w):
    """HWIO (3,3,Cin,Cout) -> w-phase packed (3, 2, 2*Cin, 2*Cout):
       packed[dy, s][t*Cin+ci, q*Cout+c] = w[dy, 2*s+t-q, ci, c]  (0 if dx out of range)
       so   conv[h, 2j+q, :] = sum_{dy,s} x2[h+dy, j+s, :] @ packed[dy, s][:, q*Cout:(q+1)*Cout]
       with x2[r, j, t*Cin+ci] = x[r, 2j+t, ci]."""
    kh, kw, cin, cout = w.shape
    assert kh == 3 and kw == 3
    z = jnp.zeros((kh, cin, cout), w.dtype)
    w0, w1, w2 = w[:, 0], w[:, 1], w[:, 2]
    s0 = jnp.concatenate([jnp.concatenate([w0, z], axis=-1),
                          jnp.concatenate([w1, w0], axis=-1)], axis=1)
    s1 = jnp.concatenate([jnp.concatenate([w2, w1], axis=-1),
                          jnp.concatenate([z, w2], axis=-1)], axis=1)
    return jnp.stack([s0, s1], axis=1)          # (3, 2, 2*Cin, 2*Cout)


def prepare_params(params, *, kt=2048):
    def conv_pack(w, b):
        return (_pack_conv_weight(w).astype(jnp.bfloat16),
                jnp.concatenate([b, b]).reshape(1, -1).astype(jnp.float32))

    c1w, c1b = conv_pack(params["conv1_w"], params["conv1_b"])
    c2w, c2b = conv_pack(params["conv2_w"], params["conv2_b"])
    kdim, hdim = params["fc1_w"].shape
    kp = ((kdim + kt - 1) // kt) * kt
    fc1_w = jnp.zeros((kp, hdim), jnp.bfloat16).at[:kdim, :].set(
        params["fc1_w"].astype(jnp.bfloat16))
    return {
        "conv1_w": c1w, "conv1_b": c1b,
        "conv2_w": c2w, "conv2_b": c2b,
        "fc1_w": fc1_w,
        "fc1_b": params["fc1_b"].reshape(1, -1).astype(jnp.float32),
        "fc2_w": params["fc2_w"].astype(jnp.bfloat16),
        "fc2_b": params["fc2_b"].reshape(1, -1).astype(jnp.float32),
    }


# ---------------------------------------------------------------------------
# SimpleCNN forward
# ---------------------------------------------------------------------------
def simple_cnn_forward(x_nchw, prep):
    """x_nchw: (N, 1, 50, 50) float32 (PyTorch NCHW convention)."""
    n, cin, h, w = x_nchw.shape
    assert cin == 1 and h % 2 == 0 and w % 2 == 0
    # NCHW with Cin=1 -> NHWC is a pure reshape; pack w-phases -> (N, H, W/2, 2).
    x = x_nchw.reshape(n, h, w // 2, 2).astype(jnp.bfloat16)
    x = conv3x3_relu_pool(x, prep["conv1_w"], prep["conv1_b"],
                          cout=prep["conv1_w"].shape[-1] // 2)    # (N, 24, 24, 32)
    nb, ph, pw, pc = x.shape
    assert pw % 2 == 0
    x = x.reshape(nb, ph, pw // 2, 2 * pc)                         # free repack
    x = conv3x3_relu_pool(x, prep["conv2_w"], prep["conv2_b"],
                          cout=prep["conv2_w"].shape[-1] // 2)    # (N, 11, 11, 64)
    # Flatten in NHWC (h, w, c) order; fc1_w rows are stored in that order,
    # so no runtime transpose is needed.
    x = x.reshape(n, -1)                                           # (N, 7744) bf16
    kp = prep["fc1_w"].shape[0]
    x = jnp.pad(x, ((0, 0), (0, kp - x.shape[1])))                 # zero-pad K
    return fc1_relu_fc2(x, prep["fc1_w"], prep["fc1_b"],
                        prep["fc2_w"], prep["fc2_b"])


# ---------------------------------------------------------------------------
# Pure-JAX f32 reference (same semantics) for validation
# ---------------------------------------------------------------------------
def reference_forward(x_nchw, params):
    x = jnp.transpose(x_nchw, (0, 2, 3, 1)).astype(jnp.float32)

    def conv_relu(x, w, b):
        y = lax.conv_general_dilated(x, w, window_strides=(1, 1), padding="VALID",
                                     dimension_numbers=("NHWC", "HWIO", "NHWC"))
        return jnp.maximum(y + b, 0.0)

    def pool(x):
        n, h, w, c = x.shape
        x = x[:, : h // 2 * 2, : w // 2 * 2, :]
        return x.reshape(n, h // 2, 2, w // 2, 2, c).max(axis=(2, 4))

    x = pool(conv_relu(x, params["conv1_w"], params["conv1_b"]))
    x = pool(conv_relu(x, params["conv2_w"], params["conv2_b"]))
    x = x.reshape(x.shape[0], -1)
    x = jnp.maximum(x @ params["fc1_w"] + params["fc1_b"], 0.0)
    return x @ params["fc2_w"] + params["fc2_b"]


def init_params(key, num_classes):
    ks = jax.random.split(key, 8)
    rnd = lambda k, shape, s: jax.random.normal(k, shape, jnp.float32) * s
    return {
        "conv1_w": rnd(ks[0], (3, 3, 1, 32), 0.1),       # HWIO (torch OIHW -> (2,3,1,0))
        "conv1_b": rnd(ks[1], (32,), 0.1),
        "conv2_w": rnd(ks[2], (3, 3, 32, 64), 0.05),
        "conv2_b": rnd(ks[3], (64,), 0.05),
        "fc1_w": rnd(ks[4], (64 * 11 * 11, 128), 0.01),  # rows in NHWC (h,w,c) order
        "fc1_b": rnd(ks[5], (128,), 0.01),
        "fc2_w": rnd(ks[6], (128, num_classes), 0.05),   # == torch fc2.weight.T
        "fc2_b": rnd(ks[7], (num_classes,), 0.05),
    }


if __name__ == "__main__":
    # TODO(synk): ImageFolder / torchvision transform pipeline is data loading,
    # not part of the module forward, so it is not reproduced here.
    num_classes = 7
    key = jax.random.PRNGKey(0)
    pkey, xkey = jax.random.split(key)
    params = init_params(pkey, num_classes)
    prep = prepare_params(params)          # one-time packing / bf16 cast
    x = jax.random.normal(xkey, (2, 1, 50, 50), jnp.float32)

    fwd = jax.jit(simple_cnn_forward)
    out = jax.block_until_ready(fwd(x, prep))
    assert out.shape == (2, num_classes) and out.dtype == jnp.float32

    ref = jax.block_until_ready(reference_forward(x, params))
    err = float(jnp.max(jnp.abs(out - ref)))
    assert err < 5e-2, f"mismatch vs f32 reference: max abs err {err}"
    print("KERNEL_OK")
</pallas_src>

<mosaic_0001>
module attributes {stable_mosaic.version = 11 : i64} {
  func.func @_conv_relu_pool_kernel(%arg0: i32, %arg1: memref<1x50x25x2xbf16, #tpu.memory_space<vmem>>, %arg2: memref<3x2x2x64xbf16, #tpu.memory_space<vmem>>, %arg3: memref<1x64xf32, #tpu.memory_space<vmem>>, %arg4: memref<1x24x24x32xbf16, #tpu.memory_space<vmem>>) attributes {dimension_semantics = [#tpu.dimension_semantics<parallel>], iteration_bounds = array<i64: 2>, scalar_prefetch = 0 : i64, scratch_operands = 0 : i64, tpu.core_type = #tpu.core_type<tc>, window_params = [{transform_indices = @transform_0, window_bounds = array<i64: 1, 50, 25, 2>}, {pipeline_mode = #tpu.pipeline_mode<synchronous>, transform_indices = @transform_1, window_bounds = array<i64: 3, 2, 2, 64>}, {pipeline_mode = #tpu.pipeline_mode<synchronous>, transform_indices = @transform_2, window_bounds = array<i64: 1, 64>}, {transform_indices = @transform_3, window_bounds = array<i64: 1, 24, 24, 32>}]} {
    %c0_i32 = arith.constant 0 : i32
    %c24_i32 = arith.constant 24 : i32
    %0 = arith.addi %c0_i32, %c24_i32 : i32
    %c1_i32 = arith.constant 1 : i32
    scf.for %arg5 = %c0_i32 to %0 step %c1_i32  : i32 {
      %c2_i32 = arith.constant 2 : i32
      %1 = arith.muli %c2_i32, %arg5 : i32
      %cst = arith.constant 0.000000e+00 : f32
      %2 = vector.broadcast %cst : f32 to vector<24x64xf32>
      %c0_i32_1 = arith.constant 0 : i32
      %3 = arith.addi %1, %c0_i32_1 : i32
      %c0 = arith.constant 0 : index
      %4 = arith.index_cast %3 : i32 to index
      %c0_2 = arith.constant 0 : index
      %c0_3 = arith.constant 0 : index
      %5 = vector.load %arg1[%c0, %4, %c0_2, %c0_3] : memref<1x50x25x2xbf16, #tpu.memory_space<vmem>>, vector<1x1x24x2xbf16>
      %6 = vector.shape_cast %5 : vector<1x1x24x2xbf16> to vector<24x2xbf16>
      %7 = arith.extf %6 : vector<24x2xbf16> to vector<24x2xf32>
      %c0_4 = arith.constant 0 : index
      %c0_5 = arith.constant 0 : index
      %c0_6 = arith.constant 0 : index
      %c0_7 = arith.constant 0 : index
      %8 = vector.load %arg2[%c0_4, %c0_5, %c0_6, %c0_7] : memref<3x2x2x64xbf16, #tpu.memory_space<vmem>>, vector<1x1x2x64xbf16>
      %9 = vector.shape_cast %8 : vector<1x1x2x64xbf16> to vector<2x64xbf16>
      %10 = arith.extf %9 : vector<2x64xbf16> to vector<2x64xf32>
      %11 = vector.extract_strided_slice %7 {offsets = [0, 0], sizes = [24, 1], strides = [1, 1]} : vector<24x2xf32> to vector<24x1xf32>
      %12 = vector.extract_strided_slice %10 {offsets = [0, 0], sizes = [1, 64], strides = [1, 1]} : vector<2x64xf32> to vector<1x64xf32>
      %13 = vector.broadcast %11 : vector<24x1xf32> to vector<24x64xf32>
      %14 = vector.broadcast %12 : vector<1x64xf32> to vector<24x64xf32>
      %15 = arith.mulf %13, %14 : vector<24x64xf32>
      %16 = arith.addf %2, %15 : vector<24x64xf32>
      %17 = vector.extract_strided_slice %7 {offsets = [0, 1], sizes = [24, 1], strides = [1, 1]} : vector<24x2xf32> to vector<24x1xf32>
      %18 = vector.extract_strided_slice %10 {offsets = [1, 0], sizes = [1, 64], strides = [1, 1]} : vector<2x64xf32> to vector<1x64xf32>
      %19 = vector.broadcast %17 : vector<24x1xf32> to vector<24x64xf32>
      %20 = vector.broadcast %18 : vector<1x64xf32> to vector<24x64xf32>
      %21 = arith.mulf %19, %20 : vector<24x64xf32>
      %22 = arith.addf %16, %21 : vector<24x64xf32>
      %c0_i32_8 = arith.constant 0 : i32
      %23 = arith.addi %1, %c0_i32_8 : i32
      %c0_9 = arith.constant 0 : index
      %24 = arith.index_cast %23 : i32 to index
      %c1 = arith.constant 1 : index
      %c0_10 = arith.constant 0 : index
      %25 = vector.load %arg1[%c0_9, %24, %c1, %c0_10] : memref<1x50x25x2xbf16, #tpu.memory_space<vmem>>, vector<1x1x24x2xbf16>
      %26 = vector.shape_cast %25 : vector<1x1x24x2xbf16> to vector<24x2xbf16>
      %27 = arith.extf %26 : vector<24x2xbf16> to vector<24x2xf32>
      %c0_11 = arith.constant 0 : index
      %c1_12 = arith.constant 1 : index
      %c0_13 = arith.constant 0 : index
      %c0_14 = arith.constant 0 : index
      %28 = vector.load %arg2[%c0_11, %c1_12, %c0_13, %c0_14] : memref<3x2x2x64xbf16, #tpu.memory_space<vmem>>, vector<1x1x2x64xbf16>
      %29 = vector.shape_cast %28 : vector<1x1x2x64xbf16> to vector<2x64xbf16>
      %30 = arith.extf %29 : vector<2x64xbf16> to vector<2x64xf32>
      %31 = vector.extract_strided_slice %27 {offsets = [0, 0], sizes = [24, 1], strides = [1, 1]} : vector<24x2xf32> to vector<24x1xf32>
      %32 = vector.extract_strided_slice %30 {offsets = [0, 0], sizes = [1, 64], strides = [1, 1]} : vector<2x64xf32> to vector<1x64xf32>
      %33 = vector.broadcast %31 : vector<24x1xf32> to vector<24x64xf32>
      %34 = vector.broadcast %32 : vector<1x64xf32> to vector<24x64xf32>
      %35 = arith.mulf %33, %34 : vector<24x64xf32>
      %36 = arith.addf %22, %35 : vector<24x64xf32>
      %37 = vector.extract_strided_slice %27 {offsets = [0, 1], sizes = [24, 1], strides = [1, 1]} : vector<24x2xf32> to vector<24x1xf32>
      %38 = vector.extract_strided_slice %30 {offsets = [1, 0], sizes = [1, 64], strides = [1, 1]} : vector<2x64xf32> to vector<1x64xf32>
      %39 = vector.broadcast %37 : vector<24x1xf32> to vector<24x64xf32>
      %40 = vector.broadcast %38 : vector<1x64xf32> to vector<24x64xf32>
      %41 = arith.mulf %39, %40 : vector<24x64xf32>
      %42 = arith.addf %36, %41 : vector<24x64xf32>
      %c1_i32_15 = arith.constant 1 : i32
      %43 = arith.addi %1, %c1_i32_15 : i32
      %c0_16 = arith.constant 0 : index
      %44 = arith.index_cast %43 : i32 to index
      %c0_17 = arith.constant 0 : index
      %c0_18 = arith.constant 0 : index
      %45 = vector.load %arg1[%c0_16, %44, %c0_17, %c0_18] : memref<1x50x25x2xbf16, #tpu.memory_space<vmem>>, vector<1x1x24x2xbf16>
      %46 = vector.shape_cast %45 : vector<1x1x24x2xbf16> to vector<24x2xbf16>
      %47 = arith.extf %46 : vector<24x2xbf16> to vector<24x2xf32>
      %c1_19 = arith.constant 1 : index
      %c0_20 = arith.constant 0 : index
      %c0_21 = arith.constant 0 : index
      %c0_22 = arith.constant 0 : index
      %48 = vector.load %arg2[%c1_19, %c0_20, %c0_21, %c0_22] : memref<3x2x2x64xbf16, #tpu.memory_space<vmem>>, vector<1x1x2x64xbf16>
      %49 = vector.shape_cast %48 : vector<1x1x2x64xbf16> to vector<2x64xbf16>
      %50 = arith.extf %49 : vector<2x64xbf16> to vector<2x64xf32>
      %51 = vector.extract_strided_slice %47 {offsets = [0, 0], sizes = [24, 1], strides = [1, 1]} : vector<24x2xf32> to vector<24x1xf32>
      %52 = vector.extract_strided_slice %50 {offsets = [0, 0], sizes = [1, 64], strides = [1, 1]} : vector<2x64xf32> to vector<1x64xf32>
      %53 = vector.broadcast %51 : vector<24x1xf32> to vector<24x64xf32>
      %54 = vector.broadcast %52 : vector<1x64xf32> to vector<24x64xf32>
      %55 = arith.mulf %53, %54 : vector<24x64xf32>
      %56 = arith.addf %42, %55 : vector<24x64xf32>
      %57 = vector.extract_strided_slice %47 {offsets = [0, 1], sizes = [24, 1], strides = [1, 1]} : vector<24x2xf32> to vector<24x1xf32>
      %58 = vector.extract_strided_slice %50 {offsets = [1, 0], sizes = [1, 64], strides = [1, 1]} : vector<2x64xf32> to vector<1x64xf32>
      %59 = vector.broadcast %57 : vector<24x1xf32> to vector<24x64xf32>
      %60 = vector.broadcast %58 : vector<1x64xf32> to vector<24x64xf32>
      %61 = arith.mulf %59, %60 : vector<24x64xf32>
      %62 = arith.addf %56, %61 : vector<24x64xf32>
      %c1_i32_23 = arith.constant 1 : i32
      %63 = arith.addi %1, %c1_i32_23 : i32
      %c0_24 = arith.constant 0 : index
      %64 = arith.index_cast %63 : i32 to index
      %c1_25 = arith.constant 1 : index
      %c0_26 = arith.constant 0 : index
      %65 = vector.load %arg1[%c0_24, %64, %c1_25, %c0_26] : memref<1x50x25x2xbf16, #tpu.memory_space<vmem>>, vector<1x1x24x2xbf16>
      %66 = vector.shape_cast %65 : vector<1x1x24x2xbf16> to vector<24x2xbf16>
      %67 = arith.extf %66 : vector<24x2xbf16> to vector<24x2xf32>
      %c1_27 = arith.constant 1 : index
      %c1_28 = arith.constant 1 : index
      %c0_29 = arith.constant 0 : index
      %c0_30 = arith.constant 0 : index
      %68 = vector.load %arg2[%c1_27, %c1_28, %c0_29, %c0_30] : memref<3x2x2x64xbf16, #tpu.memory_space<vmem>>, vector<1x1x2x64xbf16>
      %69 = vector.shape_cast %68 : vector<1x1x2x64xbf16> to vector<2x64xbf16>
      %70 = arith.extf %69 : vector<2x64xbf16> to vector<2x64xf32>
      %71 = vector.extract_strided_slice %67 {offsets = [0, 0], sizes = [24, 1], strides = [1, 1]} : vector<24x2xf32> to vector<24x1xf32>
      %72 = vector.extract_strided_slice %70 {offsets = [0, 0], sizes = [1, 64], strides = [1, 1]} : vector<2x64xf32> to vector<1x64xf32>
      %73 = vector.broadcast %71 : vector<24x1xf32> to vector<24x64xf32>
      %74 = vector.broadcast %72 : vector<1x64xf32> to vector<24x64xf32>
      %75 = arith.mulf %73, %74 : vector<24x64xf32>
      %76 = arith.addf %62, %75 : vector<24x64xf32>
      %77 = vector.extract_strided_slice %67 {offsets = [0, 1], sizes = [24, 1], strides = [1, 1]} : vector<24x2xf32> to vector<24x1xf32>
      %78 = vector.extract_strided_slice %70 {offsets = [1, 0], sizes = [1, 64], strides = [1, 1]} : vector<2x64xf32> to vector<1x64xf32>
      %79 = vector.broadcast %77 : vector<24x1xf32> to vector<24x64xf32>
      %80 = vector.broadcast %78 : vector<1x64xf32> to vector<24x64xf32>
      %81 = arith.mulf %79, %80 : vector<24x64xf32>
      %82 = arith.addf %76, %81 : vector<24x64xf32>
      %c2_i32_31 = arith.constant 2 : i32
      %83 = arith.addi %1, %c2_i32_31 : i32
      %c0_32 = arith.constant 0 : index
      %84 = arith.index_cast %83 : i32 to index
      %c0_33 = arith.constant 0 : index
      %c0_34 = arith.constant 0 : index
      %85 = vector.load %arg1[%c0_32, %84, %c0_33, %c0_34] : memref<1x50x25x2xbf16, #tpu.memory_space<vmem>>, vector<1x1x24x2xbf16>
      %86 = vector.shape_cast %85 : vector<1x1x24x2xbf16> to vector<24x2xbf16>
      %87 = arith.extf %86 : vector<24x2xbf16> to vector<24x2xf32>
      %c2 = arith.constant 2 : index
      %c0_35 = arith.constant 0 : index
      %c0_36 = arith.constant 0 : index
      %c0_37 = arith.constant 0 : index
      %88 = vector.load %arg2[%c2, %c0_35, %c0_36, %c0_37] : memref<3x2x2x64xbf16, #tpu.memory_space<vmem>>, vector<1x1x2x64xbf16>
      %89 = vector.shape_cast %88 : vector<1x1x2x64xbf16> to vector<2x64xbf16>
      %90 = arith.extf %89 : vector<2x64xbf16> to vector<2x64xf32>
      %91 = vector.extract_strided_slice %87 {offsets = [0, 0], sizes = [24, 1], strides = [1, 1]} : vector<24x2xf32> to vector<24x1xf32>
      %92 = vector.extract_strided_slice %90 {offsets = [0, 0], sizes = [1, 64], strides = [1, 1]} : vector<2x64xf32> to vector<1x64xf32>
      %93 = vector.broadcast %91 : vector<24x1xf32> to vector<24x64xf32>
      %94 = vector.broadcast %92 : vector<1x64xf32> to vector<24x64xf32>
      %95 = arith.mulf %93, %94 : vector<24x64xf32>
      %96 = arith.addf %82, %95 : vector<24x64xf32>
      %97 = vector.extract_strided_slice %87 {offsets = [0, 1], sizes = [24, 1], strides = [1, 1]} : vector<24x2xf32> to vector<24x1xf32>
      %98 = vector.extract_strided_slice %90 {offsets = [1, 0], sizes = [1, 64], strides = [1, 1]} : vector<2x64xf32> to vector<1x64xf32>
      %99 = vector.broadcast %97 : vector<24x1xf32> to vector<24x64xf32>
      %100 = vector.broadcast %98 : vector<1x64xf32> to vector<24x64xf32>
      %101 = arith.mulf %99, %100 : vector<24x64xf32>
      %102 = arith.addf %96, %101 : vector<24x64xf32>
      %c2_i32_38 = arith.constant 2 : i32
      %103 = arith.addi %1, %c2_i32_38 : i32
      %c0_39 = arith.constant 0 : index
      %104 = arith.index_cast %103 : i32 to index
      %c1_40 = arith.constant 1 : index
      %c0_41 = arith.constant 0 : index
      %105 = vector.load %arg1[%c0_39, %104, %c1_40, %c0_41] : memref<1x50x25x2xbf16, #tpu.memory_space<vmem>>, vector<1x1x24x2xbf16>
      %106 = vector.shape_cast %105 : vector<1x1x24x2xbf16> to vector<24x2xbf16>
      %107 = arith.extf %106 : vector<24x2xbf16> to vector<24x2xf32>
      %c2_42 = arith.constant 2 : index
      %c1_43 = arith.constant 1 : index
      %c0_44 = arith.constant 0 : index
      %c0_45 = arith.constant 0 : index
      %108 = vector.load %arg2[%c2_42, %c1_43, %c0_44, %c0_45] : memref<3x2x2x64xbf16, #tpu.memory_space<vmem>>, vector<1x1x2x64xbf16>
      %109 = vector.shape_cast %108 : vector<1x1x2x64xbf16> to vector<2x64xbf16>
      %110 = arith.extf %109 : vector<2x64xbf16> to vector<2x64xf32>
      %111 = vector.extract_strided_slice %107 {offsets = [0, 0], sizes = [24, 1], strides = [1, 1]} : vector<24x2xf32> to vector<24x1xf32>
      %112 = vector.extract_strided_slice %110 {offsets = [0, 0], sizes = [1, 64], strides = [1, 1]} : vector<2x64xf32> to vector<1x64xf32>
      %113 = vector.broadcast %111 : vector<24x1xf32> to vector<24x64xf32>
      %114 = vector.broadcast %112 : vector<1x64xf32> to vector<24x64xf32>
      %115 = arith.mulf %113, %114 : vector<24x64xf32>
      %116 = arith.addf %102, %115 : vector<24x64xf32>
      %117 = vector.extract_strided_slice %107 {offsets = [0, 1], sizes = [24, 1], strides = [1, 1]} : vector<24x2xf32> to vector<24x1xf32>
      %118 = vector.extract_strided_slice %110 {offsets = [1, 0], sizes = [1, 64], strides = [1, 1]} : vector<2x64xf32> to vector<1x64xf32>
      %119 = vector.broadcast %117 : vector<24x1xf32> to vector<24x64xf32>
      %120 = vector.broadcast %118 : vector<1x64xf32> to vector<24x64xf32>
      %121 = arith.mulf %119, %120 : vector<24x64xf32>
      %122 = arith.addf %116, %121 : vector<24x64xf32>
      %c2_i32_46 = arith.constant 2 : i32
      %123 = arith.muli %c2_i32_46, %arg5 : i32
      %c1_i32_47 = arith.constant 1 : i32
      %124 = arith.addi %123, %c1_i32_47 : i32
      %cst_48 = arith.constant 0.000000e+00 : f32
      %125 = vector.broadcast %cst_48 : f32 to vector<24x64xf32>
      %c0_i32_49 = arith.constant 0 : i32
      %126 = arith.addi %124, %c0_i32_49 : i32
      %c0_50 = arith.constant 0 : index
      %127 = arith.index_cast %126 : i32 to index
      %c0_51 = arith.constant 0 : index
      %c0_52 = arith.constant 0 : index
      %128 = vector.load %arg1[%c0_50, %127, %c0_51, %c0_52] : memref<1x50x25x2xbf16, #tpu.memory_space<vmem>>, vector<1x1x24x2xbf16>
      %129 = vector.shape_cast %128 : vector<1x1x24x2xbf16> to vector<24x2xbf16>
      %130 = arith.extf %129 : vector<24x2xbf16> to vector<24x2xf32>
      %c0_53 = arith.constant 0 : index
      %c0_54 = arith.constant 0 : index
      %c0_55 = arith.constant 0 : index
      %c0_56 = arith.constant 0 : index
      %131 = vector.load %arg2[%c0_53, %c0_54, %c0_55, %c0_56] : memref<3x2x2x64xbf16, #tpu.memory_space<vmem>>, vector<1x1x2x64xbf16>
      %132 = vector.shape_cast %131 : vector<1x1x2x64xbf16> to vector<2x64xbf16>
      %133 = arith.extf %132 : vector<2x64xbf16> to vector<2x64xf32>
      %134 = vector.extract_strided_slice %130 {offsets = [0, 0], sizes = [24, 1], strides = [1, 1]} : vector<24x2xf32> to vector<24x1xf32>
      %135 = vector.extract_strided_slice %133 {offsets = [0, 0], sizes = [1, 64], strides = [1, 1]} : vector<2x64xf32> to vector<1x64xf32>
      %136 = vector.broadcast %134 : vector<24x1xf32> to vector<24x64xf32>
      %137 = vector.broadcast %135 : vector<1x64xf32> to vector<24x64xf32>
      %138 = arith.mulf %136, %137 : vector<24x64xf32>
      %139 = arith.addf %125, %138 : vector<24x64xf32>
      %140 = vector.extract_strided_slice %130 {offsets = [0, 1], sizes = [24, 1], strides = [1, 1]} : vector<24x2xf32> to vector<24x1xf32>
      %141 = vector.extract_strided_slice %133 {offsets = [1, 0], sizes = [1, 64], strides = [1, 1]} : vector<2x64xf32> to vector<1x64xf32>
      %142 = vector.broadcast %140 : vector<24x1xf32> to vector<24x64xf32>
      %143 = vector.broadcast %141 : vector<1x64xf32> to vector<24x64xf32>
      %144 = arith.mulf %142, %143 : vector<24x64xf32>
      %145 = arith.addf %139, %144 : vector<24x64xf32>
      %c0_i32_57 = arith.constant 0 : i32
      %146 = arith.addi %124, %c0_i32_57 : i32
      %c0_58 = arith.constant 0 : index
      %147 = arith.index_cast %146 : i32 to index
      %c1_59 = arith.constant 1 : index
      %c0_60 = arith.constant 0 : index
      %148 = vector.load %arg1[%c0_58, %147, %c1_59, %c0_60] : memref<1x50x25x2xbf16, #tpu.memory_space<vmem>>, vector<1x1x24x2xbf16>
      %149 = vector.shape_cast %148 : vector<1x1x24x2xbf16> to vector<24x2xbf16>
      %150 = arith.extf %149 : vector<24x2xbf16> to vector<24x2xf32>
      %c0_61 = arith.constant 0 : index
      %c1_62 = arith.constant 1 : index
      %c0_63 = arith.constant 0 : index
      %c0_64 = arith.constant 0 : index
      %151 = vector.load %arg2[%c0_61, %c1_62, %c0_63, %c0_64] : memref<3x2x2x64xbf16, #tpu.memory_space<vmem>>, vector<1x1x2x64xbf16>
      %152 = vector.shape_cast %151 : vector<1x1x2x64xbf16> to vector<2x64xbf16>
      %153 = arith.extf %152 : vector<2x64xbf16> to vector<2x64xf32>
      %154 = vector.extract_strided_slice %150 {offsets = [0, 0], sizes = [24, 1], strides = [1, 1]} : vector<24x2xf32> to vector<24x1xf32>
      %155 = vector.extract_strided_slice %153 {offsets = [0, 0], sizes = [1, 64], strides = [1, 1]} : vector<2x64xf32> to vector<1x64xf32>
      %156 = vector.broadcast %154 : vector<24x1xf32> to vector<24x64xf32>
      %157 = vector.broadcast %155 : vector<1x64xf32> to vector<24x64xf32>
      %158 = arith.mulf %156, %157 : vector<24x64xf32>
      %159 = arith.addf %145, %158 : vector<24x64xf32>
      %160 = vector.extract_strided_slice %150 {offsets = [0, 1], sizes = [24, 1], strides = [1, 1]} : vector<24x2xf32> to vector<24x1xf32>
      %161 = vector.extract_strided_slice %153 {offsets = [1, 0], sizes = [1, 64], strides = [1, 1]} : vector<2x64xf32> to vector<1x64xf32>
      %162 = vector.broadcast %160 : vector<24x1xf32> to vector<24x64xf32>
      %163 = vector.broadcast %161 : vector<1x64xf32> to vector<24x64xf32>
      %164 = arith.mulf %162, %163 : vector<24x64xf32>
      %165 = arith.addf %159, %164 : vector<24x64xf32>
      %c1_i32_65 = arith.constant 1 : i32
      %166 = arith.addi %124, %c1_i32_65 : i32
      %c0_66 = arith.constant 0 : index
      %167 = arith.index_cast %166 : i32 to index
      %c0_67 = arith.constant 0 : index
      %c0_68 = arith.constant 0 : index
      %168 = vector.load %arg1[%c0_66, %167, %c0_67, %c0_68] : memref<1x50x25x2xbf16, #tpu.memory_space<vmem>>, vector<1x1x24x2xbf16>
      %169 = vector.shape_cast %168 : vector<1x1x24x2xbf16> to vector<24x2xbf16>
      %170 = arith.extf %169 : vector<24x2xbf16> to vector<24x2xf32>
      %c1_69 = arith.constant 1 : index
      %c0_70 = arith.constant 0 : index
      %c0_71 = arith.constant 0 : index
      %c0_72 = arith.constant 0 : index
      %171 = vector.load %arg2[%c1_69, %c0_70, %c0_71, %c0_72] : memref<3x2x2x64xbf16, #tpu.memory_space<vmem>>, vector<1x1x2x64xbf16>
      %172 = vector.shape_cast %171 : vector<1x1x2x64xbf16> to vector<2x64xbf16>
      %173 = arith.extf %172 : vector<2x64xbf16> to vector<2x64xf32>
      %174 = vector.extract_strided_slice %170 {offsets = [0, 0], sizes = [24, 1], strides = [1, 1]} : vector<24x2xf32> to vector<24x1xf32>
      %175 = vector.extract_strided_slice %173 {offsets = [0, 0], sizes = [1, 64], strides = [1, 1]} : vector<2x64xf32> to vector<1x64xf32>
      %176 = vector.broadcast %174 : vector<24x1xf32> to vector<24x64xf32>
      %177 = vector.broadcast %175 : vector<1x64xf32> to vector<24x64xf32>
      %178 = arith.mulf %176, %177 : vector<24x64xf32>
      %179 = arith.addf %165, %178 : vector<24x64xf32>
      %180 = vector.extract_strided_slice %170 {offsets = [0, 1], sizes = [24, 1], strides = [1, 1]} : vector<24x2xf32> to vector<24x1xf32>
      %181 = vector.extract_strided_slice %173 {offsets = [1, 0], sizes = [1, 64], strides = [1, 1]} : vector<2x64xf32> to vector<1x64xf32>
      %182 = vector.broadcast %180 : vector<24x1xf32> to vector<24x64xf32>
      %183 = vector.broadcast %181 : vector<1x64xf32> to vector<24x64xf32>
      %184 = arith.mulf %182, %183 : vector<24x64xf32>
      %185 = arith.addf %179, %184 : vector<24x64xf32>
      %c1_i32_73 = arith.constant 1 : i32
      %186 = arith.addi %124, %c1_i32_73 : i32
      %c0_74 = arith.constant 0 : index
      %187 = arith.index_cast %186 : i32 to index
      %c1_75 = arith.constant 1 : index
      %c0_76 = arith.constant 0 : index
      %188 = vector.load %arg1[%c0_74, %187, %c1_75, %c0_76] : memref<1x50x25x2xbf16, #tpu.memory_space<vmem>>, vector<1x1x24x2xbf16>
      %189 = vector.shape_cast %188 : vector<1x1x24x2xbf16> to vector<24x2xbf16>
      %190 = arith.extf %189 : vector<24x2xbf16> to vector<24x2xf32>
      %c1_77 = arith.constant 1 : index
      %c1_78 = arith.constant 1 : index
      %c0_79 = arith.constant 0 : index
      %c0_80 = arith.constant 0 : index
      %191 = vector.load %arg2[%c1_77, %c1_78, %c0_79, %c0_80] : memref<3x2x2x64xbf16, #tpu.memory_space<vmem>>, vector<1x1x2x64xbf16>
      %192 = vector.shape_cast %191 : vector<1x1x2x64xbf16> to vector<2x64xbf16>
      %193 = arith.extf %192 : vector<2x64xbf16> to vector<2x64xf32>
      %194 = vector.extract_strided_slice %190 {offsets = [0, 0], sizes = [24, 1], strides = [1, 1]} : vector<24x2xf32> to vector<24x1xf32>
      %195 = vector.extract_strided_slice %193 {offsets = [0, 0], sizes = [1, 64], strides = [1, 1]} : vector<2x64xf32> to vector<1x64xf32>
      %196 = vector.broadcast %194 : vector<24x1xf32> to vector<24x64xf32>
      %197 = vector.broadcast %195 : vector<1x64xf32> to vector<24x64xf32>
      %198 = arith.mulf %196, %197 : vector<24x64xf32>
      %199 = arith.addf %185, %198 : vector<24x64xf32>
      %200 = vector.extract_strided_slice %190 {offsets = [0, 1], sizes = [24, 1], strides = [1, 1]} : vector<24x2xf32> to vector<24x1xf32>
      %201 = vector.extract_strided_slice %193 {offsets = [1, 0], sizes = [1, 64], strides = [1, 1]} : vector<2x64xf32> to vector<1x64xf32>
      %202 = vector.broadcast %200 : vector<24x1xf32> to vector<24x64xf32>
      %203 = vector.broadcast %201 : vector<1x64xf32> to vector<24x64xf32>
      %204 = arith.mulf %202, %203 : vector<24x64xf32>
      %205 = arith.addf %199, %204 : vector<24x64xf32>
      %c2_i32_81 = arith.constant 2 : i32
      %206 = arith.addi %124, %c2_i32_81 : i32
      %c0_82 = arith.constant 0 : index
      %207 = arith.index_cast %206 : i32 to index
      %c0_83 = arith.constant 0 : index
      %c0_84 = arith.constant 0 : index
      %208 = vector.load %arg1[%c0_82, %207, %c0_83, %c0_84] : memref<1x50x25x2xbf16, #tpu.memory_space<vmem>>, vector<1x1x24x2xbf16>
      %209 = vector.shape_cast %208 : vector<1x1x24x2xbf16> to vector<24x2xbf16>
      %210 = arith.extf %209 : vector<24x2xbf16> to vector<24x2xf32>
      %c2_85 = arith.constant 2 : index
      %c0_86 = arith.constant 0 : index
      %c0_87 = arith.constant 0 : index
      %c0_88 = arith.constant 0 : index
      %211 = vector.load %arg2[%c2_85, %c0_86, %c0_87, %c0_88] : memref<3x2x2x64xbf16, #tpu.memory_space<vmem>>, vector<1x1x2x64xbf16>
      %212 = vector.shape_cast %211 : vector<1x1x2x64xbf16> to vector<2x64xbf16>
      %213 = arith.extf %212 : vector<2x64xbf16> to vector<2x64xf32>
      %214 = vector.extract_strided_slice %210 {offsets = [0, 0], sizes = [24, 1], strides = [1, 1]} : vector<24x2xf32> to vector<24x1xf32>
      %215 = vector.extract_strided_slice %213 {offsets = [0, 0], sizes = [1, 64], strides = [1, 1]} : vector<2x64xf32> to vector<1x64xf32>
      %216 = vector.broadcast %214 : vector<24x1xf32> to vector<24x64xf32>
      %217 = vector.broadcast %215 : vector<1x64xf32> to vector<24x64xf32>
      %218 = arith.mulf %216, %217 : vector<24x64xf32>
      %219 = arith.addf %205, %218 : vector<24x64xf32>
      %220 = vector.extract_strided_slice %210 {offsets = [0, 1], sizes = [24, 1], strides = [1, 1]} : vector<24x2xf32> to vector<24x1xf32>
      %221 = vector.extract_strided_slice %213 {offsets = [1, 0], sizes = [1, 64], strides = [1, 1]} : vector<2x64xf32> to vector<1x64xf32>
      %222 = vector.broadcast %220 : vector<24x1xf32> to vector<24x64xf32>
      %223 = vector.broadcast %221 : vector<1x64xf32> to vector<24x64xf32>
      %224 = arith.mulf %222, %223 : vector<24x64xf32>
      %225 = arith.addf %219, %224 : vector<24x64xf32>
      %c2_i32_89 = arith.constant 2 : i32
      %226 = arith.addi %124, %c2_i32_89 : i32
      %c0_90 = arith.constant 0 : index
      %227 = arith.index_cast %226 : i32 to index
      %c1_91 = arith.constant 1 : index
      %c0_92 = arith.constant 0 : index
      %228 = vector.load %arg1[%c0_90, %227, %c1_91, %c0_92] : memref<1x50x25x2xbf16, #tpu.memory_space<vmem>>, vector<1x1x24x2xbf16>
      %229 = vector.shape_cast %228 : vector<1x1x24x2xbf16> to vector<24x2xbf16>
      %230 = arith.extf %229 : vector<24x2xbf16> to vector<24x2xf32>
      %c2_93 = arith.constant 2 : index
      %c1_94 = arith.constant 1 : index
      %c0_95 = arith.constant 0 : index
      %c0_96 = arith.constant 0 : index
      %231 = vector.load %arg2[%c2_93, %c1_94, %c0_95, %c0_96] : memref<3x2x2x64xbf16, #tpu.memory_space<vmem>>, vector<1x1x2x64xbf16>
      %232 = vector.shape_cast %231 : vector<1x1x2x64xbf16> to vector<2x64xbf16>
      %233 = arith.extf %232 : vector<2x64xbf16> to vector<2x64xf32>
      %234 = vector.extract_strided_slice %230 {offsets = [0, 0], sizes = [24, 1], strides = [1, 1]} : vector<24x2xf32> to vector<24x1xf32>
      %235 = vector.extract_strided_slice %233 {offsets = [0, 0], sizes = [1, 64], strides = [1, 1]} : vector<2x64xf32> to vector<1x64xf32>
      %236 = vector.broadcast %234 : vector<24x1xf32> to vector<24x64xf32>
      %237 = vector.broadcast %235 : vector<1x64xf32> to vector<24x64xf32>
      %238 = arith.mulf %236, %237 : vector<24x64xf32>
      %239 = arith.addf %225, %238 : vector<24x64xf32>
      %240 = vector.extract_strided_slice %230 {offsets = [0, 1], sizes = [24, 1], strides = [1, 1]} : vector<24x2xf32> to vector<24x1xf32>
      %241 = vector.extract_strided_slice %233 {offsets = [1, 0], sizes = [1, 64], strides = [1, 1]} : vector<2x64xf32> to vector<1x64xf32>
      %242 = vector.broadcast %240 : vector<24x1xf32> to vector<24x64xf32>
      %243 = vector.broadcast %241 : vector<1x64xf32> to vector<24x64xf32>
      %244 = arith.mulf %242, %243 : vector<24x64xf32>
      %245 = arith.addf %239, %244 : vector<24x64xf32>
      %246 = arith.maximumf %122, %245 : vector<24x64xf32>
      %c0_97 = arith.constant 0 : index
      %c0_98 = arith.constant 0 : index
      %247 = vector.load %arg3[%c0_97, %c0_98] : memref<1x64xf32, #tpu.memory_space<vmem>>, vector<1x64xf32>
      %248 = vector.broadcast %247 : vector<1x64xf32> to vector<24x64xf32>
      %249 = arith.addf %246, %248 : vector<24x64xf32>
      %cst_99 = arith.constant 0.000000e+00 : f32
      %250 = vector.broadcast %cst_99 : f32 to vector<24x64xf32>
      %251 = arith.maximumf %249, %250 : vector<24x64xf32>
      %252 = vector.extract_strided_slice %251 {offsets = [0, 0], sizes = [24, 32], strides = [1, 1]} : vector<24x64xf32> to vector<24x32xf32>
      %253 = vector.extract_strided_slice %251 {offsets = [0, 32], sizes = [24, 32], strides = [1, 1]} : vector<24x64xf32> to vector<24x32xf32>
      %254 = arith.maximumf %252, %253 : vector<24x32xf32>
      %255 = arith.truncf %254 : vector<24x32xf32> to vector<24x32xbf16>
      %c0_100 = arith.constant 0 : index
      %256 = arith.index_cast %arg5 : i32 to index
      %c0_101 = arith.constant 0 : index
      %c0_102 = arith.constant 0 : index
      %257 = vector.load %arg4[%c0_100, %256, %c0_101, %c0_102] : memref<1x24x24x32xbf16, #tpu.memory_space<vmem>>, vector<1x1x24x32xbf16>
      %258 = vector.shape_cast %257 : vector<1x1x24x32xbf16> to vector<24x32xbf16>
      %259 = vector.shape_cast %255 : vector<24x32xbf16> to vector<1x1x24x32xbf16>
      tpu.vector_store %arg4[%c0_100, %256, %c0_101, %c0_102], %259 {strides = array<i32>} : memref<1x24x24x32xbf16, #tpu.memory_space<vmem>>, vector<1x1x24x32xbf16>,
    }
    %c24_i32_0 = arith.constant 24 : i32
    return
  }
  func.func @transform_0(%arg0: i32) -> (i32, i32, i32, i32) {
    %c0_i32 = arith.constant 0 : i32
    %c0_i32_0 = arith.constant 0 : i32
    %c0_i32_1 = arith.constant 0 : i32
    %c0_i32_2 = arith.constant 0 : i32
    return %arg0, %c0_i32, %c0_i32_0, %c0_i32_1 : i32, i32, i32, i32
  }
  func.func @transform_1(%arg0: i32) -> (i32, i32, i32, i32) {
    %c0_i32 = arith.constant 0 : i32
    %c0_i32_0 = arith.constant 0 : i32
    %c0_i32_1 = arith.constant 0 : i32
    %c0_i32_2 = arith.constant 0 : i32
    %c0_i32_3 = arith.constant 0 : i32
    return %c0_i32, %c0_i32_0, %c0_i32_1, %c0_i32_2 : i32, i32, i32, i32
  }
  func.func @transform_2(%arg0: i32) -> (i32, i32) {
    %c0_i32 = arith.constant 0 : i32
    %c0_i32_0 = arith.constant 0 : i32
    %c0_i32_1 = arith.constant 0 : i32
    return %c0_i32, %c0_i32_0 : i32, i32
  }
  func.func @transform_3(%arg0: i32) -> (i32, i32, i32, i32) {
    %c0_i32 = arith.constant 0 : i32
    %c0_i32_0 = arith.constant 0 : i32
    %c0_i32_1 = arith.constant 0 : i32
    %c0_i32_2 = arith.constant 0 : i32
    return %arg0, %c0_i32, %c0_i32_0, %c0_i32_1 : i32, i32, i32, i32
  }
}

module attributes {stable_mosaic.version = 11 : i64} {
  func.func @_conv_relu_pool_kernel(%arg0: i32, %arg1: memref<1x24x12x64xbf16, #tpu.memory_space<vmem>>, %arg2: memref<3x2x64x128xbf16, #tpu.memory_space<vmem>>, %arg3: memref<1x128xf32, #tpu.memory_space<vmem>>, %arg4: memref<1x11x11x64xbf16, #tpu.memory_space<vmem>>) attributes {dimension_semantics = [#tpu.dimension_semantics<parallel>], iteration_bounds = array<i64: 2>, scalar_prefetch = 0 : i64, scratch_operands = 0 : i64, tpu.core_type = #tpu.core_type<tc>, window_params = [{transform_indices = @transform_0, window_bounds = array<i64: 1, 24, 12, 64>}, {pipeline_mode = #tpu.pipeline_mode<synchronous>, transform_indices = @transform_1, window_bounds = array<i64: 3, 2, 64, 128>}, {pipeline_mode = #tpu.pipeline_mode<synchronous>, transform_indices = @transform_2, window_bounds = array<i64: 1, 128>}, {transform_indices = @transform_3, window_bounds = array<i64: 1, 11, 11, 64>}]} {
    %c0_i32 = arith.constant 0 : i32
    %c11_i32 = arith.constant 11 : i32
    %0 = arith.addi %c0_i32, %c11_i32 : i32
    %c1_i32 = arith.constant 1 : i32
    scf.for %arg5 = %c0_i32 to %0 step %c1_i32  : i32 {
      %c2_i32 = arith.constant 2 : i32
      %1 = arith.muli %c2_i32, %arg5 : i32
      %cst = arith.constant 0.000000e+00 : f32
      %2 = vector.broadcast %cst : f32 to vector<11x128xf32>
      %c0_i32_1 = arith.constant 0 : i32
      %3 = arith.addi %1, %c0_i32_1 : i32
      %c0 = arith.constant 0 : index
      %4 = arith.index_cast %3 : i32 to index
      %c0_2 = arith.constant 0 : index
      %c0_3 = arith.constant 0 : index
      %5 = vector.load %arg1[%c0, %4, %c0_2, %c0_3] : memref<1x24x12x64xbf16, #tpu.memory_space<vmem>>, vector<1x1x11x64xbf16>
      %6 = vector.shape_cast %5 : vector<1x1x11x64xbf16> to vector<11x64xbf16>
      %c0_4 = arith.constant 0 : index
      %c0_5 = arith.constant 0 : index
      %c0_6 = arith.constant 0 : index
      %c0_7 = arith.constant 0 : index
      %7 = vector.load %arg2[%c0_4, %c0_5, %c0_6, %c0_7] : memref<3x2x64x128xbf16, #tpu.memory_space<vmem>>, vector<1x1x64x128xbf16>
      %8 = vector.shape_cast %7 : vector<1x1x64x128xbf16> to vector<64x128xbf16>
      %cst_8 = arith.constant dense<0.000000e+00> : vector<11x128xf32>
      %9 = tpu.matmul %6, %8, %cst_8 {dimension_numbers = #tpu.dot_dimension_numbers<[1], [0], [0], [1], [0, 0, 1, 1], [], []>} : vector<11x64xbf16>, vector<64x128xbf16>, vector<11x128xf32> -> vector<11x128xf32>
      %10 = arith.addf %2, %9 : vector<11x128xf32>
      %c0_i32_9 = arith.constant 0 : i32
      %11 = arith.addi %1, %c0_i32_9 : i32
      %c0_10 = arith.constant 0 : index
      %12 = arith.index_cast %11 : i32 to index
      %c1 = arith.constant 1 : index
      %c0_11 = arith.constant 0 : index
      %13 = vector.load %arg1[%c0_10, %12, %c1, %c0_11] : memref<1x24x12x64xbf16, #tpu.memory_space<vmem>>, vector<1x1x11x64xbf16>
      %14 = vector.shape_cast %13 : vector<1x1x11x64xbf16> to vector<11x64xbf16>
      %c0_12 = arith.constant 0 : index
      %c1_13 = arith.constant 1 : index
      %c0_14 = arith.constant 0 : index
      %c0_15 = arith.constant 0 : index
      %15 = vector.load %arg2[%c0_12, %c1_13, %c0_14, %c0_15] : memref<3x2x64x128xbf16, #tpu.memory_space<vmem>>, vector<1x1x64x128xbf16>
      %16 = vector.shape_cast %15 : vector<1x1x64x128xbf16> to vector<64x128xbf16>
      %cst_16 = arith.constant dense<0.000000e+00> : vector<11x128xf32>
      %17 = tpu.matmul %14, %16, %cst_16 {dimension_numbers = #tpu.dot_dimension_numbers<[1], [0], [0], [1], [0, 0, 1, 1], [], []>} : vector<11x64xbf16>, vector<64x128xbf16>, vector<11x128xf32> -> vector<11x128xf32>
      %18 = arith.addf %10, %17 : vector<11x128xf32>
      %c1_i32_17 = arith.constant 1 : i32
      %19 = arith.addi %1, %c1_i32_17 : i32
      %c0_18 = arith.constant 0 : index
      %20 = arith.index_cast %19 : i32 to index
      %c0_19 = arith.constant 0 : index
      %c0_20 = arith.constant 0 : index
      %21 = vector.load %arg1[%c0_18, %20, %c0_19, %c0_20] : memref<1x24x12x64xbf16, #tpu.memory_space<vmem>>, vector<1x1x11x64xbf16>
      %22 = vector.shape_cast %21 : vector<1x1x11x64xbf16> to vector<11x64xbf16>
      %c1_21 = arith.constant 1 : index
      %c0_22 = arith.constant 0 : index
      %c0_23 = arith.constant 0 : index
      %c0_24 = arith.constant 0 : index
      %23 = vector.load %arg2[%c1_21, %c0_22, %c0_23, %c0_24] : memref<3x2x64x128xbf16, #tpu.memory_space<vmem>>, vector<1x1x64x128xbf16>
      %24 = vector.shape_cast %23 : vector<1x1x64x128xbf16> to vector<64x128xbf16>
      %cst_25 = arith.constant dense<0.000000e+00> : vector<11x128xf32>
      %25 = tpu.matmul %22, %24, %cst_25 {dimension_numbers = #tpu.dot_dimension_numbers<[1], [0], [0], [1], [0, 0, 1, 1], [], []>} : vector<11x64xbf16>, vector<64x128xbf16>, vector<11x128xf32> -> vector<11x128xf32>
      %26 = arith.addf %18, %25 : vector<11x128xf32>
      %c1_i32_26 = arith.constant 1 : i32
      %27 = arith.addi %1, %c1_i32_26 : i32
      %c0_27 = arith.constant 0 : index
      %28 = arith.index_cast %27 : i32 to index
      %c1_28 = arith.constant 1 : index
      %c0_29 = arith.constant 0 : index
      %29 = vector.load %arg1[%c0_27, %28, %c1_28, %c0_29] : memref<1x24x12x64xbf16, #tpu.memory_space<vmem>>, vector<1x1x11x64xbf16>
      %30 = vector.shape_cast %29 : vector<1x1x11x64xbf16> to vector<11x64xbf16>
      %c1_30 = arith.constant 1 : index
      %c1_31 = arith.constant 1 : index
      %c0_32 = arith.constant 0 : index
      %c0_33 = arith.constant 0 : index
      %31 = vector.load %arg2[%c1_30, %c1_31, %c0_32, %c0_33] : memref<3x2x64x128xbf16, #tpu.memory_space<vmem>>, vector<1x1x64x128xbf16>
      %32 = vector.shape_cast %31 : vector<1x1x64x128xbf16> to vector<64x128xbf16>
      %cst_34 = arith.constant dense<0.000000e+00> : vector<11x128xf32>
      %33 = tpu.matmul %30, %32, %cst_34 {dimension_numbers = #tpu.dot_dimension_numbers<[1], [0], [0], [1], [0, 0, 1, 1], [], []>} : vector<11x64xbf16>, vector<64x128xbf16>, vector<11x128xf32> -> vector<11x128xf32>
      %34 = arith.addf %26, %33 : vector<11x128xf32>
      %c2_i32_35 = arith.constant 2 : i32
      %35 = arith.addi %1, %c2_i32_35 : i32
      %c0_36 = arith.constant 0 : index
      %36 = arith.index_cast %35 : i32 to index
      %c0_37 = arith.constant 0 : index
      %c0_38 = arith.constant 0 : index
      %37 = vector.load %arg1[%c0_36, %36, %c0_37, %c0_38] : memref<1x24x12x64xbf16, #tpu.memory_space<vmem>>, vector<1x1x11x64xbf16>
      %38 = vector.shape_cast %37 : vector<1x1x11x64xbf16> to vector<11x64xbf16>
      %c2 = arith.constant 2 : index
      %c0_39 = arith.constant 0 : index
      %c0_40 = arith.constant 0 : index
      %c0_41 = arith.constant 0 : index
      %39 = vector.load %arg2[%c2, %c0_39, %c0_40, %c0_41] : memref<3x2x64x128xbf16, #tpu.memory_space<vmem>>, vector<1x1x64x128xbf16>
      %40 = vector.shape_cast %39 : vector<1x1x64x128xbf16> to vector<64x128xbf16>
      %cst_42 = arith.constant dense<0.000000e+00> : vector<11x128xf32>
      %41 = tpu.matmul %38, %40, %cst_42 {dimension_numbers = #tpu.dot_dimension_numbers<[1], [0], [0], [1], [0, 0, 1, 1], [], []>} : vector<11x64xbf16>, vector<64x128xbf16>, vector<11x128xf32> -> vector<11x128xf32>
      %42 = arith.addf %34, %41 : vector<11x128xf32>
      %c2_i32_43 = arith.constant 2 : i32
      %43 = arith.addi %1, %c2_i32_43 : i32
      %c0_44 = arith.constant 0 : index
      %44 = arith.index_cast %43 : i32 to index
      %c1_45 = arith.constant 1 : index
      %c0_46 = arith.constant 0 : index
      %45 = vector.load %arg1[%c0_44, %44, %c1_45, %c0_46] : memref<1x24x12x64xbf16, #tpu.memory_space<vmem>>, vector<1x1x11x64xbf16>
      %46 = vector.shape_cast %45 : vector<1x1x11x64xbf16> to vector<11x64xbf16>
      %c2_47 = arith.constant 2 : index
      %c1_48 = arith.constant 1 : index
      %c0_49 = arith.constant 0 : index
      %c0_50 = arith.constant 0 : index
      %47 = vector.load %arg2[%c2_47, %c1_48, %c0_49, %c0_50] : memref<3x2x64x128xbf16, #tpu.memory_space<vmem>>, vector<1x1x64x128xbf16>
      %48 = vector.shape_cast %47 : vector<1x1x64x128xbf16> to vector<64x128xbf16>
      %cst_51 = arith.constant dense<0.000000e+00> : vector<11x128xf32>
      %49 = tpu.matmul %46, %48, %cst_51 {dimension_numbers = #tpu.dot_dimension_numbers<[1], [0], [0], [1], [0, 0, 1, 1], [], []>} : vector<11x64xbf16>, vector<64x128xbf16>, vector<11x128xf32> -> vector<11x128xf32>
      %50 = arith.addf %42, %49 : vector<11x128xf32>
      %c2_i32_52 = arith.constant 2 : i32
      %51 = arith.muli %c2_i32_52, %arg5 : i32
      %c1_i32_53 = arith.constant 1 : i32
      %52 = arith.addi %51, %c1_i32_53 : i32
      %cst_54 = arith.constant 0.000000e+00 : f32
      %53 = vector.broadcast %cst_54 : f32 to vector<11x128xf32>
      %c0_i32_55 = arith.constant 0 : i32
      %54 = arith.addi %52, %c0_i32_55 : i32
      %c0_56 = arith.constant 0 : index
      %55 = arith.index_cast %54 : i32 to index
      %c0_57 = arith.constant 0 : index
      %c0_58 = arith.constant 0 : index
      %56 = vector.load %arg1[%c0_56, %55, %c0_57, %c0_58] : memref<1x24x12x64xbf16, #tpu.memory_space<vmem>>, vector<1x1x11x64xbf16>
      %57 = vector.shape_cast %56 : vector<1x1x11x64xbf16> to vector<11x64xbf16>
      %c0_59 = arith.constant 0 : index
      %c0_60 = arith.constant 0 : index
      %c0_61 = arith.constant 0 : index
      %c0_62 = arith.constant 0 : index
      %58 = vector.load %arg2[%c0_59, %c0_60, %c0_61, %c0_62] : memref<3x2x64x128xbf16, #tpu.memory_space<vmem>>, vector<1x1x64x128xbf16>
      %59 = vector.shape_cast %58 : vector<1x1x64x128xbf16> to vector<64x128xbf16>
      %cst_63 = arith.constant dense<0.000000e+00> : vector<11x128xf32>
      %60 = tpu.matmul %57, %59, %cst_63 {dimension_numbers = #tpu.dot_dimension_numbers<[1], [0], [0], [1], [0, 0, 1, 1], [], []>} : vector<11x64xbf16>, vector<64x128xbf16>, vector<11x128xf32> -> vector<11x128xf32>
      %61 = arith.addf %53, %60 : vector<11x128xf32>
      %c0_i32_64 = arith.constant 0 : i32
      %62 = arith.addi %52, %c0_i32_64 : i32
      %c0_65 = arith.constant 0 : index
      %63 = arith.index_cast %62 : i32 to index
      %c1_66 = arith.constant 1 : index
      %c0_67 = arith.constant 0 : index
      %64 = vector.load %arg1[%c0_65, %63, %c1_66, %c0_67] : memref<1x24x12x64xbf16, #tpu.memory_space<vmem>>, vector<1x1x11x64xbf16>
      %65 = vector.shape_cast %64 : vector<1x1x11x64xbf16> to vector<11x64xbf16>
      %c0_68 = arith.constant 0 : index
      %c1_69 = arith.constant 1 : index
      %c0_70 = arith.constant 0 : index
      %c0_71 = arith.constant 0 : index
      %66 = vector.load %arg2[%c0_68, %c1_69, %c0_70, %c0_71] : memref<3x2x64x128xbf16, #tpu.memory_space<vmem>>, vector<1x1x64x128xbf16>
      %67 = vector.shape_cast %66 : vector<1x1x64x128xbf16> to vector<64x128xbf16>
      %cst_72 = arith.constant dense<0.000000e+00> : vector<11x128xf32>
      %68 = tpu.matmul %65, %67, %cst_72 {dimension_numbers = #tpu.dot_dimension_numbers<[1], [0], [0], [1], [0, 0, 1, 1], [], []>} : vector<11x64xbf16>, vector<64x128xbf16>, vector<11x128xf32> -> vector<11x128xf32>
      %69 = arith.addf %61, %68 : vector<11x128xf32>
      %c1_i32_73 = arith.constant 1 : i32
      %70 = arith.addi %52, %c1_i32_73 : i32
      %c0_74 = arith.constant 0 : index
      %71 = arith.index_cast %70 : i32 to index
      %c0_75 = arith.constant 0 : index
      %c0_76 = arith.constant 0 : index
      %72 = vector.load %arg1[%c0_74, %71, %c0_75, %c0_76] : memref<1x24x12x64xbf16, #tpu.memory_space<vmem>>, vector<1x1x11x64xbf16>
      %73 = vector.shape_cast %72 : vector<1x1x11x64xbf16> to vector<11x64xbf16>
      %c1_77 = arith.constant 1 : index
      %c0_78 = arith.constant 0 : index
      %c0_79 = arith.constant 0 : index
      %c0_80 = arith.constant 0 : index
      %74 = vector.load %arg2[%c1_77, %c0_78, %c0_79, %c0_80] : memref<3x2x64x128xbf16, #tpu.memory_space<vmem>>, vector<1x1x64x128xbf16>
      %75 = vector.shape_cast %74 : vector<1x1x64x128xbf16> to vector<64x128xbf16>
      %cst_81 = arith.constant dense<0.000000e+00> : vector<11x128xf32>
      %76 = tpu.matmul %73, %75, %cst_81 {dimension_numbers = #tpu.dot_dimension_numbers<[1], [0], [0], [1], [0, 0, 1, 1], [], []>} : vector<11x64xbf16>, vector<64x128xbf16>, vector<11x128xf32> -> vector<11x128xf32>
      %77 = arith.addf %69, %76 : vector<11x128xf32>
      %c1_i32_82 = arith.constant 1 : i32
      %78 = arith.addi %52, %c1_i32_82 : i32
      %c0_83 = arith.constant 0 : index
      %79 = arith.index_cast %78 : i32 to index
      %c1_84 = arith.constant 1 : index
      %c0_85 = arith.constant 0 : index
      %80 = vector.load %arg1[%c0_83, %79, %c1_84, %c0_85] : memref<1x24x12x64xbf16, #tpu.memory_space<vmem>>, vector<1x1x11x64xbf16>
      %81 = vector.shape_cast %80 : vector<1x1x11x64xbf16> to vector<11x64xbf16>
      %c1_86 = arith.constant 1 : index
      %c1_87 = arith.constant 1 : index
      %c0_88 = arith.constant 0 : index
      %c0_89 = arith.constant 0 : index
      %82 = vector.load %arg2[%c1_86, %c1_87, %c0_88, %c0_89] : memref<3x2x64x128xbf16, #tpu.memory_space<vmem>>, vector<1x1x64x128xbf16>
      %83 = vector.shape_cast %82 : vector<1x1x64x128xbf16> to vector<64x128xbf16>
      %cst_90 = arith.constant dense<0.000000e+00> : vector<11x128xf32>
      %84 = tpu.matmul %81, %83, %cst_90 {dimension_numbers = #tpu.dot_dimension_numbers<[1], [0], [0], [1], [0, 0, 1, 1], [], []>} : vector<11x64xbf16>, vector<64x128xbf16>, vector<11x128xf32> -> vector<11x128xf32>
      %85 = arith.addf %77, %84 : vector<11x128xf32>
      %c2_i32_91 = arith.constant 2 : i32
      %86 = arith.addi %52, %c2_i32_91 : i32
      %c0_92 = arith.constant 0 : index
      %87 = arith.index_cast %86 : i32 to index
      %c0_93 = arith.constant 0 : index
      %c0_94 = arith.constant 0 : index
      %88 = vector.load %arg1[%c0_92, %87, %c0_93, %c0_94] : memref<1x24x12x64xbf16, #tpu.memory_space<vmem>>, vector<1x1x11x64xbf16>
      %89 = vector.shape_cast %88 : vector<1x1x11x64xbf16> to vector<11x64xbf16>
      %c2_95 = arith.constant 2 : index
      %c0_96 = arith.constant 0 : index
      %c0_97 = arith.constant 0 : index
      %c0_98 = arith.constant 0 : index
      %90 = vector.load %arg2[%c2_95, %c0_96, %c0_97, %c0_98] : memref<3x2x64x128xbf16, #tpu.memory_space<vmem>>, vector<1x1x64x128xbf16>
      %91 = vector.shape_cast %90 : vector<1x1x64x128xbf16> to vector<64x128xbf16>
      %cst_99 = arith.constant dense<0.000000e+00> : vector<11x128xf32>
      %92 = tpu.matmul %89, %91, %cst_99 {dimension_numbers = #tpu.dot_dimension_numbers<[1], [0], [0], [1], [0, 0, 1, 1], [], []>} : vector<11x64xbf16>, vector<64x128xbf16>, vector<11x128xf32> -> vector<11x128xf32>
      %93 = arith.addf %85, %92 : vector<11x128xf32>
      %c2_i32_100 = arith.constant 2 : i32
      %94 = arith.addi %52, %c2_i32_100 : i32
      %c0_101 = arith.constant 0 : index
      %95 = arith.index_cast %94 : i32 to index
      %c1_102 = arith.constant 1 : index
      %c0_103 = arith.constant 0 : index
      %96 = vector.load %arg1[%c0_101, %95, %c1_102, %c0_103] : memref<1x24x12x64xbf16, #tpu.memory_space<vmem>>, vector<1x1x11x64xbf16>
      %97 = vector.shape_cast %96 : vector<1x1x11x64xbf16> to vector<11x64xbf16>
      %c2_104 = arith.constant 2 : index
      %c1_105 = arith.constant 1 : index
      %c0_106 = arith.constant 0 : index
      %c0_107 = arith.constant 0 : index
      %98 = vector.load %arg2[%c2_104, %c1_105, %c0_106, %c0_107] : memref<3x2x64x128xbf16, #tpu.memory_space<vmem>>, vector<1x1x64x128xbf16>
      %99 = vector.shape_cast %98 : vector<1x1x64x128xbf16> to vector<64x128xbf16>
      %cst_108 = arith.constant dense<0.000000e+00> : vector<11x128xf32>
      %100 = tpu.matmul %97, %99, %cst_108 {dimension_numbers = #tpu.dot_dimension_numbers<[1], [0], [0], [1], [0, 0, 1, 1], [], []>} : vector<11x64xbf16>, vector<64x128xbf16>, vector<11x128xf32> -> vector<11x128xf32>
      %101 = arith.addf %93, %100 : vector<11x128xf32>
      %102 = arith.maximumf %50, %101 : vector<11x128xf32>
      %c0_109 = arith.constant 0 : index
      %c0_110 = arith.constant 0 : index
      %103 = vector.load %arg3[%c0_109, %c0_110] : memref<1x128xf32, #tpu.memory_space<vmem>>, vector<1x128xf32>
      %104 = vector.broadcast %103 : vector<1x128xf32> to vector<11x128xf32>
      %105 = arith.addf %102, %104 : vector<11x128xf32>
      %cst_111 = arith.constant 0.000000e+00 : f32
      %106 = vector.broadcast %cst_111 : f32 to vector<11x128xf32>
      %107 = arith.maximumf %105, %106 : vector<11x128xf32>
      %108 = vector.extract_strided_slice %107 {offsets = [0, 0], sizes = [11, 64], strides = [1, 1]} : vector<11x128xf32> to vector<11x64xf32>
      %109 = vector.extract_strided_slice %107 {offsets = [0, 64], sizes = [11, 64], strides = [1, 1]} : vector<11x128xf32> to vector<11x64xf32>
      %110 = arith.maximumf %108, %109 : vector<11x64xf32>
      %111 = arith.truncf %110 : vector<11x64xf32> to vector<11x64xbf16>
      %c0_112 = arith.constant 0 : index
      %112 = arith.index_cast %arg5 : i32 to index
      %c0_113 = arith.constant 0 : index
      %c0_114 = arith.constant 0 : index
      %113 = vector.load %arg4[%c0_112, %112, %c0_113, %c0_114] : memref<1x11x11x64xbf16, #tpu.memory_space<vmem>>, vector<1x1x11x64xbf16>
      %114 = vector.shape_cast %113 : vector<1x1x11x64xbf16> to vector<11x64xbf16>
      %115 = vector.shape_cast %111 : vector<11x64xbf16> to vector<1x1x11x64xbf16>
      tpu.vector_store %arg4[%c0_112, %112, %c0_113, %c0_114], %115 {strides = array<i32>} : memref<1x11x11x64xbf16, #tpu.memory_space<vmem>>, vector<1x1x11x64xbf16>,
    }
    %c11_i32_0 = arith.constant 11 : i32
    return
  }
  func.func @transform_0(%arg0: i32) -> (i32, i32, i32, i32) {
    %c0_i32 = arith.constant 0 : i32
    %c0_i32_0 = arith.constant 0 : i32
    %c0_i32_1 = arith.constant 0 : i32
    %c0_i32_2 = arith.constant 0 : i32
    return %arg0, %c0_i32, %c0_i32_0, %c0_i32_1 : i32, i32, i32, i32
  }
  func.func @transform_1(%arg0: i32) -> (i32, i32, i32, i32) {
    %c0_i32 = arith.constant 0 : i32
    %c0_i32_0 = arith.constant 0 : i32
    %c0_i32_1 = arith.constant 0 : i32
    %c0_i32_2 = arith.constant 0 : i32
    %c0_i32_3 = arith.constant 0 : i32
    return %c0_i32, %c0_i32_0, %c0_i32_1, %c0_i32_2 : i32, i32, i32, i32
  }
  func.func @transform_2(%arg0: i32) -> (i32, i32) {
    %c0_i32 = arith.constant 0 : i32
    %c0_i32_0 = arith.constant 0 : i32
    %c0_i32_1 = arith.constant 0 : i32
    return %c0_i32, %c0_i32_0 : i32, i32
  }
  func.func @transform_3(%arg0: i32) -> (i32, i32, i32, i32) {
    %c0_i32 = arith.constant 0 : i32
    %c0_i32_0 = arith.constant 0 : i32
    %c0_i32_1 = arith.constant 0 : i32
    %c0_i32_2 = arith.constant 0 : i32
    return %arg0, %c0_i32, %c0_i32_0, %c0_i32_1 : i32, i32, i32, i32
  }
}

module attributes {stable_mosaic.version = 11 : i64} {
  func.func @_fc_fused_kernel(%arg0: i32, %arg1: i32, %arg2: memref<2x2048xbf16, #tpu.memory_space<vmem>>, %arg3: memref<2048x128xbf16, #tpu.memory_space<vmem>>, %arg4: memref<1x128xf32, #tpu.memory_space<vmem>>, %arg5: memref<128x7xbf16, #tpu.memory_space<vmem>>, %arg6: memref<1x7xf32, #tpu.memory_space<vmem>>, %arg7: memref<2x7xf32, #tpu.memory_space<vmem>>, %arg8: memref<2x128xf32, #tpu.memory_space<vmem>>) attributes {dimension_semantics = [#tpu.dimension_semantics<parallel>, #tpu.dimension_semantics<arbitrary>], iteration_bounds = array<i64: 1, 4>, scalar_prefetch = 0 : i64, scratch_operands = 1 : i64, tpu.core_type = #tpu.core_type<tc>, window_params = [{transform_indices = @transform_0, window_bounds = array<i64: 2, 2048>}, {transform_indices = @transform_1, window_bounds = array<i64: 2048, 128>}, {pipeline_mode = #tpu.pipeline_mode<synchronous>, transform_indices = @transform_2, window_bounds = array<i64: 1, 128>}, {pipeline_mode = #tpu.pipeline_mode<synchronous>, transform_indices = @transform_3, window_bounds = array<i64: 128, 7>}, {pipeline_mode = #tpu.pipeline_mode<synchronous>, transform_indices = @transform_4, window_bounds = array<i64: 1, 7>}, {transform_indices = @transform_5, window_bounds = array<i64: 2, 7>}]} {
    %c0_i32 = arith.constant 0 : i32
    %0 = arith.cmpi eq, %arg1, %c0_i32 : i32
    %1 = arith.extui %0 : i1 to i32
    %c0_i32_0 = arith.constant 0 : i32
    %2 = arith.cmpi ne, %1, %c0_i32_0 : i32
    scf.if %2 {
      %cst_9 = arith.constant 0.000000e+00 : f32
      %12 = vector.broadcast %cst_9 : f32 to vector<2x128xf32>
      %c0_10 = arith.constant 0 : index
      %c0_11 = arith.constant 0 : index
      %13 = vector.load %arg8[%c0_10, %c0_11] : memref<2x128xf32, #tpu.memory_space<vmem>>, vector<2x128xf32>
      tpu.vector_store %arg8[%c0_10, %c0_11], %12 {strides = array<i32>} : memref<2x128xf32, #tpu.memory_space<vmem>>, vector<2x128xf32>,
    } else {
    }
    %c0 = arith.constant 0 : index
    %c0_1 = arith.constant 0 : index
    %3 = vector.load %arg8[%c0, %c0_1] : memref<2x128xf32, #tpu.memory_space<vmem>>, vector<2x128xf32>
    %c0_2 = arith.constant 0 : index
    %c0_3 = arith.constant 0 : index
    %4 = vector.load %arg2[%c0_2, %c0_3] : memref<2x2048xbf16, #tpu.memory_space<vmem>>, vector<2x2048xbf16>
    %c0_4 = arith.constant 0 : index
    %c0_5 = arith.constant 0 : index
    %5 = vector.load %arg3[%c0_4, %c0_5] : memref<2048x128xbf16, #tpu.memory_space<vmem>>, vector<2048x128xbf16>
    %cst = arith.constant dense<0.000000e+00> : vector<2x128xf32>
    %6 = tpu.matmul %4, %5, %cst {dimension_numbers = #tpu.dot_dimension_numbers<[1], [0], [0], [1], [0, 0, 1, 1], [], []>} : vector<2x2048xbf16>, vector<2048x128xbf16>, vector<2x128xf32> -> vector<2x128xf32>
    %7 = arith.addf %3, %6 : vector<2x128xf32>
    %c0_6 = arith.constant 0 : index
    %c0_7 = arith.constant 0 : index
    %8 = vector.load %arg8[%c0_6, %c0_7] : memref<2x128xf32, #tpu.memory_space<vmem>>, vector<2x128xf32>
    tpu.vector_store %arg8[%c0_6, %c0_7], %7 {strides = array<i32>} : memref<2x128xf32, #tpu.memory_space<vmem>>, vector<2x128xf32>,
    %c3_i32 = arith.constant 3 : i32
    %9 = arith.cmpi eq, %arg1, %c3_i32 : i32
    %10 = arith.extui %9 : i1 to i32
    %c0_i32_8 = arith.constant 0 : i32
    %11 = arith.cmpi ne, %10, %c0_i32_8 : i32
    scf.if %11 {
      %c0_9 = arith.constant 0 : index
      %c0_10 = arith.constant 0 : index
      %12 = vector.load %arg8[%c0_9, %c0_10] : memref<2x128xf32, #tpu.memory_space<vmem>>, vector<2x128xf32>
      %c0_11 = arith.constant 0 : index
      %c0_12 = arith.constant 0 : index
      %13 = vector.load %arg4[%c0_11, %c0_12] : memref<1x128xf32, #tpu.memory_space<vmem>>, vector<1x128xf32>
      %14 = vector.broadcast %13 : vector<1x128xf32> to vector<2x128xf32>
      %15 = arith.addf %12, %14 : vector<2x128xf32>
      %cst_13 = arith.constant 0.000000e+00 : f32
      %16 = vector.broadcast %cst_13 : f32 to vector<2x128xf32>
      %17 = arith.maximumf %15, %16 : vector<2x128xf32>
      %18 = arith.truncf %17 : vector<2x128xf32> to vector<2x128xbf16>
      %c0_14 = arith.constant 0 : index
      %c0_15 = arith.constant 0 : index
      %19 = vector.load %arg5[%c0_14, %c0_15] : memref<128x7xbf16, #tpu.memory_space<vmem>>, vector<128x7xbf16>
      %cst_16 = arith.constant dense<0.000000e+00> : vector<2x7xf32>
      %20 = tpu.matmul %18, %19, %cst_16 {dimension_numbers = #tpu.dot_dimension_numbers<[1], [0], [0], [1], [0, 0, 1, 1], [], []>} : vector<2x128xbf16>, vector<128x7xbf16>, vector<2x7xf32> -> vector<2x7xf32>
      %c0_17 = arith.constant 0 : index
      %c0_18 = arith.constant 0 : index
      %21 = vector.load %arg6[%c0_17, %c0_18] : memref<1x7xf32, #tpu.memory_space<vmem>>, vector<1x7xf32>
      %22 = vector.broadcast %21 : vector<1x7xf32> to vector<2x7xf32>
      %23 = arith.addf %20, %22 : vector<2x7xf32>
      %c0_19 = arith.constant 0 : index
      %c0_20 = arith.constant 0 : index
      %24 = vector.load %arg7[%c0_19, %c0_20] : memref<2x7xf32, #tpu.memory_space<vmem>>, vector<2x7xf32>
      tpu.vector_store %arg7[%c0_19, %c0_20], %23 {strides = array<i32>} : memref<2x7xf32, #tpu.memory_space<vmem>>, vector<2x7xf32>,
    } else {
    }
    return
  }
  func.func @transform_0(%arg0: i32, %arg1: i32) -> (i32, i32) {
    %c0_i32 = arith.constant 0 : i32
    return %arg0, %arg1 : i32, i32
  }
  func.func @transform_1(%arg0: i32, %arg1: i32) -> (i32, i32) {
    %c0_i32 = arith.constant 0 : i32
    %c0_i32_0 = arith.constant 0 : i32
    return %arg1, %c0_i32 : i32, i32
  }
  func.func @transform_2(%arg0: i32, %arg1: i32) -> (i32, i32) {
    %c0_i32 = arith.constant 0 : i32
    %c0_i32_0 = arith.constant 0 : i32
    %c0_i32_1 = arith.constant 0 : i32
    return %c0_i32, %c0_i32_0 : i32, i32
  }
  func.func @transform_3(%arg0: i32, %arg1: i32) -> (i32, i32) {
    %c0_i32 = arith.constant 0 : i32
    %c0_i32_0 = arith.constant 0 : i32
    %c0_i32_1 = arith.constant 0 : i32
    return %c0_i32, %c0_i32_0 : i32, i32
  }
  func.func @transform_4(%arg0: i32, %arg1: i32) -> (i32, i32) {
    %c0_i32 = arith.constant 0 : i32
    %c0_i32_0 = arith.constant 0 : i32
    %c0_i32_1 = arith.constant 0 : i32
    return %c0_i32, %c0_i32_0 : i32, i32
  }
  func.func @transform_5(%arg0: i32, %arg1: i32) -> (i32, i32) {
    %c0_i32 = arith.constant 0 : i32
    %c0_i32_0 = arith.constant 0 : i32
    return %arg0, %c0_i32 : i32, i32
  }
}

</mosaic_0001>

<llo_original>
// kernel: simple_cnn_forward.3
$region0: #{simple_cnn_forward.3}
  #allocation0 [shape = 'u32[]', space=smem, size = 0x4, offset = 0x4, fixed_abs, tag = 'smem constant byte address 0x4 - core index']
  #allocation1 [shape = 'u32[144,128]{1,0:T(1,128)}', space=vmem, size = 0x12000, scoped, tag = 'internal scratch']
  %s0 = inlined_call_operand.vmem [shape: bf16[2,50,25,2], index: 0, kind: input, shape index: {}]
  %s1 = inlined_call_operand.hbm [shape: bf16[3,2,2,64], index: 1, kind: input, shape index: {}]
  %s2 = inlined_call_operand.hbm [shape: f32[1,64], index: 2, kind: input, shape index: {}]
  %s3 = inlined_call_operand.vmem [shape: bf16[2,24,24,32], index: 3, kind: output, shape index: {}]
  %s4 = sld [smem:[#allocation0]]
  $region60: #{simple_cnn_forward.3} parent=0
    _
  %s6 = ssub.s32 1, %s4
  %s7 = scalar_select 0, %s6, %s4
  $region1: #{simple_cnn_forward.3} parent=0
    #allocation2 [shape = 'u8[3072]{0}', space=vmem, size = 0xc00, scoped, tag = 'input window, operand 1, single buffered']
    #allocation3 [shape = 's32[2]{0}', space=sflag, size = 0x8, scoped, tag = 'scoped memory for simple_cnn_forward.3']
    #allocation4 [shape = 'u8[512]{0}', space=vmem, size = 0x400, scoped, tag = 'input window, operand 2, single buffered']
    #allocation5 [shape = 's32[1]{0}', space=sflag, size = 0x4, scoped, tag = 'scoped memory for simple_cnn_forward.3']
    %8 = vsyncpa [#allocation3], 0
    %9 = vsyncpa [#allocation5], 0
    loop: start=0, step=1, limit=4
    $region2: #{simple_cnn_forward.3} parent=1 // loop_pre_header
      _
    $region3: #{simple_cnn_forward.3} parent=1 // loop_header
      %s11 = sphi 0, %s15
      %p12 = scmp.ge.s32.totalorder %s11, 4
      %s21 = sphi 0, %s23
      %s24 = sphi 0, %s21
      %s25 = sphi 0, %s24
      %s41 = sphi 0, %s25
      %s45 = sphi 0, %s45
      %s47 = sphi 0, %s45
      %s48 = sphi 0, %s47
      %s62 = sphi 0, %s48
      %s66 = sphi 0, %s66
      %s68 = sphi 0, %s66
      %s69 = sphi 0, %s68
      %s83 = sphi 0, %s69
      %s89 = sphi 0, %s91
      %s92 = sphi 0, %s89
      %s93 = sphi 0, %s92
      %s109 = sphi 0, %s93
    $region4: #{simple_cnn_forward.3} parent=1 // loop_header_branch
      %14 = sbr.rel (%p12) target = $region8
    $region5: #{simple_cnn_forward.3} parent=1 // loop_body
      %s16 = ssub.s32 %s11, 1
      %s17 = ssub.s32 %s11, 2
      %s18 = sadd.s32 %s11, 1
      %s19 = ssub.s32 %s11, %s18
      %p20 = scmp.eq.s32.totalorder %s19, 0
      %s22 = sadd.s32 %s21, 1
      %s23 = scalar_select %p20, %s21, %s22
      %p26 = pneg %p20
      %p27 = scmp.eq.s32.totalorder %s11, 1
      %p28 = por %p26, %p27
      %p29 = scmp.ne.s32.totalorder %s21, %s24
      %p30 = scmp.eq.s32.totalorder %s11, 0
      %p31 = por %p29, %p30
      %p32 = scmp.ne.s32.totalorder %s21, %s24
      %p33 = scmp.eq.s32.totalorder %s16, 1
      %p34 = por %p32, %p33
      %p35 = scmp.ne.s32.totalorder %s24, %s25
      %p36 = scmp.eq.s32.totalorder %s16, 0
      %p37 = por %p35, %p36
      %p38 = scmp.ne.s32.totalorder %s24, %s25
      %p39 = scmp.eq.s32.totalorder %s17, 1
      %p40 = por %p38, %p39
      %p42 = scmp.ne.s32.totalorder %s25, %s41
      %p43 = scmp.eq.s32.totalorder %s17, 0
      %p44 = por %p42, %p43
      %s46 = sadd.s32 %s45, 1
      %p49 = scmp.eq.s32.totalorder %s11, 1
      %p50 = scmp.ne.s32.totalorder %s45, %s47
      %p51 = scmp.eq.s32.totalorder %s11, 0
      %p52 = por %p50, %p51
      %p53 = scmp.ne.s32.totalorder %s45, %s47
      %p54 = scmp.eq.s32.totalorder %s16, 1
      %p55 = por %p53, %p54
      %p56 = scmp.ne.s32.totalorder %s47, %s48
      %p57 = scmp.eq.s32.totalorder %s16, 0
      %p58 = por %p56, %p57
      %p59 = scmp.ne.s32.totalorder %s47, %s48
      %p60 = scmp.eq.s32.totalorder %s17, 1
      %p61 = por %p59, %p60
      %p63 = scmp.ne.s32.totalorder %s48, %s62
      %p64 = scmp.eq.s32.totalorder %s17, 0
      %p65 = por %p63, %p64
      %s67 = sadd.s32 %s66, 1
      %p70 = scmp.eq.s32.totalorder %s11, 1
      %p71 = scmp.ne.s32.totalorder %s66, %s68
      %p72 = scmp.eq.s32.totalorder %s11, 0
      %p73 = por %p71, %p72
      %p74 = scmp.ne.s32.totalorder %s66, %s68
      %p75 = scmp.eq.s32.totalorder %s16, 1
      %p76 = por %p74, %p75
      %p77 = scmp.ne.s32.totalorder %s68, %s69
      %p78 = scmp.eq.s32.totalorder %s16, 0
      %p79 = por %p77, %p78
      %p80 = scmp.ne.s32.totalorder %s68, %s69
      %p81 = scmp.eq.s32.totalorder %s17, 1
      %p82 = por %p80, %p81
      %p84 = scmp.ne.s32.totalorder %s69, %s83
      %p85 = scmp.eq.s32.totalorder %s17, 0
      %p86 = por %p84, %p85
      %s87 = ssub.s32 %s11, %s18
      %p88 = scmp.eq.s32.totalorder %s87, 0
      %s90 = sadd.s32 %s89, 1
      %s91 = scalar_select %p88, %s89, %s90
      %p94 = pneg %p88
      %p95 = scmp.eq.s32.totalorder %s11, 1
      %p96 = por %p94, %p95
      %p97 = scmp.ne.s32.totalorder %s89, %s92
      %p98 = scmp.eq.s32.totalorder %s11, 0
      %p99 = por %p97, %p98
      %p100 = scmp.ne.s32.totalorder %s89, %s92
      %p101 = scmp.eq.s32.totalorder %s16, 1
      %p102 = por %p100, %p101
      %p103 = scmp.ne.s32.totalorder %s92, %s93
      %p104 = scmp.eq.s32.totalorder %s16, 0
      %p105 = por %p103, %p104
      %p106 = scmp.ne.s32.totalorder %s92, %s93
      %p107 = scmp.eq.s32.totalorder %s17, 1
      %p108 = por %p106, %p107
      %p110 = scmp.ne.s32.totalorder %s93, %s109
      %p111 = scmp.eq.s32.totalorder %s17, 0
      %p112 = por %p110, %p111
      %p113 = scmp.le.s32.totalorder 1, %s11
      %p114 = scmp.lt.s32.totalorder %s11, 3
      %p115 = pnand %p113, %p114
      %p116 = pneg %p115
      // Predicated region
      $region9: #{simple_cnn_forward.3} parent=5 // pred_check
        _
      $region10: #{simple_cnn_forward.3} parent=5 // pred_check_branch
        %118 = sbr.rel (%p115) target = $region12
      $region11: #{simple_cnn_forward.3} parent=5 // pred_region
        %s119 = ssub.s32 %s11, 1
        // Predicated region
        $region13: #{simple_cnn_forward.3} parent=11 // pred_check
          %p120 = pneg %p58
        $region14: #{simple_cnn_forward.3} parent=11 // pred_check_branch
          %122 = sbr.rel (%p120) target = $region16
        $region15: #{simple_cnn_forward.3} parent=11 // pred_region
          %s124 = ssub.s32 96, 96
          %125 = vsyncadd [#allocation3], %s124
          %s126 = sshll.u32 [#allocation2], 4
          %s127 = int_to_ptr.vmem [resolvable:$true] %s126
          %132 = dma.hbm_to_vmem [thread:$0]  %s1, 96, %s127, [#allocation3], 16, 16, 1
        $region16: #{simple_cnn_forward.3} parent=11 // pred_fallthru
          _
        // Predicated region
        $region17: #{simple_cnn_forward.3} parent=11 // pred_check
          %p133 = pneg %p79
        $region18: #{simple_cnn_forward.3} parent=11 // pred_check_branch
          %135 = sbr.rel (%p133) target = $region20
        $region19: #{simple_cnn_forward.3} parent=11 // pred_region
          %s137 = ssub.s32 16, 16
          %138 = vsyncadd [#allocation5], %s137
          %s140 = sshll.u32 [#allocation4], 4
          %s141 = int_to_ptr.vmem [resolvable:$true] %s140
          %143 = dma.hbm_to_vmem [thread:$0]  %s2, 16, %s141, [#allocation5]
        $region20: #{simple_cnn_forward.3} parent=11 // pred_fallthru
          _
      $region12: #{simple_cnn_forward.3} parent=5 // pred_fallthru
        _
      %p144 = scmp.lt.s32.totalorder %s11, 2
      // Predicated region
      $region21: #{simple_cnn_forward.3} parent=5 // pred_check
        %p145 = pneg %p144
      $region22: #{simple_cnn_forward.3} parent=5 // pred_check_branch
        %147 = sbr.rel (%p145) target = $region24
      $region23: #{simple_cnn_forward.3} parent=5 // pred_region
        // Predicated region
        $region25: #{simple_cnn_forward.3} parent=23 // pred_check
          %p148 = pneg %p31
        $region26: #{simple_cnn_forward.3} parent=23 // pred_check_branch
          %150 = sbr.rel (%p148) target = $region28
        $region27: #{simple_cnn_forward.3} parent=23 // pred_region
          %p151 = scmp.lt.s32.totalorder %s11, 1
          %s152 = scalar_select %p151, %s11, 1
          %s153 = smul.addr %s152, 200
          %s154 = smul.addr %s153, 4
          %s155 = scalar_lea.vmem %s0, %s154
        $region28: #{simple_cnn_forward.3} parent=23 // pred_fallthru
          _
      $region24: #{simple_cnn_forward.3} parent=5 // pred_fallthru
        _
      %p156 = scmp.le.s32.totalorder 1, %s11
      %p157 = scmp.lt.s32.totalorder %s11, 3
      %p158 = pnand %p156, %p157
      %p159 = pneg %p158
      // Predicated region
      $region29: #{simple_cnn_forward.3} parent=5 // pred_check
        _
      $region30: #{simple_cnn_forward.3} parent=5 // pred_check_branch
        %161 = sbr.rel (%p158) target = $region32
      $region31: #{simple_cnn_forward.3} parent=5 // pred_region
        %s162 = ssub.s32 %s11, 1
        // Predicated region
        $region33: #{simple_cnn_forward.3} parent=31 // pred_check
          %p163 = pneg %p58
        $region34: #{simple_cnn_forward.3} parent=31 // pred_check_branch
          %165 = sbr.rel (%p163) target = $region36
        $region35: #{simple_cnn_forward.3} parent=31 // pred_region
          %166 = dma.done [#allocation3], 96
        $region36: #{simple_cnn_forward.3} parent=31 // pred_fallthru
          _
        // Predicated region
        $region37: #{simple_cnn_forward.3} parent=31 // pred_check
          %p167 = pneg %p79
        $region38: #{simple_cnn_forward.3} parent=31 // pred_check_branch
          %169 = sbr.rel (%p167) target = $region40
        $region39: #{simple_cnn_forward.3} parent=31 // pred_region
          %170 = dma.done [#allocation5], 16
        $region40: #{simple_cnn_forward.3} parent=31 // pred_fallthru
          _
        %p171 = scmp.lt.s32.totalorder %s16, 1
        %s172 = scalar_select %p171, %s16, 1
        %s173 = smul.addr %s172, 200
        %s174 = smul.addr %s173, 4
        %s175 = scalar_lea.vmem %s0, %s174
        %p176 = pneg %p37
        %p177 = pneg %p34
        %p178 = pneg %p58
        %p179 = pneg %p55
        %p180 = pneg %p79
        %p181 = pneg %p76
        %p182 = pneg %p105
        %p183 = pneg %p102
        %p184 = scmp.lt.s32.totalorder %s16, 1
        %s185 = scalar_select %p184, %s16, 1
        %s186 = smul.addr %s185, 72
        %s187 = smul.addr %s186, 4
        %s188 = scalar_lea.vmem %s3, %s187
        %p189 = scmp.lt.s32.totalorder %s16, 1
        %s190 = scalar_select %p189, %s16, 1
        %s191 = smul.addr %s190, 200
        %s192 = smul.addr %s191, 4
        %s193 = scalar_lea.vmem %s0, %s192
        %p194 = scmp.lt.s32.totalorder %s16, 1
        %s195 = scalar_select %p194, %s16, 1
        %s196 = smul.addr %s195, 72
        %s197 = smul.addr %s196, 4
        %s198 = scalar_lea.vmem %s3, %s197
        loop: start=0, step=1, limit=24
        $region41: #{simple_cnn_forward.3} parent=31 // loop_pre_header
          _
        $region42: #{simple_cnn_forward.3} parent=31 // loop_header
          %s200 = sphi 0, %s204
          %p201 = scmp.ge.s32.totalorder %s200, 24
        $region43: #{simple_cnn_forward.3} parent=31 // loop_header_branch
          %203 = sbr.rel (%p201) target = $region47
        $region44: #{simple_cnn_forward.3} parent=31 // loop_body
          %s205 = smul.u32 %s200, 2
          %s206 = smul.u32 %s205, 4
          %s207 = smul.addr %s206, 4
          %s208 = scalar_lea.vmem %s193, %s207
          %v209 = vld [vmem:[%s208] sm:$0xf]
          %v210 = vld [vmem:[%s208 + $0x4] sm:$0xf]
          %v211 = vld [vmem:[%s208 + $0x8] sm:$0xf]
          %v212 = vunpack.c.l.bf16 %v209
          %v213 = vunpack.c.l.bf16 %v210
          %v214 = vunpack.c.l.bf16 %v211
          %v215 = vld [vmem:[#allocation2] sm:$0x1]
          %v216 = vunpack.c.l.bf16 %v215
          %218 = vset.pattern.permute.xlu0 0
          %219 = vperm.xlu0 %218, %v212
          %v220 = vpop.permute.xlu0 %219
          %223 = vset.pattern.permute.xlu0 0
          %224 = vperm.xlu0 %223, %v213
          %v225 = vpop.permute.xlu0 %224
          %228 = vset.pattern.permute.xlu0 0
          %229 = vperm.xlu0 %228, %v214
          %v230 = vpop.permute.xlu0 %229
          %v232 = vlaneseq
          %v233 = vshrl.u32 %v232, 7
          %v234 = vsub.s32 0, %v233
          %v235 = vrot.slane %v216, %v234
          %v236 = vmul.f32 %v220, %v235
          %v237 = vmul.f32 %v225, %v235
          %v238 = vmul.f32 %v230, %v235
          %v239 = vadd.f32 %v236, 0.0
          %v240 = vadd.f32 %v237, 0.0
          %v241 = vadd.f32 %v238, 0.0
          %242 = vset.pattern.permute.xlu0 1
          %243 = vperm.xlu0 %242, %v212
          %v244 = vpop.permute.xlu0 %243
          %246 = vset.pattern.permute.xlu0 1
          %247 = vperm.xlu0 %246, %v213
          %v248 = vpop.permute.xlu0 %247
          %250 = vset.pattern.permute.xlu0 1
          %251 = vperm.xlu0 %250, %v214
          %v252 = vpop.permute.xlu0 %251
          %v254 = vlaneseq
          %v255 = vshrl.u32 %v254, 7
          %v256 = vsub.s32 1, %v255
          %v257 = vrot.slane %v216, %v256
          %v258 = vmul.f32 %v244, %v257
          %v259 = vmul.f32 %v248, %v257
          %v260 = vmul.f32 %v252, %v257
          %v261 = vadd.f32 %v239, %v258
          %v262 = vadd.f32 %v240, %v259
          %v263 = vadd.f32 %v241, %v260
          %v264 = vld [vmem:[%s208] sm:$0xf]
          %v265 = vld [vmem:[%s208 + $0x4] sm:$0xf]
          %v266 = vld [vmem:[%s208 + $0x8] sm:$0xf]
          %v267 = vld [vmem:[%s208 + $0xc] sm:$0x1]
          %v268 = vunpack.c.l.bf16 %v264
          %v269 = vunpack.c.l.bf16 %v265
          %v270 = vunpack.c.l.bf16 %v266
          %v271 = vunpack.c.l.bf16 %v267
          %s272 = scalar_lea.vmem [#allocation2], 1
          %v273 = vld [vmem:[%s272] sm:$0x1]
          %v274 = vunpack.c.l.bf16 %v273
          %276 = vset.pattern.permute.xlu0 0
          %277 = vperm.xlu0 %276, %v268
          %v278 = vpop.permute.xlu0 %277
          %281 = vset.pattern.permute.xlu0 0
          %282 = vperm.xlu0 %281, %v269
          %v283 = vpop.permute.xlu0 %282
          %286 = vset.pattern.permute.xlu0 0
          %287 = vperm.xlu0 %286, %v270
          %v288 = vpop.permute.xlu0 %287
          %291 = vset.pattern.permute.xlu0 0
          %292 = vperm.xlu0 %291, %v271
          %v293 = vpop.permute.xlu0 %292
          %v295 = vlaneseq
          %v296 = vshrl.u32 %v295, 7
          %v297 = vsub.s32 0, %v296
          %v298 = vrot.slane %v274, %v297
          %v299 = vmul.f32 %v278, %v298
          %v300 = vmul.f32 %v283, %v298
          %v301 = vmul.f32 %v288, %v298
          %v302 = vmul.f32 %v293, %v298
          %vm307 = vcmask 1046528
          %v308 = vrot.slane %v299, 1
          %v309 = vrot.slane %v300, 1
          %v310 = vsel %vm307, %v308, %v309
          %v311 = vrot.slane %v301, 1
          %v312 = vsel %vm307, %v309, %v311
          %v313 = vrot.slane %v302, 1
          %v314 = vsel %vm307, %v311, %v313
          %v318 = vadd.f32 %v261, %v310
          %v319 = vadd.f32 %v262, %v312
          %v320 = vadd.f32 %v263, %v314
          %321 = vset.pattern.permute.xlu0 1
          %322 = vperm.xlu0 %321, %v268
          %v323 = vpop.permute.xlu0 %322
          %325 = vset.pattern.permute.xlu0 1
          %326 = vperm.xlu0 %325, %v269
          %v327 = vpop.permute.xlu0 %326
          %329 = vset.pattern.permute.xlu0 1
          %330 = vperm.xlu0 %329, %v270
          %v331 = vpop.permute.xlu0 %330
          %333 = vset.pattern.permute.xlu0 1
          %334 = vperm.xlu0 %333, %v271
          %v335 = vpop.permute.xlu0 %334
          %v337 = vlaneseq
          %v338 = vshrl.u32 %v337, 7
          %v339 = vsub.s32 1, %v338
          %v340 = vrot.slane %v274, %v339
          %v341 = vmul.f32 %v323, %v340
          %v342 = vmul.f32 %v327, %v340
          %v343 = vmul.f32 %v331, %v340
          %v344 = vmul.f32 %v335, %v340
          %v349 = vrot.slane %v341, 1
          %v350 = vrot.slane %v342, 1
          %v351 = vsel %vm307, %v349, %v350
          %v352 = vrot.slane %v343, 1
          %v353 = vsel %vm307, %v350, %v352
          %v354 = vrot.slane %v344, 1
          %v355 = vsel %vm307, %v352, %v354
          %v359 = vadd.f32 %v318, %v351
          %v360 = vadd.f32 %v319, %v353
          %v361 = vadd.f32 %v320, %v355
          %s362 = sadd.s32 %s205, 1
          %s363 = smul.u32 %s362, 4
          %s364 = smul.addr %s363, 4
          %s365 = scalar_lea.vmem %s193, %s364
          %v366 = vld [vmem:[%s365] sm:$0xf]
          %v367 = vld [vmem:[%s365 + $0x4] sm:$0xf]
          %v368 = vld [vmem:[%s365 + $0x8] sm:$0xf]
          %v369 = vunpack.c.l.bf16 %v366
          %v370 = vunpack.c.l.bf16 %v367
          %v371 = vunpack.c.l.bf16 %v368
          %s372 = scalar_lea.vmem [#allocation2], 2
          %v373 = vld [vmem:[%s372] sm:$0x1]
          %v374 = vunpack.c.l.bf16 %v373
          %376 = vset.pattern.permute.xlu0 0
          %377 = vperm.xlu0 %376, %v369
          %v378 = vpop.permute.xlu0 %377
          %381 = vset.pattern.permute.xlu0 0
          %382 = vperm.xlu0 %381, %v370
          %v383 = vpop.permute.xlu0 %382
          %386 = vset.pattern.permute.xlu0 0
          %387 = vperm.xlu0 %386, %v371
          %v388 = vpop.permute.xlu0 %387
          %v390 = vlaneseq
          %v391 = vshrl.u32 %v390, 7
          %v392 = vsub.s32 0, %v391
          %v393 = vrot.slane %v374, %v392
          %v394 = vmul.f32 %v378, %v393
          %v395 = vmul.f32 %v383, %v393
          %v396 = vmul.f32 %v388, %v393
          %v397 = vadd.f32 %v359, %v394
          %v398 = vadd.f32 %v360, %v395
          %v399 = vadd.f32 %v361, %v396
          %400 = vset.pattern.permute.xlu0 1
          %401 = vperm.xlu0 %400, %v369
          %v402 = vpop.permute.xlu0 %401
          %404 = vset.pattern.permute.xlu0 1
          %405 = vperm.xlu0 %404, %v370
          %v406 = vpop.permute.xlu0 %405
          %408 = vset.pattern.permute.xlu0 1
          %409 = vperm.xlu0 %408, %v371
          %v410 = vpop.permute.xlu0 %409
          %v412 = vlaneseq
          %v413 = vshrl.u32 %v412, 7
          %v414 = vsub.s32 1, %v413
          %v415 = vrot.slane %v374, %v414
          %v416 = vmul.f32 %v402, %v415
          %v417 = vmul.f32 %v406, %v415
          %v418 = vmul.f32 %v410, %v415
          %v419 = vadd.f32 %v397, %v416
          %v420 = vadd.f32 %v398, %v417
          %v421 = vadd.f32 %v399, %v418
          %v422 = vld [vmem:[%s365] sm:$0xf]
          %v423 = vld [vmem:[%s365 + $0x4] sm:$0xf]
          %v424 = vld [vmem:[%s365 + $0x8] sm:$0xf]
          %v425 = vld [vmem:[%s365 + $0xc] sm:$0x1]
          %v426 = vunpack.c.l.bf16 %v422
          %v427 = vunpack.c.l.bf16 %v423
          %v428 = vunpack.c.l.bf16 %v424
          %v429 = vunpack.c.l.bf16 %v425
          %s430 = scalar_lea.vmem [#allocation2], 3
          %v431 = vld [vmem:[%s430] sm:$0x1]
          %v432 = vunpack.c.l.bf16 %v431
          %434 = vset.pattern.permute.xlu0 0
          %435 = vperm.xlu0 %434, %v426
          %v436 = vpop.permute.xlu0 %435
          %439 = vset.pattern.permute.xlu0 0
          %440 = vperm.xlu0 %439, %v427
          %v441 = vpop.permute.xlu0 %440
          %444 = vset.pattern.permute.xlu0 0
          %445 = vperm.xlu0 %444, %v428
          %v446 = vpop.permute.xlu0 %445
          %449 = vset.pattern.permute.xlu0 0
          %450 = vperm.xlu0 %449, %v429
          %v451 = vpop.permute.xlu0 %450
          %v453 = vlaneseq
          %v454 = vshrl.u32 %v453, 7
          %v455 = vsub.s32 0, %v454
          %v456 = vrot.slane %v432, %v455
          %v457 = vmul.f32 %v436, %v456
          %v458 = vmul.f32 %v441, %v456
          %v459 = vmul.f32 %v446, %v456
          %v460 = vmul.f32 %v451, %v456
          %v465 = vrot.slane %v457, 1
          %v466 = vrot.slane %v458, 1
          %v467 = vsel %vm307, %v465, %v466
          %v468 = vrot.slane %v459, 1
          %v469 = vsel %vm307, %v466, %v468
          %v470 = vrot.slane %v460, 1
          %v471 = vsel %vm307, %v468, %v470
          %v475 = vadd.f32 %v419, %v467
          %v476 = vadd.f32 %v420, %v469
          %v477 = vadd.f32 %v421, %v471
          %478 = vset.pattern.permute.xlu0 1
          %479 = vperm.xlu0 %478, %v426
          %v480 = vpop.permute.xlu0 %479
          %482 = vset.pattern.permute.xlu0 1
          %483 = vperm.xlu0 %482, %v427
          %v484 = vpop.permute.xlu0 %483
          %486 = vset.pattern.permute.xlu0 1
          %487 = vperm.xlu0 %486, %v428
          %v488 = vpop.permute.xlu0 %487
          %490 = vset.pattern.permute.xlu0 1
          %491 = vperm.xlu0 %490, %v429
          %v492 = vpop.permute.xlu0 %491
          %v494 = vlaneseq
          %v495 = vshrl.u32 %v494, 7
          %v496 = vsub.s32 1, %v495
          %v497 = vrot.slane %v432, %v496
          %v498 = vmul.f32 %v480, %v497
          %v499 = vmul.f32 %v484, %v497
          %v500 = vmul.f32 %v488, %v497
          %v501 = vmul.f32 %v492, %v497
          %v506 = vrot.slane %v498, 1
          %v507 = vrot.slane %v499, 1
          %v508 = vsel %vm307, %v506, %v507
          %v509 = vrot.slane %v500, 1
          %v510 = vsel %vm307, %v507, %v509
          %v511 = vrot.slane %v501, 1
          %v512 = vsel %vm307, %v509, %v511
          %v516 = vadd.f32 %v475, %v508
          %v517 = vadd.f32 %v476, %v510
          %v518 = vadd.f32 %v477, %v512
          %s519 = sadd.s32 %s205, 2
          %s520 = smul.u32 %s519, 4
          %s521 = smul.addr %s520, 4
          %s522 = scalar_lea.vmem %s193, %s521
          %v523 = vld [vmem:[%s522] sm:$0xf]
          %v524 = vld [vmem:[%s522 + $0x4] sm:$0xf]
          %v525 = vld [vmem:[%s522 + $0x8] sm:$0xf]
          %v526 = vunpack.c.l.bf16 %v523
          %v527 = vunpack.c.l.bf16 %v524
          %v528 = vunpack.c.l.bf16 %v525
          %s529 = scalar_lea.vmem [#allocation2], 4
          %v530 = vld [vmem:[%s529] sm:$0x1]
          %v531 = vunpack.c.l.bf16 %v530
          %533 = vset.pattern.permute.xlu0 0
          %534 = vperm.xlu0 %533, %v526
          %v535 = vpop.permute.xlu0 %534
          %538 = vset.pattern.permute.xlu0 0
          %539 = vperm.xlu0 %538, %v527
          %v540 = vpop.permute.xlu0 %539
          %543 = vset.pattern.permute.xlu0 0
          %544 = vperm.xlu0 %543, %v528
          %v545 = vpop.permute.xlu0 %544
          %v547 = vlaneseq
          %v548 = vshrl.u32 %v547, 7
          %v549 = vsub.s32 0, %v548
          %v550 = vrot.slane %v531, %v549
          %v551 = vmul.f32 %v535, %v550
          %v552 = vmul.f32 %v540, %v550
          %v553 = vmul.f32 %v545, %v550
          %v554 = vadd.f32 %v516, %v551
          %v555 = vadd.f32 %v517, %v552
          %v556 = vadd.f32 %v518, %v553
          %557 = vset.pattern.permute.xlu0 1
          %558 = vperm.xlu0 %557, %v526
          %v559 = vpop.permute.xlu0 %558
          %561 = vset.pattern.permute.xlu0 1
          %562 = vperm.xlu0 %561, %v527
          %v563 = vpop.permute.xlu0 %562
          %565 = vset.pattern.permute.xlu0 1
          %566 = vperm.xlu0 %565, %v528
          %v567 = vpop.permute.xlu0 %566
          %v569 = vlaneseq
          %v570 = vshrl.u32 %v569, 7
          %v571 = vsub.s32 1, %v570
          %v572 = vrot.slane %v531, %v571
          %v573 = vmul.f32 %v559, %v572
          %v574 = vmul.f32 %v563, %v572
          %v575 = vmul.f32 %v567, %v572
          %v576 = vadd.f32 %v554, %v573
          %v577 = vadd.f32 %v555, %v574
          %v578 = vadd.f32 %v556, %v575
          %v579 = vld [vmem:[%s522] sm:$0xf]
          %v580 = vld [vmem:[%s522 + $0x4] sm:$0xf]
          %v581 = vld [vmem:[%s522 + $0x8] sm:$0xf]
          %v582 = vld [vmem:[%s522 + $0xc] sm:$0x1]
          %v583 = vunpack.c.l.bf16 %v579
          %v584 = vunpack.c.l.bf16 %v580
          %v585 = vunpack.c.l.bf16 %v581
          %v586 = vunpack.c.l.bf16 %v582
          %s587 = scalar_lea.vmem [#allocation2], 5
          %v588 = vld [vmem:[%s587] sm:$0x1]
          %v589 = vunpack.c.l.bf16 %v588
          %591 = vset.pattern.permute.xlu0 0
          %592 = vperm.xlu0 %591, %v583
          %v593 = vpop.permute.xlu0 %592
          %596 = vset.pattern.permute.xlu0 0
          %597 = vperm.xlu0 %596, %v584
          %v598 = vpop.permute.xlu0 %597
          %601 = vset.pattern.permute.xlu0 0
          %602 = vperm.xlu0 %601, %v585
          %v603 = vpop.permute.xlu0 %602
          %606 = vset.pattern.permute.xlu0 0
          %607 = vperm.xlu0 %606, %v586
          %v608 = vpop.permute.xlu0 %607
          %v610 = vlaneseq
          %v611 = vshrl.u32 %v610, 7
          %v612 = vsub.s32 0, %v611
          %v613 = vrot.slane %v589, %v612
          %v614 = vmul.f32 %v593, %v613
          %v615 = vmul.f32 %v598, %v613
          %v616 = vmul.f32 %v603, %v613
          %v617 = vmul.f32 %v608, %v613
          %v622 = vrot.slane %v614, 1
          %v623 = vrot.slane %v615, 1
          %v624 = vsel %vm307, %v622, %v623
          %v625 = vrot.slane %v616, 1
          %v626 = vsel %vm307, %v623, %v625
          %v627 = vrot.slane %v617, 1
          %v628 = vsel %vm307, %v625, %v627
          %v632 = vadd.f32 %v576, %v624
          %v633 = vadd.f32 %v577, %v626
          %v634 = vadd.f32 %v578, %v628
          %635 = vset.pattern.permute.xlu0 1
          %636 = vperm.xlu0 %635, %v583
          %v637 = vpop.permute.xlu0 %636
          %639 = vset.pattern.permute.xlu0 1
          %640 = vperm.xlu0 %639, %v584
          %v641 = vpop.permute.xlu0 %640
          %643 = vset.pattern.permute.xlu0 1
          %644 = vperm.xlu0 %643, %v585
          %v645 = vpop.permute.xlu0 %644
          %647 = vset.pattern.permute.xlu0 1
          %648 = vperm.xlu0 %647, %v586
          %v649 = vpop.permute.xlu0 %648
          %v651 = vlaneseq
          %v652 = vshrl.u32 %v651, 7
          %v653 = vsub.s32 1, %v652
          %v654 = vrot.slane %v589, %v653
          %v655 = vmul.f32 %v637, %v654
          %v656 = vmul.f32 %v641, %v654
          %v657 = vmul.f32 %v645, %v654
          %v658 = vmul.f32 %v649, %v654
          %v663 = vrot.slane %v655, 1
          %v664 = vrot.slane %v656, 1
          %v665 = vsel %vm307, %v663, %v664
          %v666 = vrot.slane %v657, 1
          %v667 = vsel %vm307, %v664, %v666
          %v668 = vrot.slane %v658, 1
          %v669 = vsel %vm307, %v666, %v668
          %v673 = vadd.f32 %v632, %v665
          %v674 = vadd.f32 %v633, %v667
          %v675 = vadd.f32 %v634, %v669
          %v676 = vmul.f32 %v378, %v235
          %v677 = vmul.f32 %v383, %v235
          %v678 = vmul.f32 %v388, %v235
          %v679 = vadd.f32 %v676, 0.0
          %v680 = vadd.f32 %v677, 0.0
          %v681 = vadd.f32 %v678, 0.0
          %v682 = vmul.f32 %v402, %v257
          %v683 = vmul.f32 %v406, %v257
          %v684 = vmul.f32 %v410, %v257
          %v685 = vadd.f32 %v679, %v682
          %v686 = vadd.f32 %v680, %v683
          %v687 = vadd.f32 %v681, %v684
          %v688 = vmul.f32 %v436, %v298
          %v689 = vmul.f32 %v441, %v298
          %v690 = vmul.f32 %v446, %v298
          %v691 = vmul.f32 %v451, %v298
          %v696 = vrot.slane %v688, 1
          %v697 = vrot.slane %v689, 1
          %v698 = vsel %vm307, %v696, %v697
          %v699 = vrot.slane %v690, 1
          %v700 = vsel %vm307, %v697, %v699
          %v701 = vrot.slane %v691, 1
          %v702 = vsel %vm307, %v699, %v701
          %v706 = vadd.f32 %v685, %v698
          %v707 = vadd.f32 %v686, %v700
          %v708 = vadd.f32 %v687, %v702
          %v709 = vmul.f32 %v480, %v340
          %v710 = vmul.f32 %v484, %v340
          %v711 = vmul.f32 %v488, %v340
          %v712 = vmul.f32 %v492, %v340
          %v717 = vrot.slane %v709, 1
          %v718 = vrot.slane %v710, 1
          %v719 = vsel %vm307, %v717, %v718
          %v720 = vrot.slane %v711, 1
          %v721 = vsel %vm307, %v718, %v720
          %v722 = vrot.slane %v712, 1
          %v723 = vsel %vm307, %v720, %v722
          %v727 = vadd.f32 %v706, %v719
          %v728 = vadd.f32 %v707, %v721
          %v729 = vadd.f32 %v708, %v723
          %v730 = vmul.f32 %v535, %v393
          %v731 = vmul.f32 %v540, %v393
          %v732 = vmul.f32 %v545, %v393
          %v733 = vadd.f32 %v727, %v730
          %v734 = vadd.f32 %v728, %v731
          %v735 = vadd.f32 %v729, %v732
          %v736 = vmul.f32 %v559, %v415
          %v737 = vmul.f32 %v563, %v415
          %v738 = vmul.f32 %v567, %v415
          %v739 = vadd.f32 %v733, %v736
          %v740 = vadd.f32 %v734, %v737
          %v741 = vadd.f32 %v735, %v738
          %v742 = vmul.f32 %v593, %v456
          %v743 = vmul.f32 %v598, %v456
          %v744 = vmul.f32 %v603, %v456
          %v745 = vmul.f32 %v608, %v456
          %v750 = vrot.slane %v742, 1
          %v751 = vrot.slane %v743, 1
          %v752 = vsel %vm307, %v750, %v751
          %v753 = vrot.slane %v744, 1
          %v754 = vsel %vm307, %v751, %v753
          %v755 = vrot.slane %v745, 1
          %v756 = vsel %vm307, %v753, %v755
          %v760 = vadd.f32 %v739, %v752
          %v761 = vadd.f32 %v740, %v754
          %v762 = vadd.f32 %v741, %v756
          %v763 = vmul.f32 %v637, %v497
          %v764 = vmul.f32 %v641, %v497
          %v765 = vmul.f32 %v645, %v497
          %v766 = vmul.f32 %v649, %v497
          %v771 = vrot.slane %v763, 1
          %v772 = vrot.slane %v764, 1
          %v773 = vsel %vm307, %v771, %v772
          %v774 = vrot.slane %v765, 1
          %v775 = vsel %vm307, %v772, %v774
          %v776 = vrot.slane %v766, 1
          %v777 = vsel %vm307, %v774, %v776
          %v781 = vadd.f32 %v760, %v773
          %v782 = vadd.f32 %v761, %v775
          %v783 = vadd.f32 %v762, %v777
          %s784 = sadd.s32 %s205, 3
          %s785 = smul.u32 %s784, 4
          %s786 = smul.addr %s785, 4
          %s787 = scalar_lea.vmem %s193, %s786
          %v788 = vld [vmem:[%s787] sm:$0xf]
          %v789 = vld [vmem:[%s787 + $0x4] sm:$0xf]
          %v790 = vld [vmem:[%s787 + $0x8] sm:$0xf]
          %v791 = vunpack.c.l.bf16 %v788
          %v792 = vunpack.c.l.bf16 %v789
          %v793 = vunpack.c.l.bf16 %v790
          %795 = vset.pattern.permute.xlu0 0
          %796 = vperm.xlu0 %795, %v791
          %v797 = vpop.permute.xlu0 %796
          %800 = vset.pattern.permute.xlu0 0
          %801 = vperm.xlu0 %800, %v792
          %v802 = vpop.permute.xlu0 %801
          %805 = vset.pattern.permute.xlu0 0
          %806 = vperm.xlu0 %805, %v793
          %v807 = vpop.permute.xlu0 %806
          %v809 = vmul.f32 %v797, %v550
          %v810 = vmul.f32 %v802, %v550
          %v811 = vmul.f32 %v807, %v550
          %v812 = vadd.f32 %v781, %v809
          %v813 = vadd.f32 %v782, %v810
          %v814 = vadd.f32 %v783, %v811
          %815 = vset.pattern.permute.xlu0 1
          %816 = vperm.xlu0 %815, %v791
          %v817 = vpop.permute.xlu0 %816
          %819 = vset.pattern.permute.xlu0 1
          %820 = vperm.xlu0 %819, %v792
          %v821 = vpop.permute.xlu0 %820
          %823 = vset.pattern.permute.xlu0 1
          %824 = vperm.xlu0 %823, %v793
          %v825 = vpop.permute.xlu0 %824
          %v827 = vmul.f32 %v817, %v572
          %v828 = vmul.f32 %v821, %v572
          %v829 = vmul.f32 %v825, %v572
          %v830 = vadd.f32 %v812, %v827
          %v831 = vadd.f32 %v813, %v828
          %v832 = vadd.f32 %v814, %v829
          %v833 = vld [vmem:[%s787] sm:$0xf]
          %v834 = vld [vmem:[%s787 + $0x4] sm:$0xf]
          %v835 = vld [vmem:[%s787 + $0x8] sm:$0xf]
          %v836 = vld [vmem:[%s787 + $0xc] sm:$0x1]
          %v837 = vunpack.c.l.bf16 %v833
          %v838 = vunpack.c.l.bf16 %v834
          %v839 = vunpack.c.l.bf16 %v835
          %v840 = vunpack.c.l.bf16 %v836
          %842 = vset.pattern.permute.xlu0 0
          %843 = vperm.xlu0 %842, %v837
          %v844 = vpop.permute.xlu0 %843
          %847 = vset.pattern.permute.xlu0 0
          %848 = vperm.xlu0 %847, %v838
          %v849 = vpop.permute.xlu0 %848
          %852 = vset.pattern.permute.xlu0 0
          %853 = vperm.xlu0 %852, %v839
          %v854 = vpop.permute.xlu0 %853
          %857 = vset.pattern.permute.xlu0 0
          %858 = vperm.xlu0 %857, %v840
          %v859 = vpop.permute.xlu0 %858
          %v861 = vmul.f32 %v844, %v613
          %v862 = vmul.f32 %v849, %v613
          %v863 = vmul.f32 %v854, %v613
          %v864 = vmul.f32 %v859, %v613
          %v869 = vrot.slane %v861, 1
          %v870 = vrot.slane %v862, 1
          %v871 = vsel %vm307, %v869, %v870
          %v872 = vrot.slane %v863, 1
          %v873 = vsel %vm307, %v870, %v872
          %v874 = vrot.slane %v864, 1
          %v875 = vsel %vm307, %v872, %v874
          %v879 = vadd.f32 %v830, %v871
          %v880 = vadd.f32 %v831, %v873
          %v881 = vadd.f32 %v832, %v875
          %882 = vset.pattern.permute.xlu0 1
          %883 = vperm.xlu0 %882, %v837
          %v884 = vpop.permute.xlu0 %883
          %886 = vset.pattern.permute.xlu0 1
          %887 = vperm.xlu0 %886, %v838
          %v888 = vpop.permute.xlu0 %887
          %890 = vset.pattern.permute.xlu0 1
          %891 = vperm.xlu0 %890, %v839
          %v892 = vpop.permute.xlu0 %891
          %894 = vset.pattern.permute.xlu0 1
          %895 = vperm.xlu0 %894, %v840
          %v896 = vpop.permute.xlu0 %895
          %v898 = vmul.f32 %v884, %v654
          %v899 = vmul.f32 %v888, %v654
          %v900 = vmul.f32 %v892, %v654
          %v901 = vmul.f32 %v896, %v654
          %v906 = vrot.slane %v898, 1
          %v907 = vrot.slane %v899, 1
          %v908 = vsel %vm307, %v906, %v907
          %v909 = vrot.slane %v900, 1
          %v910 = vsel %vm307, %v907, %v909
          %v911 = vrot.slane %v901, 1
          %v912 = vsel %vm307, %v909, %v911
          %v916 = vadd.f32 %v879, %v908
          %v917 = vadd.f32 %v880, %v910
          %v918 = vadd.f32 %v881, %v912
          %v919 = vmax.f32 %v673, %v916
          %v920 = vmax.f32 %v674, %v917
          %v921 = vmax.f32 %v675, %v918
          %v922 = vld [vmem:[#allocation4] sm:$0x1]
          %v924 = vlaneseq
          %v925 = vshrl.u32 %v924, 7
          %v926 = vsub.s32 0, %v925
          %v927 = vrot.slane %v922, %v926
          %v929 = vadd.f32 %v919, %v927
          %v930 = vadd.f32 %v920, %v927
          %v931 = vadd.f32 %v921, %v927
          %v932 = vmax.f32 %v929, 0.0
          %v933 = vmax.f32 %v930, 0.0
          %v934 = vmax.f32 %v931, 0.0
          %938 = vrot.lane.b32.xlu0 %v932, 96
          %v939 = vpop.permute.xlu0 %938
          %940 = vrot.lane.b32.xlu0 %v933, 96
          %v941 = vpop.permute.xlu0 %940
          %942 = vrot.lane.b32.xlu0 %v934, 96
          %v943 = vpop.permute.xlu0 %942
          %v947 = vmax.f32 %v932, %v939
          %v948 = vmax.f32 %v933, %v941
          %v949 = vmax.f32 %v934, %v943
          %v950 = vpack.c.bf16 %v948, %v947
          %v951 = vpack.c.bf16 %v949, %v949
          %v954 = vunpack.c.l.b16 %v950
          %v955 = vunpack.c.h.b16 %v950
          %v956 = vunpack.c.l.b16 %v951
          %v957 = vpack.c.b16 %v954, %v954
          %v958 = vpack.c.b16 %v955, %v955
          %v959 = vpack.c.b16 %v956, %v956
          %s963 = smul.u32 %s200, 3
          %s964 = smul.addr %s963, 4
          %s965 = scalar_lea.vmem %s198, %s964
          %vm966 = vcmask 257024
          %967 = vst.msk [vmem:[%s965] sm:$0xf] %vm966, %v957
          %968 = vst.msk [vmem:[%s965 + $0x4] sm:$0xf] %vm966, %v958
          %969 = vst.msk [vmem:[%s965 + $0x8] sm:$0xf] %vm966, %v959
        $region45: #{simple_cnn_forward.3} parent=31 // loop_footer
          %s204 = sadd.s32 1, %s200
        $region46: #{simple_cnn_forward.3} parent=31 // loop_footer_branch
          %199 = sbr.rel target = $region42
        $region47: #{simple_cnn_forward.3} parent=31 // loop_exit
          _
        %p970 = scmp.lt.s32.totalorder %s16, 1
        %s971 = scalar_select %p970, %s16, 1
        %s972 = smul.addr %s971, 72
        %s973 = smul.addr %s972, 4
        %s974 = scalar_lea.vmem %s3, %s973
        // Predicated region
        $region48: #{simple_cnn_forward.3} parent=31 // pred_check
          %p975 = pneg %p102
        $region49: #{simple_cnn_forward.3} parent=31 // pred_check_branch
          %977 = sbr.rel (%p975) target = $region51
        $region50: #{simple_cnn_forward.3} parent=31 // pred_region
          _
        $region51: #{simple_cnn_forward.3} parent=31 // pred_fallthru
          _
      $region32: #{simple_cnn_forward.3} parent=5 // pred_fallthru
        _
      %p978 = scmp.le.s32.totalorder 2, %s11
      // Predicated region
      $region52: #{simple_cnn_forward.3} parent=5 // pred_check
        %p979 = pneg %p978
      $region53: #{simple_cnn_forward.3} parent=5 // pred_check_branch
        %981 = sbr.rel (%p979) target = $region55
      $region54: #{simple_cnn_forward.3} parent=5 // pred_region
        %s982 = ssub.s32 %s11, 2
        // Predicated region
        $region56: #{simple_cnn_forward.3} parent=54 // pred_check
          %p983 = pneg %p108
        $region57: #{simple_cnn_forward.3} parent=54 // pred_check_branch
          %985 = sbr.rel (%p983) target = $region59
        $region58: #{simple_cnn_forward.3} parent=54 // pred_region
          %p986 = scmp.lt.s32.totalorder %s17, 1
          %s987 = scalar_select %p986, %s17, 1
          %s988 = smul.addr %s987, 72
          %s989 = smul.addr %s988, 4
          %s990 = scalar_lea.vmem %s3, %s989
        $region59: #{simple_cnn_forward.3} parent=54 // pred_fallthru
          _
      $region55: #{simple_cnn_forward.3} parent=5 // pred_fallthru
        _
    $region6: #{simple_cnn_forward.3} parent=1 // loop_footer
      %s15 = sadd.s32 1, %s11
    $region7: #{simple_cnn_forward.3} parent=1 // loop_footer_branch
      %10 = sbr.rel target = $region3
    $region8: #{simple_cnn_forward.3} parent=1 // loop_exit
      _
    %991 = vsyncpa [#allocation3], 1
    %s992 = scalar_lea.sflag [#allocation3], 1
    %993 = vsyncpa %s992, 1
    %994 = vsyncpa [#allocation5], 1

// kernel: simple_cnn_forward.4
$region0: #{simple_cnn_forward.4}
  #allocation0 [shape = 'u32[]', space=smem, size = 0x4, offset = 0x4, fixed_abs, tag = 'smem constant byte address 0x4 - core index']
  #allocation1 [shape = 'u32[144,128]{1,0:T(1,128)}', space=vmem, size = 0x12000, scoped, tag = 'internal scratch']
  %s0 = inlined_call_operand.vmem [shape: bf16[2,24,12,64], index: 0, kind: input, shape index: {}]
  %s1 = inlined_call_operand.vmem [shape: bf16[3,2,64,128], index: 1, kind: input, shape index: {}]
  %s2 = inlined_call_operand.vmem [shape: f32[1,128], index: 2, kind: input, shape index: {}]
  %s3 = inlined_call_operand.vmem [shape: bf16[2,11,11,64], index: 3, kind: output, shape index: {}]
  %s4 = sld [smem:[#allocation0]]
  $region52: #{simple_cnn_forward.4} parent=0
    _
  %s6 = ssub.s32 1, %s4
  %s7 = scalar_select 0, %s6, %s4
  loop: start=0, step=1, limit=4
  $region2: #{simple_cnn_forward.4} parent=0 // loop_pre_header
    _
  $region3: #{simple_cnn_forward.4} parent=0 // loop_header
    %s9 = sphi 0, %s13
    %p10 = scmp.ge.s32.totalorder %s9, 4
    %s19 = sphi 0, %s21
    %s22 = sphi 0, %s19
    %s23 = sphi 0, %s22
    %s39 = sphi 0, %s23
    %s43 = sphi 0, %s43
    %s45 = sphi 0, %s43
    %s46 = sphi 0, %s45
    %s60 = sphi 0, %s46
    %s64 = sphi 0, %s64
    %s66 = sphi 0, %s64
    %s67 = sphi 0, %s66
    %s81 = sphi 0, %s67
    %s87 = sphi 0, %s89
    %s90 = sphi 0, %s87
    %s91 = sphi 0, %s90
    %s107 = sphi 0, %s91
  $region4: #{simple_cnn_forward.4} parent=0 // loop_header_branch
    %12 = sbr.rel (%p10) target = $region8
  $region5: #{simple_cnn_forward.4} parent=0 // loop_body
    %s14 = ssub.s32 %s9, 1
    %s15 = ssub.s32 %s9, 2
    %s16 = sadd.s32 %s9, 1
    %s17 = ssub.s32 %s9, %s16
    %p18 = scmp.eq.s32.totalorder %s17, 0
    %s20 = sadd.s32 %s19, 1
    %s21 = scalar_select %p18, %s19, %s20
    %p24 = pneg %p18
    %p25 = scmp.eq.s32.totalorder %s9, 1
    %p26 = por %p24, %p25
    %p27 = scmp.ne.s32.totalorder %s19, %s22
    %p28 = scmp.eq.s32.totalorder %s9, 0
    %p29 = por %p27, %p28
    %p30 = scmp.ne.s32.totalorder %s19, %s22
    %p31 = scmp.eq.s32.totalorder %s14, 1
    %p32 = por %p30, %p31
    %p33 = scmp.ne.s32.totalorder %s22, %s23
    %p34 = scmp.eq.s32.totalorder %s14, 0
    %p35 = por %p33, %p34
    %p36 = scmp.ne.s32.totalorder %s22, %s23
    %p37 = scmp.eq.s32.totalorder %s15, 1
    %p38 = por %p36, %p37
    %p40 = scmp.ne.s32.totalorder %s23, %s39
    %p41 = scmp.eq.s32.totalorder %s15, 0
    %p42 = por %p40, %p41
    %s44 = sadd.s32 %s43, 1
    %p47 = scmp.eq.s32.totalorder %s9, 1
    %p48 = scmp.ne.s32.totalorder %s43, %s45
    %p49 = scmp.eq.s32.totalorder %s9, 0
    %p50 = por %p48, %p49
    %p51 = scmp.ne.s32.totalorder %s43, %s45
    %p52 = scmp.eq.s32.totalorder %s14, 1
    %p53 = por %p51, %p52
    %p54 = scmp.ne.s32.totalorder %s45, %s46
    %p55 = scmp.eq.s32.totalorder %s14, 0
    %p56 = por %p54, %p55
    %p57 = scmp.ne.s32.totalorder %s45, %s46
    %p58 = scmp.eq.s32.totalorder %s15, 1
    %p59 = por %p57, %p58
    %p61 = scmp.ne.s32.totalorder %s46, %s60
    %p62 = scmp.eq.s32.totalorder %s15, 0
    %p63 = por %p61, %p62
    %s65 = sadd.s32 %s64, 1
    %p68 = scmp.eq.s32.totalorder %s9, 1
    %p69 = scmp.ne.s32.totalorder %s64, %s66
    %p70 = scmp.eq.s32.totalorder %s9, 0
    %p71 = por %p69, %p70
    %p72 = scmp.ne.s32.totalorder %s64, %s66
    %p73 = scmp.eq.s32.totalorder %s14, 1
    %p74 = por %p72, %p73
    %p75 = scmp.ne.s32.totalorder %s66, %s67
    %p76 = scmp.eq.s32.totalorder %s14, 0
    %p77 = por %p75, %p76
    %p78 = scmp.ne.s32.totalorder %s66, %s67
    %p79 = scmp.eq.s32.totalorder %s15, 1
    %p80 = por %p78, %p79
    %p82 = scmp.ne.s32.totalorder %s67, %s81
    %p83 = scmp.eq.s32.totalorder %s15, 0
    %p84 = por %p82, %p83
    %s85 = ssub.s32 %s9, %s16
    %p86 = scmp.eq.s32.totalorder %s85, 0
    %s88 = sadd.s32 %s87, 1
    %s89 = scalar_select %p86, %s87, %s88
    %p92 = pneg %p86
    %p93 = scmp.eq.s32.totalorder %s9, 1
    %p94 = por %p92, %p93
    %p95 = scmp.ne.s32.totalorder %s87, %s90
    %p96 = scmp.eq.s32.totalorder %s9, 0
    %p97 = por %p95, %p96
    %p98 = scmp.ne.s32.totalorder %s87, %s90
    %p99 = scmp.eq.s32.totalorder %s14, 1
    %p100 = por %p98, %p99
    %p101 = scmp.ne.s32.totalorder %s90, %s91
    %p102 = scmp.eq.s32.totalorder %s14, 0
    %p103 = por %p101, %p102
    %p104 = scmp.ne.s32.totalorder %s90, %s91
    %p105 = scmp.eq.s32.totalorder %s15, 1
    %p106 = por %p104, %p105
    %p108 = scmp.ne.s32.totalorder %s91, %s107
    %p109 = scmp.eq.s32.totalorder %s15, 0
    %p110 = por %p108, %p109
    %p111 = scmp.le.s32.totalorder 1, %s9
    %p112 = scmp.lt.s32.totalorder %s9, 3
    %p113 = pnand %p111, %p112
    %p114 = pneg %p113
    // Predicated region
    $region9: #{simple_cnn_forward.4} parent=5 // pred_check
      _
    $region10: #{simple_cnn_forward.4} parent=5 // pred_check_branch
      %116 = sbr.rel (%p113) target = $region12
    $region11: #{simple_cnn_forward.4} parent=5 // pred_region
      %s117 = ssub.s32 %s9, 1
      // Predicated region
      $region13: #{simple_cnn_forward.4} parent=11 // pred_check
        %p118 = pneg %p56
      $region14: #{simple_cnn_forward.4} parent=11 // pred_check_branch
        %120 = sbr.rel (%p118) target = $region16
      $region15: #{simple_cnn_forward.4} parent=11 // pred_region
        _
      $region16: #{simple_cnn_forward.4} parent=11 // pred_fallthru
        _
      // Predicated region
      $region17: #{simple_cnn_forward.4} parent=11 // pred_check
        %p121 = pneg %p77
      $region18: #{simple_cnn_forward.4} parent=11 // pred_check_branch
        %123 = sbr.rel (%p121) target = $region20
      $region19: #{simple_cnn_forward.4} parent=11 // pred_region
        _
      $region20: #{simple_cnn_forward.4} parent=11 // pred_fallthru
        _
    $region12: #{simple_cnn_forward.4} parent=5 // pred_fallthru
      _
    %p124 = scmp.lt.s32.totalorder %s9, 2
    // Predicated region
    $region21: #{simple_cnn_forward.4} parent=5 // pred_check
      %p125 = pneg %p124
    $region22: #{simple_cnn_forward.4} parent=5 // pred_check_branch
      %127 = sbr.rel (%p125) target = $region24
    $region23: #{simple_cnn_forward.4} parent=5 // pred_region
      // Predicated region
      $region25: #{simple_cnn_forward.4} parent=23 // pred_check
        %p128 = pneg %p29
      $region26: #{simple_cnn_forward.4} parent=23 // pred_check_branch
        %130 = sbr.rel (%p128) target = $region28
      $region27: #{simple_cnn_forward.4} parent=23 // pred_region
        %p131 = scmp.lt.s32.totalorder %s9, 1
        %s132 = scalar_select %p131, %s9, 1
        %s133 = smul.addr %s132, 48
        %s134 = smul.addr %s133, 4
        %s135 = scalar_lea.vmem %s0, %s134
      $region28: #{simple_cnn_forward.4} parent=23 // pred_fallthru
        _
    $region24: #{simple_cnn_forward.4} parent=5 // pred_fallthru
      _
    %p136 = scmp.le.s32.totalorder 1, %s9
    %p137 = scmp.lt.s32.totalorder %s9, 3
    %p138 = pnand %p136, %p137
    %p139 = pneg %p138
    // Predicated region
    $region29: #{simple_cnn_forward.4} parent=5 // pred_check
      _
    $region30: #{simple_cnn_forward.4} parent=5 // pred_check_branch
      %141 = sbr.rel (%p138) target = $region32
    $region31: #{simple_cnn_forward.4} parent=5 // pred_region
      %s142 = ssub.s32 %s9, 1
      %p143 = scmp.lt.s32.totalorder %s14, 1
      %s144 = scalar_select %p143, %s14, 1
      %s145 = smul.addr %s144, 48
      %s146 = smul.addr %s145, 4
      %s147 = scalar_lea.vmem %s0, %s146
      %p148 = pneg %p35
      %p149 = pneg %p32
      %p150 = pneg %p56
      %p151 = pneg %p53
      %p152 = pneg %p77
      %p153 = pneg %p74
      %p154 = pneg %p103
      %p155 = pneg %p100
      %p156 = scmp.lt.s32.totalorder %s14, 1
      %s157 = scalar_select %p156, %s14, 1
      %s158 = smul.addr %s157, 22
      %s159 = smul.addr %s158, 4
      %s160 = scalar_lea.vmem %s3, %s159
      %p161 = scmp.lt.s32.totalorder %s14, 1
      %s162 = scalar_select %p161, %s14, 1
      %s163 = smul.addr %s162, 48
      %s164 = smul.addr %s163, 4
      %s165 = scalar_lea.vmem %s0, %s164
      %p166 = scmp.lt.s32.totalorder %s14, 1
      %s167 = scalar_select %p166, %s14, 1
      %s168 = smul.addr %s167, 22
      %s169 = smul.addr %s168, 4
      %s170 = scalar_lea.vmem %s3, %s169
      loop: start=0, step=1, limit=11
      $region33: #{simple_cnn_forward.4} parent=31 // loop_pre_header
        _
      $region34: #{simple_cnn_forward.4} parent=31 // loop_header
        %s173 = sphi 0, %s177
        %p174 = scmp.ge.s32.totalorder %s173, 11
      $region35: #{simple_cnn_forward.4} parent=31 // loop_header_branch
        %176 = sbr.rel (%p174) target = $region39
      $region36: #{simple_cnn_forward.4} parent=31 // loop_body
        %s178 = smul.u32 %s173, 2
        %s179 = smul.u32 %s178, 2
        %s180 = smul.addr %s179, 4
        %s181 = scalar_lea.vmem %s165, %s180
        %v182 = vld [vmem:[%s181] sm:$0xf]
        %v183 = vld [vmem:[%s181 + $0x4] sm:$0x3]
        %v184 = vld [vmem:[%s1] sm:$0xf]
        %v185 = vld [vmem:[%s1 + $0x4] sm:$0xf]
        %v186 = vld [vmem:[%s1 + $0x8] sm:$0xf]
        %v187 = vld [vmem:[%s1 + $0xc] sm:$0xf]
        %v188 = vld [vmem:[%s1 + $0x10] sm:$0xf]
        %v189 = vld [vmem:[%s1 + $0x14] sm:$0xf]
        %v190 = vld [vmem:[%s1 + $0x18] sm:$0xf]
        %v191 = vld [vmem:[%s1 + $0x1c] sm:$0xf]
        %s192 = scalar_lea.vmem %s1, 32
        %v193 = vld [vmem:[%s192] sm:$0xf]
        %v194 = vld [vmem:[%s192 + $0x4] sm:$0xf]
        %v195 = vld [vmem:[%s192 + $0x8] sm:$0xf]
        %v196 = vld [vmem:[%s192 + $0xc] sm:$0xf]
        %v197 = vld [vmem:[%s192 + $0x10] sm:$0xf]
        %v198 = vld [vmem:[%s192 + $0x14] sm:$0xf]
        %v199 = vld [vmem:[%s192 + $0x18] sm:$0xf]
        %v200 = vld [vmem:[%s192 + $0x1c] sm:$0xf]
        %v203 = vunpack.c.l.b16 %v182
        %v204 = vunpack.c.l.b16 %v183
        %v205 = vpack.c.b16 %v204, %v203
        %v207 = vshrl.u32 %v205, 16
        %v209 = vshll.u32 %v205, 16
        %v211 = vrot.slane %v209, 1
        %v212 = vor.u32 %v207, %v211
        %v221 = vunpack.c.l.b16 %v193
        %v222 = vunpack.c.l.b16 %v194
        %v223 = vunpack.c.l.b16 %v195
        %v224 = vunpack.c.l.b16 %v196
        %v225 = vunpack.c.l.b16 %v197
        %v226 = vunpack.c.l.b16 %v198
        %v227 = vunpack.c.l.b16 %v199
        %v228 = vunpack.c.l.b16 %v200
        %v229 = vpack.c.b16 %v222, %v221
        %v230 = vpack.c.b16 %v224, %v223
        %v231 = vpack.c.b16 %v226, %v225
        %v232 = vpack.c.b16 %v228, %v227
        %vm237 = vcmask 523264
        %v239 = vsel %vm237, %v212, 0
        %241 = vmatprep.subr.bf16.mxu0 0
        %242 = vmatpush1.bf16.msra.mxu0 %v229
        %243 = vmatprep.subr.bf16.mxu0 0
        %244 = vmatpush1.bf16.msra.mxu0 %v230
        %245 = vmatprep.subr.bf16.mxu0 0
        %246 = vmatpush1.bf16.msra.mxu0 %v231
        %247 = vmatprep.subr.bf16.mxu0 0
        %248 = vmatpush1.bf16.msra.mxu0 %v232
        %249 = vmatprep.subr.bf16.mxu0 0
        %250 = vmatpush1.bf16.msra.mxu0 0
        %251 = vmatprep.subr.bf16.mxu0 0
        %252 = vmatpush1.bf16.msra.mxu0 0
        %253 = vmatprep.subr.bf16.mxu0 0
        %254 = vmatpush1.bf16.msra.mxu0 0
        %255 = vmatprep.subr.bf16.mxu0 0
        %256 = vmatpush1.bf16.msra.mxu0 0
        %257 = vmatprep.subr.bf16.mxu0 0
        %258 = vmatpush1.bf16.msra.mxu0 0
        %259 = vmatprep.subr.bf16.mxu0 0
        %260 = vmatpush1.bf16.msra.mxu0 0
        %261 = vmatprep.subr.bf16.mxu0 0
        %262 = vmatpush1.bf16.msra.mxu0 0
        %263 = vmatprep.subr.bf16.mxu0 0
        %264 = vmatpush1.bf16.msra.mxu0 0
        %265 = vmatprep.subr.bf16.mxu0 0
        %266 = vmatpush1.bf16.msra.mxu0 0
        %267 = vmatprep.subr.bf16.mxu0 0
        %268 = vmatpush1.bf16.msra.mxu0 0
        %269 = vmatprep.subr.bf16.mxu0 0
        %270 = vmatpush1.bf16.msra.mxu0 0
        %271 = vmatprep.subr.bf16.mxu0 0
        %272 = vmatpush1.bf16.msra.mxu0 0
        %273 = vmatprep.mubr.bf16.mxu0 0
        %274 = vmatmul.mubr.bf16.gmra.mrb[0].mxu0 %v239
        %v275 = vpop.f32.mrb[0].mxu0
        %v276 = vadd.f32 0.0, %v275
        %v277 = vpop.f32.mrb[0].mxu0
        %v278 = vpop.f32.mrb[0].mxu0
        %v279 = vadd.f32 0.0, %v278
        %v280 = vpop.f32.mrb[0].mxu0
        %281 = vdwg.mxu0
        %v290 = vunpack.c.l.b16 %v184
        %v291 = vunpack.c.l.b16 %v185
        %v292 = vunpack.c.l.b16 %v186
        %v293 = vunpack.c.l.b16 %v187
        %v294 = vunpack.c.l.b16 %v188
        %v295 = vunpack.c.l.b16 %v189
        %v296 = vunpack.c.l.b16 %v190
        %v297 = vunpack.c.l.b16 %v191
        %v298 = vpack.c.b16 %v291, %v290
        %v299 = vpack.c.b16 %v293, %v292
        %v300 = vpack.c.b16 %v295, %v294
        %v301 = vpack.c.b16 %v297, %v296
        %v306 = vsel %vm237, %v205, 0
        %308 = vmatprep.subr.bf16.mxu0 0
        %309 = vmatpush1.bf16.msra.mxu0 %v298
        %310 = vmatprep.subr.bf16.mxu0 0
        %311 = vmatpush1.bf16.msra.mxu0 %v299
        %312 = vmatprep.subr.bf16.mxu0 0
        %313 = vmatpush1.bf16.msra.mxu0 %v300
        %314 = vmatprep.subr.bf16.mxu0 0
        %315 = vmatpush1.bf16.msra.mxu0 %v301
        %316 = vmatprep.subr.bf16.mxu0 0
        %317 = vmatpush1.bf16.msra.mxu0 0
        %318 = vmatprep.subr.bf16.mxu0 0
        %319 = vmatpush1.bf16.msra.mxu0 0
        %320 = vmatprep.subr.bf16.mxu0 0
        %321 = vmatpush1.bf16.msra.mxu0 0
        %322 = vmatprep.subr.bf16.mxu0 0
        %323 = vmatpush1.bf16.msra.mxu0 0
        %324 = vmatprep.subr.bf16.mxu0 0
        %325 = vmatpush1.bf16.msra.mxu0 0
        %326 = vmatprep.subr.bf16.mxu0 0
        %327 = vmatpush1.bf16.msra.mxu0 0
        %328 = vmatprep.subr.bf16.mxu0 0
        %329 = vmatpush1.bf16.msra.mxu0 0
        %330 = vmatprep.subr.bf16.mxu0 0
        %331 = vmatpush1.bf16.msra.mxu0 0
        %332 = vmatprep.subr.bf16.mxu0 0
        %333 = vmatpush1.bf16.msra.mxu0 0
        %334 = vmatprep.subr.bf16.mxu0 0
        %335 = vmatpush1.bf16.msra.mxu0 0
        %336 = vmatprep.subr.bf16.mxu0 0
        %337 = vmatpush1.bf16.msra.mxu0 0
        %338 = vmatprep.subr.bf16.mxu0 0
        %339 = vmatpush1.bf16.msra.mxu0 0
        %340 = vmatprep.mubr.bf16.mxu0 0
        %341 = vmatmul.mubr.bf16.gmra.mrb[0].mxu0 %v306
        %v342 = vpop.f32.mrb[0].mxu0
        %v343 = vadd.f32 %v276, %v342
        %v344 = vpop.f32.mrb[0].mxu0
        %v345 = vpop.f32.mrb[0].mxu0
        %v346 = vadd.f32 %v279, %v345
        %v347 = vpop.f32.mrb[0].mxu0
        %348 = vdwg.mxu0
        %s349 = sadd.s32 %s178, 1
        %s350 = smul.u32 %s349, 2
        %s351 = smul.addr %s350, 4
        %s352 = scalar_lea.vmem %s165, %s351
        %v353 = vld [vmem:[%s352] sm:$0xf]
        %v354 = vld [vmem:[%s352 + $0x4] sm:$0x3]
        %s355 = scalar_lea.vmem %s1, 64
        %v356 = vld [vmem:[%s355] sm:$0xf]
        %v357 = vld [vmem:[%s355 + $0x4] sm:$0xf]
        %v358 = vld [vmem:[%s355 + $0x8] sm:$0xf]
        %v359 = vld [vmem:[%s355 + $0xc] sm:$0xf]
        %v360 = vld [vmem:[%s355 + $0x10] sm:$0xf]
        %v361 = vld [vmem:[%s355 + $0x14] sm:$0xf]
        %v362 = vld [vmem:[%s355 + $0x18] sm:$0xf]
        %v363 = vld [vmem:[%s355 + $0x1c] sm:$0xf]
        %v366 = vunpack.c.l.b16 %v353
        %v367 = vunpack.c.l.b16 %v354
        %v368 = vpack.c.b16 %v367, %v366
        %v377 = vunpack.c.l.b16 %v356
        %v378 = vunpack.c.l.b16 %v357
        %v379 = vunpack.c.l.b16 %v358
        %v380 = vunpack.c.l.b16 %v359
        %v381 = vunpack.c.l.b16 %v360
        %v382 = vunpack.c.l.b16 %v361
        %v383 = vunpack.c.l.b16 %v362
        %v384 = vunpack.c.l.b16 %v363
        %v385 = vpack.c.b16 %v378, %v377
        %v386 = vpack.c.b16 %v380, %v379
        %v387 = vpack.c.b16 %v382, %v381
        %v388 = vpack.c.b16 %v384, %v383
        %v394 = vsel %vm237, %v368, 0
        %396 = vmatprep.subr.bf16.mxu0 0
        %397 = vmatpush1.bf16.msra.mxu0 %v385
        %398 = vmatprep.subr.bf16.mxu0 0
        %399 = vmatpush1.bf16.msra.mxu0 %v386
        %400 = vmatprep.subr.bf16.mxu0 0
        %401 = vmatpush1.bf16.msra.mxu0 %v387
        %402 = vmatprep.subr.bf16.mxu0 0
        %403 = vmatpush1.bf16.msra.mxu0 %v388
        %404 = vmatprep.subr.bf16.mxu0 0
        %405 = vmatpush1.bf16.msra.mxu0 0
        %406 = vmatprep.subr.bf16.mxu0 0
        %407 = vmatpush1.bf16.msra.mxu0 0
        %408 = vmatprep.subr.bf16.mxu0 0
        %409 = vmatpush1.bf16.msra.mxu0 0
        %410 = vmatprep.subr.bf16.mxu0 0
        %411 = vmatpush1.bf16.msra.mxu0 0
        %412 = vmatprep.subr.bf16.mxu0 0
        %413 = vmatpush1.bf16.msra.mxu0 0
        %414 = vmatprep.subr.bf16.mxu0 0
        %415 = vmatpush1.bf16.msra.mxu0 0
        %416 = vmatprep.subr.bf16.mxu0 0
        %417 = vmatpush1.bf16.msra.mxu0 0
        %418 = vmatprep.subr.bf16.mxu0 0
        %419 = vmatpush1.bf16.msra.mxu0 0
        %420 = vmatprep.subr.bf16.mxu0 0
        %421 = vmatpush1.bf16.msra.mxu0 0
        %422 = vmatprep.subr.bf16.mxu0 0
        %423 = vmatpush1.bf16.msra.mxu0 0
        %424 = vmatprep.subr.bf16.mxu0 0
        %425 = vmatpush1.bf16.msra.mxu0 0
        %426 = vmatprep.subr.bf16.mxu0 0
        %427 = vmatpush1.bf16.msra.mxu0 0
        %428 = vmatprep.mubr.bf16.mxu0 0
        %429 = vmatmul.mubr.bf16.gmra.mrb[0].mxu0 %v394
        %v430 = vpop.f32.mrb[0].mxu0
        %v431 = vadd.f32 0.0, %v430
        %v432 = vpop.f32.mrb[0].mxu0
        %v433 = vpop.f32.mrb[0].mxu0
        %v434 = vadd.f32 0.0, %v433
        %v435 = vpop.f32.mrb[0].mxu0
        %436 = vdwg.mxu0
        %v437 = vadd.f32 %v343, %v431
        %v438 = vadd.f32 %v346, %v434
        %s439 = scalar_lea.vmem %s1, 96
        %v440 = vld [vmem:[%s439] sm:$0xf]
        %v441 = vld [vmem:[%s439 + $0x4] sm:$0xf]
        %v442 = vld [vmem:[%s439 + $0x8] sm:$0xf]
        %v443 = vld [vmem:[%s439 + $0xc] sm:$0xf]
        %v444 = vld [vmem:[%s439 + $0x10] sm:$0xf]
        %v445 = vld [vmem:[%s439 + $0x14] sm:$0xf]
        %v446 = vld [vmem:[%s439 + $0x18] sm:$0xf]
        %v447 = vld [vmem:[%s439 + $0x1c] sm:$0xf]
        %v448 = vshrl.u32 %v368, 16
        %v450 = vshll.u32 %v368, 16
        %v452 = vrot.slane %v450, 1
        %v453 = vor.u32 %v448, %v452
        %v462 = vunpack.c.l.b16 %v440
        %v463 = vunpack.c.l.b16 %v441
        %v464 = vunpack.c.l.b16 %v442
        %v465 = vunpack.c.l.b16 %v443
        %v466 = vunpack.c.l.b16 %v444
        %v467 = vunpack.c.l.b16 %v445
        %v468 = vunpack.c.l.b16 %v446
        %v469 = vunpack.c.l.b16 %v447
        %v470 = vpack.c.b16 %v463, %v462
        %v471 = vpack.c.b16 %v465, %v464
        %v472 = vpack.c.b16 %v467, %v466
        %v473 = vpack.c.b16 %v469, %v468
        %v479 = vsel %vm237, %v453, 0
        %481 = vmatprep.subr.bf16.mxu0 0
        %482 = vmatpush1.bf16.msra.mxu0 %v470
        %483 = vmatprep.subr.bf16.mxu0 0
        %484 = vmatpush1.bf16.msra.mxu0 %v471
        %485 = vmatprep.subr.bf16.mxu0 0
        %486 = vmatpush1.bf16.msra.mxu0 %v472
        %487 = vmatprep.subr.bf16.mxu0 0
        %488 = vmatpush1.bf16.msra.mxu0 %v473
        %489 = vmatprep.subr.bf16.mxu0 0
        %490 = vmatpush1.bf16.msra.mxu0 0
        %491 = vmatprep.subr.bf16.mxu0 0
        %492 = vmatpush1.bf16.msra.mxu0 0
        %493 = vmatprep.subr.bf16.mxu0 0
        %494 = vmatpush1.bf16.msra.mxu0 0
        %495 = vmatprep.subr.bf16.mxu0 0
        %496 = vmatpush1.bf16.msra.mxu0 0
        %497 = vmatprep.subr.bf16.mxu0 0
        %498 = vmatpush1.bf16.msra.mxu0 0
        %499 = vmatprep.subr.bf16.mxu0 0
        %500 = vmatpush1.bf16.msra.mxu0 0
        %501 = vmatprep.subr.bf16.mxu0 0
        %502 = vmatpush1.bf16.msra.mxu0 0
        %503 = vmatprep.subr.bf16.mxu0 0
        %504 = vmatpush1.bf16.msra.mxu0 0
        %505 = vmatprep.subr.bf16.mxu0 0
        %506 = vmatpush1.bf16.msra.mxu0 0
        %507 = vmatprep.subr.bf16.mxu0 0
        %508 = vmatpush1.bf16.msra.mxu0 0
        %509 = vmatprep.subr.bf16.mxu0 0
        %510 = vmatpush1.bf16.msra.mxu0 0
        %511 = vmatprep.subr.bf16.mxu0 0
        %512 = vmatpush1.bf16.msra.mxu0 0
        %513 = vmatprep.mubr.bf16.mxu0 0
        %514 = vmatmul.mubr.bf16.gmra.mrb[0].mxu0 %v479
        %v515 = vpop.f32.mrb[0].mxu0
        %v516 = vadd.f32 0.0, %v515
        %v517 = vpop.f32.mrb[0].mxu0
        %v518 = vpop.f32.mrb[0].mxu0
        %v519 = vadd.f32 0.0, %v518
        %v520 = vpop.f32.mrb[0].mxu0
        %521 = vdwg.mxu0
        %v522 = vadd.f32 %v437, %v516
        %v523 = vadd.f32 %v438, %v519
        %s524 = sadd.s32 %s178, 2
        %s525 = smul.u32 %s524, 2
        %s526 = smul.addr %s525, 4
        %s527 = scalar_lea.vmem %s165, %s526
        %v528 = vld [vmem:[%s527] sm:$0xf]
        %v529 = vld [vmem:[%s527 + $0x4] sm:$0x3]
        %s530 = scalar_lea.vmem %s1, 128
        %v531 = vld [vmem:[%s530] sm:$0xf]
        %v532 = vld [vmem:[%s530 + $0x4] sm:$0xf]
        %v533 = vld [vmem:[%s530 + $0x8] sm:$0xf]
        %v534 = vld [vmem:[%s530 + $0xc] sm:$0xf]
        %v535 = vld [vmem:[%s530 + $0x10] sm:$0xf]
        %v536 = vld [vmem:[%s530 + $0x14] sm:$0xf]
        %v537 = vld [vmem:[%s530 + $0x18] sm:$0xf]
        %v538 = vld [vmem:[%s530 + $0x1c] sm:$0xf]
        %v541 = vunpack.c.l.b16 %v528
        %v542 = vunpack.c.l.b16 %v529
        %v543 = vpack.c.b16 %v542, %v541
        %v552 = vunpack.c.l.b16 %v531
        %v553 = vunpack.c.l.b16 %v532
        %v554 = vunpack.c.l.b16 %v533
        %v555 = vunpack.c.l.b16 %v534
        %v556 = vunpack.c.l.b16 %v535
        %v557 = vunpack.c.l.b16 %v536
        %v558 = vunpack.c.l.b16 %v537
        %v559 = vunpack.c.l.b16 %v538
        %v560 = vpack.c.b16 %v553, %v552
        %v561 = vpack.c.b16 %v555, %v554
        %v562 = vpack.c.b16 %v557, %v556
        %v563 = vpack.c.b16 %v559, %v558
        %v569 = vsel %vm237, %v543, 0
        %571 = vmatprep.subr.bf16.mxu0 0
        %572 = vmatpush1.bf16.msra.mxu0 %v560
        %573 = vmatprep.subr.bf16.mxu0 0
        %574 = vmatpush1.bf16.msra.mxu0 %v561
        %575 = vmatprep.subr.bf16.mxu0 0
        %576 = vmatpush1.bf16.msra.mxu0 %v562
        %577 = vmatprep.subr.bf16.mxu0 0
        %578 = vmatpush1.bf16.msra.mxu0 %v563
        %579 = vmatprep.subr.bf16.mxu0 0
        %580 = vmatpush1.bf16.msra.mxu0 0
        %581 = vmatprep.subr.bf16.mxu0 0
        %582 = vmatpush1.bf16.msra.mxu0 0
        %583 = vmatprep.subr.bf16.mxu0 0
        %584 = vmatpush1.bf16.msra.mxu0 0
        %585 = vmatprep.subr.bf16.mxu0 0
        %586 = vmatpush1.bf16.msra.mxu0 0
        %587 = vmatprep.subr.bf16.mxu0 0
        %588 = vmatpush1.bf16.msra.mxu0 0
        %589 = vmatprep.subr.bf16.mxu0 0
        %590 = vmatpush1.bf16.msra.mxu0 0
        %591 = vmatprep.subr.bf16.mxu0 0
        %592 = vmatpush1.bf16.msra.mxu0 0
        %593 = vmatprep.subr.bf16.mxu0 0
        %594 = vmatpush1.bf16.msra.mxu0 0
        %595 = vmatprep.subr.bf16.mxu0 0
        %596 = vmatpush1.bf16.msra.mxu0 0
        %597 = vmatprep.subr.bf16.mxu0 0
        %598 = vmatpush1.bf16.msra.mxu0 0
        %599 = vmatprep.subr.bf16.mxu0 0
        %600 = vmatpush1.bf16.msra.mxu0 0
        %601 = vmatprep.subr.bf16.mxu0 0
        %602 = vmatpush1.bf16.msra.mxu0 0
        %603 = vmatprep.mubr.bf16.mxu0 0
        %604 = vmatmul.mubr.bf16.gmra.mrb[0].mxu0 %v569
        %v605 = vpop.f32.mrb[0].mxu0
        %v606 = vadd.f32 0.0, %v605
        %v607 = vpop.f32.mrb[0].mxu0
        %v608 = vpop.f32.mrb[0].mxu0
        %v609 = vadd.f32 0.0, %v608
        %v610 = vpop.f32.mrb[0].mxu0
        %611 = vdwg.mxu0
        %v612 = vadd.f32 %v522, %v606
        %v613 = vadd.f32 %v523, %v609
        %s614 = scalar_lea.vmem %s1, 160
        %v615 = vld [vmem:[%s614] sm:$0xf]
        %v616 = vld [vmem:[%s614 + $0x4] sm:$0xf]
        %v617 = vld [vmem:[%s614 + $0x8] sm:$0xf]
        %v618 = vld [vmem:[%s614 + $0xc] sm:$0xf]
        %v619 = vld [vmem:[%s614 + $0x10] sm:$0xf]
        %v620 = vld [vmem:[%s614 + $0x14] sm:$0xf]
        %v621 = vld [vmem:[%s614 + $0x18] sm:$0xf]
        %v622 = vld [vmem:[%s614 + $0x1c] sm:$0xf]
        %v623 = vshrl.u32 %v543, 16
        %v625 = vshll.u32 %v543, 16
        %v627 = vrot.slane %v625, 1
        %v628 = vor.u32 %v623, %v627
        %v637 = vunpack.c.l.b16 %v615
        %v638 = vunpack.c.l.b16 %v616
        %v639 = vunpack.c.l.b16 %v617
        %v640 = vunpack.c.l.b16 %v618
        %v641 = vunpack.c.l.b16 %v619
        %v642 = vunpack.c.l.b16 %v620
        %v643 = vunpack.c.l.b16 %v621
        %v644 = vunpack.c.l.b16 %v622
        %v645 = vpack.c.b16 %v638, %v637
        %v646 = vpack.c.b16 %v640, %v639
        %v647 = vpack.c.b16 %v642, %v641
        %v648 = vpack.c.b16 %v644, %v643
        %v654 = vsel %vm237, %v628, 0
        %656 = vmatprep.subr.bf16.mxu0 0
        %657 = vmatpush1.bf16.msra.mxu0 %v645
        %658 = vmatprep.subr.bf16.mxu0 0
        %659 = vmatpush1.bf16.msra.mxu0 %v646
        %660 = vmatprep.subr.bf16.mxu0 0
        %661 = vmatpush1.bf16.msra.mxu0 %v647
        %662 = vmatprep.subr.bf16.mxu0 0
        %663 = vmatpush1.bf16.msra.mxu0 %v648
        %664 = vmatprep.subr.bf16.mxu0 0
        %665 = vmatpush1.bf16.msra.mxu0 0
        %666 = vmatprep.subr.bf16.mxu0 0
        %667 = vmatpush1.bf16.msra.mxu0 0
        %668 = vmatprep.subr.bf16.mxu0 0
        %669 = vmatpush1.bf16.msra.mxu0 0
        %670 = vmatprep.subr.bf16.mxu0 0
        %671 = vmatpush1.bf16.msra.mxu0 0
        %672 = vmatprep.subr.bf16.mxu0 0
        %673 = vmatpush1.bf16.msra.mxu0 0
        %674 = vmatprep.subr.bf16.mxu0 0
        %675 = vmatpush1.bf16.msra.mxu0 0
        %676 = vmatprep.subr.bf16.mxu0 0
        %677 = vmatpush1.bf16.msra.mxu0 0
        %678 = vmatprep.subr.bf16.mxu0 0
        %679 = vmatpush1.bf16.msra.mxu0 0
        %680 = vmatprep.subr.bf16.mxu0 0
        %681 = vmatpush1.bf16.msra.mxu0 0
        %682 = vmatprep.subr.bf16.mxu0 0
        %683 = vmatpush1.bf16.msra.mxu0 0
        %684 = vmatprep.subr.bf16.mxu0 0
        %685 = vmatpush1.bf16.msra.mxu0 0
        %686 = vmatprep.subr.bf16.mxu0 0
        %687 = vmatpush1.bf16.msra.mxu0 0
        %688 = vmatprep.mubr.bf16.mxu0 0
        %689 = vmatmul.mubr.bf16.gmra.mrb[0].mxu0 %v654
        %v690 = vpop.f32.mrb[0].mxu0
        %v691 = vadd.f32 0.0, %v690
        %v692 = vpop.f32.mrb[0].mxu0
        %v693 = vpop.f32.mrb[0].mxu0
        %v694 = vadd.f32 0.0, %v693
        %v695 = vpop.f32.mrb[0].mxu0
        %696 = vdwg.mxu0
        %v697 = vadd.f32 %v612, %v691
        %v698 = vadd.f32 %v613, %v694
        %699 = vmatprep.subr.bf16.mxu0 0
        %700 = vmatpush1.bf16.msra.mxu0 %v229
        %701 = vmatprep.subr.bf16.mxu0 0
        %702 = vmatpush1.bf16.msra.mxu0 %v230
        %703 = vmatprep.subr.bf16.mxu0 0
        %704 = vmatpush1.bf16.msra.mxu0 %v231
        %705 = vmatprep.subr.bf16.mxu0 0
        %706 = vmatpush1.bf16.msra.mxu0 %v232
        %707 = vmatprep.subr.bf16.mxu0 0
        %708 = vmatpush1.bf16.msra.mxu0 0
        %709 = vmatprep.subr.bf16.mxu0 0
        %710 = vmatpush1.bf16.msra.mxu0 0
        %711 = vmatprep.subr.bf16.mxu0 0
        %712 = vmatpush1.bf16.msra.mxu0 0
        %713 = vmatprep.subr.bf16.mxu0 0
        %714 = vmatpush1.bf16.msra.mxu0 0
        %715 = vmatprep.subr.bf16.mxu0 0
        %716 = vmatpush1.bf16.msra.mxu0 0
        %717 = vmatprep.subr.bf16.mxu0 0
        %718 = vmatpush1.bf16.msra.mxu0 0
        %719 = vmatprep.subr.bf16.mxu0 0
        %720 = vmatpush1.bf16.msra.mxu0 0
        %721 = vmatprep.subr.bf16.mxu0 0
        %722 = vmatpush1.bf16.msra.mxu0 0
        %723 = vmatprep.subr.bf16.mxu0 0
        %724 = vmatpush1.bf16.msra.mxu0 0
        %725 = vmatprep.subr.bf16.mxu0 0
        %726 = vmatpush1.bf16.msra.mxu0 0
        %727 = vmatprep.subr.bf16.mxu0 0
        %728 = vmatpush1.bf16.msra.mxu0 0
        %729 = vmatprep.subr.bf16.mxu0 0
        %730 = vmatpush1.bf16.msra.mxu0 0
        %731 = vmatprep.mubr.bf16.mxu0 0
        %732 = vmatmul.mubr.bf16.gmra.mrb[0].mxu0 %v479
        %v733 = vpop.f32.mrb[0].mxu0
        %v734 = vadd.f32 0.0, %v733
        %v735 = vpop.f32.mrb[0].mxu0
        %v736 = vpop.f32.mrb[0].mxu0
        %v737 = vadd.f32 0.0, %v736
        %v738 = vpop.f32.mrb[0].mxu0
        %739 = vdwg.mxu0
        %740 = vmatprep.subr.bf16.mxu0 0
        %741 = vmatpush1.bf16.msra.mxu0 %v298
        %742 = vmatprep.subr.bf16.mxu0 0
        %743 = vmatpush1.bf16.msra.mxu0 %v299
        %744 = vmatprep.subr.bf16.mxu0 0
        %745 = vmatpush1.bf16.msra.mxu0 %v300
        %746 = vmatprep.subr.bf16.mxu0 0
        %747 = vmatpush1.bf16.msra.mxu0 %v301
        %748 = vmatprep.subr.bf16.mxu0 0
        %749 = vmatpush1.bf16.msra.mxu0 0
        %750 = vmatprep.subr.bf16.mxu0 0
        %751 = vmatpush1.bf16.msra.mxu0 0
        %752 = vmatprep.subr.bf16.mxu0 0
        %753 = vmatpush1.bf16.msra.mxu0 0
        %754 = vmatprep.subr.bf16.mxu0 0
        %755 = vmatpush1.bf16.msra.mxu0 0
        %756 = vmatprep.subr.bf16.mxu0 0
        %757 = vmatpush1.bf16.msra.mxu0 0
        %758 = vmatprep.subr.bf16.mxu0 0
        %759 = vmatpush1.bf16.msra.mxu0 0
        %760 = vmatprep.subr.bf16.mxu0 0
        %761 = vmatpush1.bf16.msra.mxu0 0
        %762 = vmatprep.subr.bf16.mxu0 0
        %763 = vmatpush1.bf16.msra.mxu0 0
        %764 = vmatprep.subr.bf16.mxu0 0
        %765 = vmatpush1.bf16.msra.mxu0 0
        %766 = vmatprep.subr.bf16.mxu0 0
        %767 = vmatpush1.bf16.msra.mxu0 0
        %768 = vmatprep.subr.bf16.mxu0 0
        %769 = vmatpush1.bf16.msra.mxu0 0
        %770 = vmatprep.subr.bf16.mxu0 0
        %771 = vmatpush1.bf16.msra.mxu0 0
        %772 = vmatprep.mubr.bf16.mxu0 0
        %773 = vmatmul.mubr.bf16.gmra.mrb[0].mxu0 %v394
        %v774 = vpop.f32.mrb[0].mxu0
        %v775 = vadd.f32 %v734, %v774
        %v776 = vpop.f32.mrb[0].mxu0
        %v777 = vpop.f32.mrb[0].mxu0
        %v778 = vadd.f32 %v737, %v777
        %v779 = vpop.f32.mrb[0].mxu0
        %780 = vdwg.mxu0
        %781 = vmatprep.subr.bf16.mxu0 0
        %782 = vmatpush1.bf16.msra.mxu0 %v385
        %783 = vmatprep.subr.bf16.mxu0 0
        %784 = vmatpush1.bf16.msra.mxu0 %v386
        %785 = vmatprep.subr.bf16.mxu0 0
        %786 = vmatpush1.bf16.msra.mxu0 %v387
        %787 = vmatprep.subr.bf16.mxu0 0
        %788 = vmatpush1.bf16.msra.mxu0 %v388
        %789 = vmatprep.subr.bf16.mxu0 0
        %790 = vmatpush1.bf16.msra.mxu0 0
        %791 = vmatprep.subr.bf16.mxu0 0
        %792 = vmatpush1.bf16.msra.mxu0 0
        %793 = vmatprep.subr.bf16.mxu0 0
        %794 = vmatpush1.bf16.msra.mxu0 0
        %795 = vmatprep.subr.bf16.mxu0 0
        %796 = vmatpush1.bf16.msra.mxu0 0
        %797 = vmatprep.subr.bf16.mxu0 0
        %798 = vmatpush1.bf16.msra.mxu0 0
        %799 = vmatprep.subr.bf16.mxu0 0
        %800 = vmatpush1.bf16.msra.mxu0 0
        %801 = vmatprep.subr.bf16.mxu0 0
        %802 = vmatpush1.bf16.msra.mxu0 0
        %803 = vmatprep.subr.bf16.mxu0 0
        %804 = vmatpush1.bf16.msra.mxu0 0
        %805 = vmatprep.subr.bf16.mxu0 0
        %806 = vmatpush1.bf16.msra.mxu0 0
        %807 = vmatprep.subr.bf16.mxu0 0
        %808 = vmatpush1.bf16.msra.mxu0 0
        %809 = vmatprep.subr.bf16.mxu0 0
        %810 = vmatpush1.bf16.msra.mxu0 0
        %811 = vmatprep.subr.bf16.mxu0 0
        %812 = vmatpush1.bf16.msra.mxu0 0
        %813 = vmatprep.mubr.bf16.mxu0 0
        %814 = vmatmul.mubr.bf16.gmra.mrb[0].mxu0 %v569
        %v815 = vpop.f32.mrb[0].mxu0
        %v816 = vadd.f32 0.0, %v815
        %v817 = vpop.f32.mrb[0].mxu0
        %v818 = vpop.f32.mrb[0].mxu0
        %v819 = vadd.f32 0.0, %v818
        %v820 = vpop.f32.mrb[0].mxu0
        %821 = vdwg.mxu0
        %v822 = vadd.f32 %v775, %v816
        %v823 = vadd.f32 %v778, %v819
        %824 = vmatprep.subr.bf16.mxu0 0
        %825 = vmatpush1.bf16.msra.mxu0 %v470
        %826 = vmatprep.subr.bf16.mxu0 0
        %827 = vmatpush1.bf16.msra.mxu0 %v471
        %828 = vmatprep.subr.bf16.mxu0 0
        %829 = vmatpush1.bf16.msra.mxu0 %v472
        %830 = vmatprep.subr.bf16.mxu0 0
        %831 = vmatpush1.bf16.msra.mxu0 %v473
        %832 = vmatprep.subr.bf16.mxu0 0
        %833 = vmatpush1.bf16.msra.mxu0 0
        %834 = vmatprep.subr.bf16.mxu0 0
        %835 = vmatpush1.bf16.msra.mxu0 0
        %836 = vmatprep.subr.bf16.mxu0 0
        %837 = vmatpush1.bf16.msra.mxu0 0
        %838 = vmatprep.subr.bf16.mxu0 0
        %839 = vmatpush1.bf16.msra.mxu0 0
        %840 = vmatprep.subr.bf16.mxu0 0
        %841 = vmatpush1.bf16.msra.mxu0 0
        %842 = vmatprep.subr.bf16.mxu0 0
        %843 = vmatpush1.bf16.msra.mxu0 0
        %844 = vmatprep.subr.bf16.mxu0 0
        %845 = vmatpush1.bf16.msra.mxu0 0
        %846 = vmatprep.subr.bf16.mxu0 0
        %847 = vmatpush1.bf16.msra.mxu0 0
        %848 = vmatprep.subr.bf16.mxu0 0
        %849 = vmatpush1.bf16.msra.mxu0 0
        %850 = vmatprep.subr.bf16.mxu0 0
        %851 = vmatpush1.bf16.msra.mxu0 0
        %852 = vmatprep.subr.bf16.mxu0 0
        %853 = vmatpush1.bf16.msra.mxu0 0
        %854 = vmatprep.subr.bf16.mxu0 0
        %855 = vmatpush1.bf16.msra.mxu0 0
        %856 = vmatprep.mubr.bf16.mxu0 0
        %857 = vmatmul.mubr.bf16.gmra.mrb[0].mxu0 %v654
        %v858 = vpop.f32.mrb[0].mxu0
        %v859 = vadd.f32 0.0, %v858
        %v860 = vpop.f32.mrb[0].mxu0
        %v861 = vpop.f32.mrb[0].mxu0
        %v862 = vadd.f32 0.0, %v861
        %v863 = vpop.f32.mrb[0].mxu0
        %864 = vdwg.mxu0
        %v865 = vadd.f32 %v822, %v859
        %v866 = vadd.f32 %v823, %v862
        %s867 = sadd.s32 %s178, 3
        %s868 = smul.u32 %s867, 2
        %s869 = smul.addr %s868, 4
        %s870 = scalar_lea.vmem %s165, %s869
        %v871 = vld [vmem:[%s870] sm:$0xf]
        %v872 = vld [vmem:[%s870 + $0x4] sm:$0x3]
        %v875 = vunpack.c.l.b16 %v871
        %v876 = vunpack.c.l.b16 %v872
        %v877 = vpack.c.b16 %v876, %v875
        %v879 = vsel %vm237, %v877, 0
        %881 = vmatprep.subr.bf16.mxu0 0
        %882 = vmatpush1.bf16.msra.mxu0 %v560
        %883 = vmatprep.subr.bf16.mxu0 0
        %884 = vmatpush1.bf16.msra.mxu0 %v561
        %885 = vmatprep.subr.bf16.mxu0 0
        %886 = vmatpush1.bf16.msra.mxu0 %v562
        %887 = vmatprep.subr.bf16.mxu0 0
        %888 = vmatpush1.bf16.msra.mxu0 %v563
        %889 = vmatprep.subr.bf16.mxu0 0
        %890 = vmatpush1.bf16.msra.mxu0 0
        %891 = vmatprep.subr.bf16.mxu0 0
        %892 = vmatpush1.bf16.msra.mxu0 0
        %893 = vmatprep.subr.bf16.mxu0 0
        %894 = vmatpush1.bf16.msra.mxu0 0
        %895 = vmatprep.subr.bf16.mxu0 0
        %896 = vmatpush1.bf16.msra.mxu0 0
        %897 = vmatprep.subr.bf16.mxu0 0
        %898 = vmatpush1.bf16.msra.mxu0 0
        %899 = vmatprep.subr.bf16.mxu0 0
        %900 = vmatpush1.bf16.msra.mxu0 0
        %901 = vmatprep.subr.bf16.mxu0 0
        %902 = vmatpush1.bf16.msra.mxu0 0
        %903 = vmatprep.subr.bf16.mxu0 0
        %904 = vmatpush1.bf16.msra.mxu0 0
        %905 = vmatprep.subr.bf16.mxu0 0
        %906 = vmatpush1.bf16.msra.mxu0 0
        %907 = vmatprep.subr.bf16.mxu0 0
        %908 = vmatpush1.bf16.msra.mxu0 0
        %909 = vmatprep.subr.bf16.mxu0 0
        %910 = vmatpush1.bf16.msra.mxu0 0
        %911 = vmatprep.subr.bf16.mxu0 0
        %912 = vmatpush1.bf16.msra.mxu0 0
        %913 = vmatprep.mubr.bf16.mxu0 0
        %914 = vmatmul.mubr.bf16.gmra.mrb[0].mxu0 %v879
        %v915 = vpop.f32.mrb[0].mxu0
        %v916 = vadd.f32 0.0, %v915
        %v917 = vpop.f32.mrb[0].mxu0
        %v918 = vpop.f32.mrb[0].mxu0
        %v919 = vadd.f32 0.0, %v918
        %v920 = vpop.f32.mrb[0].mxu0
        %921 = vdwg.mxu0
        %v922 = vadd.f32 %v865, %v916
        %v923 = vadd.f32 %v866, %v919
        %v924 = vshrl.u32 %v877, 16
        %v926 = vshll.u32 %v877, 16
        %v928 = vrot.slane %v926, 1
        %v929 = vor.u32 %v924, %v928
        %v931 = vsel %vm237, %v929, 0
        %933 = vmatprep.subr.bf16.mxu0 0
        %934 = vmatpush1.bf16.msra.mxu0 %v645
        %935 = vmatprep.subr.bf16.mxu0 0
        %936 = vmatpush1.bf16.msra.mxu0 %v646
        %937 = vmatprep.subr.bf16.mxu0 0
        %938 = vmatpush1.bf16.msra.mxu0 %v647
        %939 = vmatprep.subr.bf16.mxu0 0
        %940 = vmatpush1.bf16.msra.mxu0 %v648
        %941 = vmatprep.subr.bf16.mxu0 0
        %942 = vmatpush1.bf16.msra.mxu0 0
        %943 = vmatprep.subr.bf16.mxu0 0
        %944 = vmatpush1.bf16.msra.mxu0 0
        %945 = vmatprep.subr.bf16.mxu0 0
        %946 = vmatpush1.bf16.msra.mxu0 0
        %947 = vmatprep.subr.bf16.mxu0 0
        %948 = vmatpush1.bf16.msra.mxu0 0
        %949 = vmatprep.subr.bf16.mxu0 0
        %950 = vmatpush1.bf16.msra.mxu0 0
        %951 = vmatprep.subr.bf16.mxu0 0
        %952 = vmatpush1.bf16.msra.mxu0 0
        %953 = vmatprep.subr.bf16.mxu0 0
        %954 = vmatpush1.bf16.msra.mxu0 0
        %955 = vmatprep.subr.bf16.mxu0 0
        %956 = vmatpush1.bf16.msra.mxu0 0
        %957 = vmatprep.subr.bf16.mxu0 0
        %958 = vmatpush1.bf16.msra.mxu0 0
        %959 = vmatprep.subr.bf16.mxu0 0
        %960 = vmatpush1.bf16.msra.mxu0 0
        %961 = vmatprep.subr.bf16.mxu0 0
        %962 = vmatpush1.bf16.msra.mxu0 0
        %963 = vmatprep.subr.bf16.mxu0 0
        %964 = vmatpush1.bf16.msra.mxu0 0
        %965 = vmatprep.mubr.bf16.mxu0 0
        %966 = vmatmul.mubr.bf16.gmra.mrb[0].mxu0 %v931
        %v967 = vpop.f32.mrb[0].mxu0
        %v968 = vadd.f32 0.0, %v967
        %v969 = vpop.f32.mrb[0].mxu0
        %v970 = vpop.f32.mrb[0].mxu0
        %v971 = vadd.f32 0.0, %v970
        %v972 = vpop.f32.mrb[0].mxu0
        %973 = vdwg.mxu0
        %v974 = vadd.f32 %v922, %v968
        %v975 = vadd.f32 %v923, %v971
        %v976 = vmax.f32 %v697, %v974
        %v977 = vmax.f32 %v698, %v975
        %v978 = vld [vmem:[%s2] sm:$0x1]
        %v980 = vlaneseq
        %v981 = vshrl.u32 %v980, 7
        %v982 = vsub.s32 0, %v981
        %v983 = vrot.slane %v978, %v982
        %v985 = vadd.f32 %v976, %v983
        %v986 = vadd.f32 %v977, %v983
        %v987 = vmax.f32 %v985, 0.0
        %v988 = vmax.f32 %v986, 0.0
        %991 = vrot.lane.b32.xlu0 %v987, 64
        %v992 = vpop.permute.xlu0 %991
        %993 = vrot.lane.b32.xlu0 %v988, 64
        %v994 = vpop.permute.xlu0 %993
        %v997 = vmax.f32 %v987, %v992
        %v998 = vmax.f32 %v988, %v994
        %v999 = vpack.c.bf16 %v998, %v997
        %v1001 = vunpack.c.l.b16 %v999
        %v1002 = vunpack.c.h.b16 %v999
        %v1003 = vpack.c.b16 %v1001, %v1001
        %v1004 = vpack.c.b16 %v1002, %v1002
        %s1007 = smul.addr %s178, 4
        %s1008 = scalar_lea.vmem %s170, %s1007
        %vm1009 = vcmask 519168
        %1010 = vst.msk [vmem:[%s1008] sm:$0xf] %vm1009, %v1003
        %vm1011 = vcmask 517120
        %vm1012 = vsmask.f32 1280
        %vm1013 = vmand %vm1011, %vm1012
        %v1014 = vld [vmem:[%s1008 + $0x4] sm:$0x3]
        %v1015 = vsel %vm1013, %v1004, %v1014
        %1016 = vst [vmem:[%s1008 + $0x4] sm:$0x3] %v1015
      $region37: #{simple_cnn_forward.4} parent=31 // loop_footer
        %s177 = sadd.s32 1, %s173
      $region38: #{simple_cnn_forward.4} parent=31 // loop_footer_branch
        %172 = sbr.rel target = $region34
      $region39: #{simple_cnn_forward.4} parent=31 // loop_exit
        _
      %p1017 = scmp.lt.s32.totalorder %s14, 1
      %s1018 = scalar_select %p1017, %s14, 1
      %s1019 = smul.addr %s1018, 22
      %s1020 = smul.addr %s1019, 4
      %s1021 = scalar_lea.vmem %s3, %s1020
      // Predicated region
      $region40: #{simple_cnn_forward.4} parent=31 // pred_check
        %p1022 = pneg %p100
      $region41: #{simple_cnn_forward.4} parent=31 // pred_check_branch
        %1024 = sbr.rel (%p1022) target = $region43
      $region42: #{simple_cnn_forward.4} parent=31 // pred_region
        _
      $region43: #{simple_cnn_forward.4} parent=31 // pred_fallthru
        _
    $region32: #{simple_cnn_forward.4} parent=5 // pred_fallthru
      _
    %p1025 = scmp.le.s32.totalorder 2, %s9
    // Predicated region
    $region44: #{simple_cnn_forward.4} parent=5 // pred_check
      %p1026 = pneg %p1025
    $region45: #{simple_cnn_forward.4} parent=5 // pred_check_branch
      %1028 = sbr.rel (%p1026) target = $region47
    $region46: #{simple_cnn_forward.4} parent=5 // pred_region
      %s1029 = ssub.s32 %s9, 2
      // Predicated region
      $region48: #{simple_cnn_forward.4} parent=46 // pred_check
        %p1030 = pneg %p106
      $region49: #{simple_cnn_forward.4} parent=46 // pred_check_branch
        %1032 = sbr.rel (%p1030) target = $region51
      $region50: #{simple_cnn_forward.4} parent=46 // pred_region
        %p1033 = scmp.lt.s32.totalorder %s15, 1
        %s1034 = scalar_select %p1033, %s15, 1
        %s1035 = smul.addr %s1034, 22
        %s1036 = smul.addr %s1035, 4
        %s1037 = scalar_lea.vmem %s3, %s1036
      $region51: #{simple_cnn_forward.4} parent=46 // pred_fallthru
        _
    $region47: #{simple_cnn_forward.4} parent=5 // pred_fallthru
      _
  $region6: #{simple_cnn_forward.4} parent=0 // loop_footer
    %s13 = sadd.s32 1, %s9
  $region7: #{simple_cnn_forward.4} parent=0 // loop_footer_branch
    %8 = sbr.rel target = $region3
  $region8: #{simple_cnn_forward.4} parent=0 // loop_exit
    _

// kernel: simple_cnn_forward.5
$region0: #{simple_cnn_forward.5}
  #allocation0 [shape = 'u32[]', space=smem, size = 0x4, offset = 0x4, fixed_abs, tag = 'smem constant byte address 0x4 - core index']
  #allocation1 [shape = 'u32[144,128]{1,0:T(1,128)}', space=vmem, size = 0x12000, scoped, tag = 'internal scratch']
  #allocation2 [shape = 'f32[2,128]{1,0:T(2,128)}', space=vmem, size = 0x400, scoped, tag = 'scratch operand']
  %s0 = inlined_call_operand.vmem [shape: bf16[2,8192], index: 0, kind: input, shape index: {}]
  %s1 = inlined_call_operand.vmem [shape: bf16[8192,128], index: 1, kind: input, shape index: {}]
  %s2 = inlined_call_operand.vmem [shape: f32[1,128], index: 2, kind: input, shape index: {}]
  %s3 = inlined_call_operand.vmem [shape: bf16[128,7], index: 3, kind: input, shape index: {}]
  %s4 = inlined_call_operand.vmem [shape: f32[1,7], index: 4, kind: input, shape index: {}]
  %s5 = inlined_call_operand.hbm [shape: f32[2,7], index: 5, kind: output, shape index: {}]
  %s6 = sld [smem:[#allocation0]]
  $region61: #{simple_cnn_forward.5} parent=0
    _
  %s8 = ssub.s32 1, %s6
  %s9 = scalar_select 0, %s8, %s6
  $region1: #{simple_cnn_forward.5} parent=0
    #allocation3 [shape = 'u8[1024]{0}', space=vmem, size = 0x400, scoped, tag = 'output window, operand 0, single buffered']
    #allocation4 [shape = 's32[2]{0}', space=sflag, size = 0x8, scoped, tag = 'scoped memory for simple_cnn_forward.5']
    %10 = vsyncpa [#allocation4], 0
    loop: start=0, step=1, limit=6
    $region2: #{simple_cnn_forward.5} parent=1 // loop_pre_header
      _
    $region3: #{simple_cnn_forward.5} parent=1 // loop_header
      %s12 = sphi 0, %s16
      %p13 = scmp.ge.s32.totalorder %s12, 6
      %s19 = sphi 0, %s31
      %s20 = sphi 0, %s27
      %s21 = sphi 0, %s19
      %s22 = sphi 0, %s20
      %s23 = sphi 0, %s21
      %s24 = sphi 0, %s22
      %s36 = sphi 0, %s38
      %s39 = sphi 0, %s36
      %s40 = sphi 0, %s39
      %s56 = sphi 0, %s40
      %s62 = sphi 0, %s64
      %s65 = sphi 0, %s62
      %s66 = sphi 0, %s65
      %s82 = sphi 0, %s66
      %s86 = sphi 0, %s86
      %s88 = sphi 0, %s86
      %s89 = sphi 0, %s88
      %s103 = sphi 0, %s89
      %s107 = sphi 0, %s107
      %s109 = sphi 0, %s107
      %s110 = sphi 0, %s109
      %s124 = sphi 0, %s110
      %s128 = sphi 0, %s128
      %s130 = sphi 0, %s128
      %s131 = sphi 0, %s130
      %s145 = sphi 0, %s131
      %s151 = sphi 0, %s153
      %s154 = sphi 0, %s151
      %s155 = sphi 0, %s154
      %s171 = sphi 0, %s155
    $region4: #{simple_cnn_forward.5} parent=1 // loop_header_branch
      %15 = sbr.rel (%p13) target = $region8
    $region5: #{simple_cnn_forward.5} parent=1 // loop_body
      %s17 = ssub.s32 %s12, 1
      %s18 = ssub.s32 %s12, 2
      %s25 = sadd.s32 1, %s20
      %p26 = scmp.ge.s32.totalorder %s25, 4
      %s27 = scalar_select %p26, 0, %s25
      %s28 = sadd.s32 1, %s19
      %s29 = scalar_select %p26, %s28, %s19
      %p30 = scmp.ge.s32.totalorder %s29, 1
      %s31 = scalar_select %p30, 0, %s29
      %s32 = ssub.s32 %s19, %s31
      %s33 = ssub.s32 %s20, %s27
      %s34 = sor.u32 %s32, %s33
      %p35 = scmp.eq.s32.totalorder %s34, 0
      %s37 = sadd.s32 %s36, 1
      %s38 = scalar_select %p35, %s36, %s37
      %p41 = pneg %p35
      %p42 = scmp.eq.s32.totalorder %s12, 3
      %p43 = por %p41, %p42
      %p44 = scmp.ne.s32.totalorder %s36, %s39
      %p45 = scmp.eq.s32.totalorder %s12, 0
      %p46 = por %p44, %p45
      %p47 = scmp.ne.s32.totalorder %s36, %s39
      %p48 = scmp.eq.s32.totalorder %s17, 3
      %p49 = por %p47, %p48
      %p50 = scmp.ne.s32.totalorder %s39, %s40
      %p51 = scmp.eq.s32.totalorder %s17, 0
      %p52 = por %p50, %p51
      %p53 = scmp.ne.s32.totalorder %s39, %s40
      %p54 = scmp.eq.s32.totalorder %s18, 3
      %p55 = por %p53, %p54
      %p57 = scmp.ne.s32.totalorder %s40, %s56
      %p58 = scmp.eq.s32.totalorder %s18, 0
      %p59 = por %p57, %p58
      %s60 = ssub.s32 %s20, %s27
      %p61 = scmp.eq.s32.totalorder %s60, 0
      %s63 = sadd.s32 %s62, 1
      %s64 = scalar_select %p61, %s62, %s63
      %p67 = pneg %p61
      %p68 = scmp.eq.s32.totalorder %s12, 3
      %p69 = por %p67, %p68
      %p70 = scmp.ne.s32.totalorder %s62, %s65
      %p71 = scmp.eq.s32.totalorder %s12, 0
      %p72 = por %p70, %p71
      %p73 = scmp.ne.s32.totalorder %s62, %s65
      %p74 = scmp.eq.s32.totalorder %s17, 3
      %p75 = por %p73, %p74
      %p76 = scmp.ne.s32.totalorder %s65, %s66
      %p77 = scmp.eq.s32.totalorder %s17, 0
      %p78 = por %p76, %p77
      %p79 = scmp.ne.s32.totalorder %s65, %s66
      %p80 = scmp.eq.s32.totalorder %s18, 3
      %p81 = por %p79, %p80
      %p83 = scmp.ne.s32.totalorder %s66, %s82
      %p84 = scmp.eq.s32.totalorder %s18, 0
      %p85 = por %p83, %p84
      %s87 = sadd.s32 %s86, 1
      %p90 = scmp.eq.s32.totalorder %s12, 3
      %p91 = scmp.ne.s32.totalorder %s86, %s88
      %p92 = scmp.eq.s32.totalorder %s12, 0
      %p93 = por %p91, %p92
      %p94 = scmp.ne.s32.totalorder %s86, %s88
      %p95 = scmp.eq.s32.totalorder %s17, 3
      %p96 = por %p94, %p95
      %p97 = scmp.ne.s32.totalorder %s88, %s89
      %p98 = scmp.eq.s32.totalorder %s17, 0
      %p99 = por %p97, %p98
      %p100 = scmp.ne.s32.totalorder %s88, %s89
      %p101 = scmp.eq.s32.totalorder %s18, 3
      %p102 = por %p100, %p101
      %p104 = scmp.ne.s32.totalorder %s89, %s103
      %p105 = scmp.eq.s32.totalorder %s18, 0
      %p106 = por %p104, %p105
      %s108 = sadd.s32 %s107, 1
      %p111 = scmp.eq.s32.totalorder %s12, 3
      %p112 = scmp.ne.s32.totalorder %s107, %s109
      %p113 = scmp.eq.s32.totalorder %s12, 0
      %p114 = por %p112, %p113
      %p115 = scmp.ne.s32.totalorder %s107, %s109
      %p116 = scmp.eq.s32.totalorder %s17, 3
      %p117 = por %p115, %p116
      %p118 = scmp.ne.s32.totalorder %s109, %s110
      %p119 = scmp.eq.s32.totalorder %s17, 0
      %p120 = por %p118, %p119
      %p121 = scmp.ne.s32.totalorder %s109, %s110
      %p122 = scmp.eq.s32.totalorder %s18, 3
      %p123 = por %p121, %p122
      %p125 = scmp.ne.s32.totalorder %s110, %s124
      %p126 = scmp.eq.s32.totalorder %s18, 0
      %p127 = por %p125, %p126
      %s129 = sadd.s32 %s128, 1
      %p132 = scmp.eq.s32.totalorder %s12, 3
      %p133 = scmp.ne.s32.totalorder %s128, %s130
      %p134 = scmp.eq.s32.totalorder %s12, 0
      %p135 = por %p133, %p134
      %p136 = scmp.ne.s32.totalorder %s128, %s130
      %p137 = scmp.eq.s32.totalorder %s17, 3
      %p138 = por %p136, %p137
      %p139 = scmp.ne.s32.totalorder %s130, %s131
      %p140 = scmp.eq.s32.totalorder %s17, 0
      %p141 = por %p139, %p140
      %p142 = scmp.ne.s32.totalorder %s130, %s131
      %p143 = scmp.eq.s32.totalorder %s18, 3
      %p144 = por %p142, %p143
      %p146 = scmp.ne.s32.totalorder %s131, %s145
      %p147 = scmp.eq.s32.totalorder %s18, 0
      %p148 = por %p146, %p147
      %s149 = ssub.s32 %s19, %s31
      %p150 = scmp.eq.s32.totalorder %s149, 0
      %s152 = sadd.s32 %s151, 1
      %s153 = scalar_select %p150, %s151, %s152
      %p156 = pneg %p150
      %p157 = scmp.eq.s32.totalorder %s12, 3
      %p158 = por %p156, %p157
      %p159 = scmp.ne.s32.totalorder %s151, %s154
      %p160 = scmp.eq.s32.totalorder %s12, 0
      %p161 = por %p159, %p160
      %p162 = scmp.ne.s32.totalorder %s151, %s154
      %p163 = scmp.eq.s32.totalorder %s17, 3
      %p164 = por %p162, %p163
      %p165 = scmp.ne.s32.totalorder %s154, %s155
      %p166 = scmp.eq.s32.totalorder %s17, 0
      %p167 = por %p165, %p166
      %p168 = scmp.ne.s32.totalorder %s154, %s155
      %p169 = scmp.eq.s32.totalorder %s18, 3
      %p170 = por %p168, %p169
      %p172 = scmp.ne.s32.totalorder %s155, %s171
      %p173 = scmp.eq.s32.totalorder %s18, 0
      %p174 = por %p172, %p173
      %p175 = scmp.le.s32.totalorder 1, %s12
      %p176 = scmp.lt.s32.totalorder %s12, 5
      %p177 = pnand %p175, %p176
      %p178 = pneg %p177
      // Predicated region
      $region9: #{simple_cnn_forward.5} parent=5 // pred_check
        _
      $region10: #{simple_cnn_forward.5} parent=5 // pred_check_branch
        %180 = sbr.rel (%p177) target = $region12
      $region11: #{simple_cnn_forward.5} parent=5 // pred_region
        %s181 = ssub.s32 %s12, 1
        // Predicated region
        $region13: #{simple_cnn_forward.5} parent=11 // pred_check
          %p182 = pneg %p99
        $region14: #{simple_cnn_forward.5} parent=11 // pred_check_branch
          %184 = sbr.rel (%p182) target = $region16
        $region15: #{simple_cnn_forward.5} parent=11 // pred_region
          _
        $region16: #{simple_cnn_forward.5} parent=11 // pred_fallthru
          _
        // Predicated region
        $region17: #{simple_cnn_forward.5} parent=11 // pred_check
          %p185 = pneg %p120
        $region18: #{simple_cnn_forward.5} parent=11 // pred_check_branch
          %187 = sbr.rel (%p185) target = $region20
        $region19: #{simple_cnn_forward.5} parent=11 // pred_region
          _
        $region20: #{simple_cnn_forward.5} parent=11 // pred_fallthru
          _
        // Predicated region
        $region21: #{simple_cnn_forward.5} parent=11 // pred_check
          %p188 = pneg %p141
        $region22: #{simple_cnn_forward.5} parent=11 // pred_check_branch
          %190 = sbr.rel (%p188) target = $region24
        $region23: #{simple_cnn_forward.5} parent=11 // pred_region
          _
        $region24: #{simple_cnn_forward.5} parent=11 // pred_fallthru
          _
      $region12: #{simple_cnn_forward.5} parent=5 // pred_fallthru
        _
      %p191 = scmp.lt.s32.totalorder %s12, 4
      // Predicated region
      $region25: #{simple_cnn_forward.5} parent=5 // pred_check
        %p192 = pneg %p191
      $region26: #{simple_cnn_forward.5} parent=5 // pred_check_branch
        %194 = sbr.rel (%p192) target = $region28
      $region27: #{simple_cnn_forward.5} parent=5 // pred_region
        // Predicated region
        $region29: #{simple_cnn_forward.5} parent=27 // pred_check
          %p195 = pneg %p46
        $region30: #{simple_cnn_forward.5} parent=27 // pred_check_branch
          %197 = sbr.rel (%p195) target = $region32
        $region31: #{simple_cnn_forward.5} parent=27 // pred_region
          %s198 = smul.u32 16, %s20
          %p199 = scmp.lt.s32.totalorder %s19, 0
          %s200 = scalar_select %p199, %s19, 0
          %p201 = scmp.lt.s32.totalorder %s198, 63
          %s202 = scalar_select %p201, %s198, 63
          %s203 = smul.addr %s200, 64
          %s204 = sadd.s32 %s202, %s203
          %s205 = scalar_lea.vmem %s0, %s204
          %s206 = smul.u32 16, %s20
        $region32: #{simple_cnn_forward.5} parent=27 // pred_fallthru
          _
        // Predicated region
        $region33: #{simple_cnn_forward.5} parent=27 // pred_check
          %p207 = pneg %p72
        $region34: #{simple_cnn_forward.5} parent=27 // pred_check_branch
          %209 = sbr.rel (%p207) target = $region36
        $region35: #{simple_cnn_forward.5} parent=27 // pred_region
          %s210 = smul.u32 256, %s20
          %p211 = scmp.lt.s32.totalorder %s210, 1023
          %s212 = scalar_select %p211, %s210, 1023
          %s213 = smul.addr %s212, 4
          %s214 = scalar_lea.vmem %s1, %s213
          %s215 = smul.u32 256, %s20
        $region36: #{simple_cnn_forward.5} parent=27 // pred_fallthru
          _
      $region28: #{simple_cnn_forward.5} parent=5 // pred_fallthru
        _
      %p216 = scmp.le.s32.totalorder 1, %s12
      %p217 = scmp.lt.s32.totalorder %s12, 5
      %p218 = pnand %p216, %p217
      %p219 = pneg %p218
      // Predicated region
      $region37: #{simple_cnn_forward.5} parent=5 // pred_check
        _
      $region38: #{simple_cnn_forward.5} parent=5 // pred_check_branch
        %221 = sbr.rel (%p218) target = $region40
      $region39: #{simple_cnn_forward.5} parent=5 // pred_region
        %s222 = ssub.s32 %s12, 1
        %s223 = smul.u32 16, %s22
        %p224 = scmp.lt.s32.totalorder %s21, 0
        %s225 = scalar_select %p224, %s21, 0
        %p226 = scmp.lt.s32.totalorder %s223, 63
        %s227 = scalar_select %p226, %s223, 63
        %s228 = smul.addr %s225, 64
        %s229 = sadd.s32 %s227, %s228
        %s230 = scalar_lea.vmem %s0, %s229
        %p231 = pneg %p52
        %p232 = pneg %p49
        %s233 = smul.u32 256, %s22
        %p234 = scmp.lt.s32.totalorder %s233, 1023
        %s235 = scalar_select %p234, %s233, 1023
        %s236 = smul.addr %s235, 4
        %s237 = scalar_lea.vmem %s1, %s236
        %p238 = pneg %p78
        %p239 = pneg %p75
        %p240 = pneg %p99
        %p241 = pneg %p96
        %p242 = pneg %p120
        %p243 = pneg %p117
        %p244 = pneg %p141
        %p245 = pneg %p138
        %p246 = pneg %p167
        %p247 = pneg %p164
        %s248 = smul.u32 16, %s22
        %p249 = scmp.lt.s32.totalorder %s21, 0
        %s250 = scalar_select %p249, %s21, 0
        %p251 = scmp.lt.s32.totalorder %s248, 63
        %s252 = scalar_select %p251, %s248, 63
        %s253 = smul.addr %s250, 64
        %s254 = sadd.s32 %s252, %s253
        %s255 = scalar_lea.vmem %s0, %s254
        %s256 = smul.u32 16, %s22
        %s257 = smul.u32 256, %s22
        %p258 = scmp.lt.s32.totalorder %s257, 1023
        %s259 = scalar_select %p258, %s257, 1023
        %s260 = smul.addr %s259, 4
        %s261 = scalar_lea.vmem %s1, %s260
        %s262 = smul.u32 256, %s22
        %p264 = scmp.eq.s32.totalorder %s22, 0
        // Predicated region
        $region41: #{simple_cnn_forward.5} parent=39 // pred_check
          %p265 = pneg %p264
        $region42: #{simple_cnn_forward.5} parent=39 // pred_check_branch
          %267 = sbr.rel (%p265) target = $region44
        $region43: #{simple_cnn_forward.5} parent=39 // pred_region
          %268 = vst [vmem:[#allocation2] sm:$0x3] 0.0
        $region44: #{simple_cnn_forward.5} parent=39 // pred_fallthru
          _
        %v269 = vld [vmem:[#allocation2] sm:$0x3]
        %v270 = vld [vmem:[%s255] sm:$0xff]
        %v271 = vld [vmem:[%s255 + $0x8] sm:$0xff]
        %v272 = vld [vmem:[%s261] sm:$0xf]
        %v273 = vld [vmem:[%s261 + $0x4] sm:$0xf]
        %v274 = vld [vmem:[%s261 + $0x8] sm:$0xf]
        %v275 = vld [vmem:[%s261 + $0xc] sm:$0xf]
        %v276 = vld [vmem:[%s261 + $0x10] sm:$0xf]
        %v277 = vld [vmem:[%s261 + $0x14] sm:$0xf]
        %v278 = vld [vmem:[%s261 + $0x18] sm:$0xf]
        %v279 = vld [vmem:[%s261 + $0x1c] sm:$0xf]
        %v280 = vld [vmem:[%s261 + $0x20] sm:$0xf]
        %v281 = vld [vmem:[%s261 + $0x24] sm:$0xf]
        %v282 = vld [vmem:[%s261 + $0x28] sm:$0xf]
        %v283 = vld [vmem:[%s261 + $0x2c] sm:$0xf]
        %v284 = vld [vmem:[%s261 + $0x30] sm:$0xf]
        %v285 = vld [vmem:[%s261 + $0x34] sm:$0xf]
        %v286 = vld [vmem:[%s261 + $0x38] sm:$0xf]
        %v287 = vld [vmem:[%s261 + $0x3c] sm:$0xf]
        %v288 = vld [vmem:[%s261 + $0x40] sm:$0xf]
        %v289 = vld [vmem:[%s261 + $0x44] sm:$0xf]
        %v290 = vld [vmem:[%s261 + $0x48] sm:$0xf]
        %v291 = vld [vmem:[%s261 + $0x4c] sm:$0xf]
        %v292 = vld [vmem:[%s261 + $0x50] sm:$0xf]
        %v293 = vld [vmem:[%s261 + $0x54] sm:$0xf]
        %v294 = vld [vmem:[%s261 + $0x58] sm:$0xf]
        %v295 = vld [vmem:[%s261 + $0x5c] sm:$0xf]
        %v296 = vld [vmem:[%s261 + $0x60] sm:$0xf]
        %v297 = vld [vmem:[%s261 + $0x64] sm:$0xf]
        %v298 = vld [vmem:[%s261 + $0x68] sm:$0xf]
        %v299 = vld [vmem:[%s261 + $0x6c] sm:$0xf]
        %v300 = vld [vmem:[%s261 + $0x70] sm:$0xf]
        %v301 = vld [vmem:[%s261 + $0x74] sm:$0xf]
        %v302 = vld [vmem:[%s261 + $0x78] sm:$0xf]
        %v303 = vld [vmem:[%s261 + $0x7c] sm:$0xf]
        %v304 = vld [vmem:[%s261 + $0x80] sm:$0xf]
        %v305 = vld [vmem:[%s261 + $0x84] sm:$0xf]
        %v306 = vld [vmem:[%s261 + $0x88] sm:$0xf]
        %v307 = vld [vmem:[%s261 + $0x8c] sm:$0xf]
        %v308 = vld [vmem:[%s261 + $0x90] sm:$0xf]
        %v309 = vld [vmem:[%s261 + $0x94] sm:$0xf]
        %v310 = vld [vmem:[%s261 + $0x98] sm:$0xf]
        %v311 = vld [vmem:[%s261 + $0x9c] sm:$0xf]
        %v312 = vld [vmem:[%s261 + $0xa0] sm:$0xf]
        %v313 = vld [vmem:[%s261 + $0xa4] sm:$0xf]
        %v314 = vld [vmem:[%s261 + $0xa8] sm:$0xf]
        %v315 = vld [vmem:[%s261 + $0xac] sm:$0xf]
        %v316 = vld [vmem:[%s261 + $0xb0] sm:$0xf]
        %v317 = vld [vmem:[%s261 + $0xb4] sm:$0xf]
        %v318 = vld [vmem:[%s261 + $0xb8] sm:$0xf]
        %v319 = vld [vmem:[%s261 + $0xbc] sm:$0xf]
        %v320 = vld [vmem:[%s261 + $0xc0] sm:$0xf]
        %v321 = vld [vmem:[%s261 + $0xc4] sm:$0xf]
        %v322 = vld [vmem:[%s261 + $0xc8] sm:$0xf]
        %v323 = vld [vmem:[%s261 + $0xcc] sm:$0xf]
        %v324 = vld [vmem:[%s261 + $0xd0] sm:$0xf]
        %v325 = vld [vmem:[%s261 + $0xd4] sm:$0xf]
        %v326 = vld [vmem:[%s261 + $0xd8] sm:$0xf]
        %v327 = vld [vmem:[%s261 + $0xdc] sm:$0xf]
        %v328 = vld [vmem:[%s261 + $0xe0] sm:$0xf]
        %v329 = vld [vmem:[%s261 + $0xe4] sm:$0xf]
        %v330 = vld [vmem:[%s261 + $0xe8] sm:$0xf]
        %v331 = vld [vmem:[%s261 + $0xec] sm:$0xf]
        %v332 = vld [vmem:[%s261 + $0xf0] sm:$0xf]
        %v333 = vld [vmem:[%s261 + $0xf4] sm:$0xf]
        %v334 = vld [vmem:[%s261 + $0xf8] sm:$0xf]
        %v335 = vld [vmem:[%s261 + $0xfc] sm:$0xf]
        %v336 = vld [vmem:[%s261 + $0x100] sm:$0xf]
        %v337 = vld [vmem:[%s261 + $0x104] sm:$0xf]
        %v338 = vld [vmem:[%s261 + $0x108] sm:$0xf]
        %v339 = vld [vmem:[%s261 + $0x10c] sm:$0xf]
        %v340 = vld [vmem:[%s261 + $0x110] sm:$0xf]
        %v341 = vld [vmem:[%s261 + $0x114] sm:$0xf]
        %v342 = vld [vmem:[%s261 + $0x118] sm:$0xf]
        %v343 = vld [vmem:[%s261 + $0x11c] sm:$0xf]
        %v344 = vld [vmem:[%s261 + $0x120] sm:$0xf]
        %v345 = vld [vmem:[%s261 + $0x124] sm:$0xf]
        %v346 = vld [vmem:[%s261 + $0x128] sm:$0xf]
        %v347 = vld [vmem:[%s261 + $0x12c] sm:$0xf]
        %v348 = vld [vmem:[%s261 + $0x130] sm:$0xf]
        %v349 = vld [vmem:[%s261 + $0x134] sm:$0xf]
        %v350 = vld [vmem:[%s261 + $0x138] sm:$0xf]
        %v351 = vld [vmem:[%s261 + $0x13c] sm:$0xf]
        %v352 = vld [vmem:[%s261 + $0x140] sm:$0xf]
        %v353 = vld [vmem:[%s261 + $0x144] sm:$0xf]
        %v354 = vld [vmem:[%s261 + $0x148] sm:$0xf]
        %v355 = vld [vmem:[%s261 + $0x14c] sm:$0xf]
        %v356 = vld [vmem:[%s261 + $0x150] sm:$0xf]
        %v357 = vld [vmem:[%s261 + $0x154] sm:$0xf]
        %v358 = vld [vmem:[%s261 + $0x158] sm:$0xf]
        %v359 = vld [vmem:[%s261 + $0x15c] sm:$0xf]
        %v360 = vld [vmem:[%s261 + $0x160] sm:$0xf]
        %v361 = vld [vmem:[%s261 + $0x164] sm:$0xf]
        %v362 = vld [vmem:[%s261 + $0x168] sm:$0xf]
        %v363 = vld [vmem:[%s261 + $0x16c] sm:$0xf]
        %v364 = vld [vmem:[%s261 + $0x170] sm:$0xf]
        %v365 = vld [vmem:[%s261 + $0x174] sm:$0xf]
        %v366 = vld [vmem:[%s261 + $0x178] sm:$0xf]
        %v367 = vld [vmem:[%s261 + $0x17c] sm:$0xf]
        %v368 = vld [vmem:[%s261 + $0x180] sm:$0xf]
        %v369 = vld [vmem:[%s261 + $0x184] sm:$0xf]
        %v370 = vld [vmem:[%s261 + $0x188] sm:$0xf]
        %v371 = vld [vmem:[%s261 + $0x18c] sm:$0xf]
        %v372 = vld [vmem:[%s261 + $0x190] sm:$0xf]
        %v373 = vld [vmem:[%s261 + $0x194] sm:$0xf]
        %v374 = vld [vmem:[%s261 + $0x198] sm:$0xf]
        %v375 = vld [vmem:[%s261 + $0x19c] sm:$0xf]
        %v376 = vld [vmem:[%s261 + $0x1a0] sm:$0xf]
        %v377 = vld [vmem:[%s261 + $0x1a4] sm:$0xf]
        %v378 = vld [vmem:[%s261 + $0x1a8] sm:$0xf]
        %v379 = vld [vmem:[%s261 + $0x1ac] sm:$0xf]
        %v380 = vld [vmem:[%s261 + $0x1b0] sm:$0xf]
        %v381 = vld [vmem:[%s261 + $0x1b4] sm:$0xf]
        %v382 = vld [vmem:[%s261 + $0x1b8] sm:$0xf]
        %v383 = vld [vmem:[%s261 + $0x1bc] sm:$0xf]
        %v384 = vld [vmem:[%s261 + $0x1c0] sm:$0xf]
        %v385 = vld [vmem:[%s261 + $0x1c4] sm:$0xf]
        %v386 = vld [vmem:[%s261 + $0x1c8] sm:$0xf]
        %v387 = vld [vmem:[%s261 + $0x1cc] sm:$0xf]
        %v388 = vld [vmem:[%s261 + $0x1d0] sm:$0xf]
        %v389 = vld [vmem:[%s261 + $0x1d4] sm:$0xf]
        %v390 = vld [vmem:[%s261 + $0x1d8] sm:$0xf]
        %v391 = vld [vmem:[%s261 + $0x1dc] sm:$0xf]
        %v392 = vld [vmem:[%s261 + $0x1e0] sm:$0xf]
        %v393 = vld [vmem:[%s261 + $0x1e4] sm:$0xf]
        %v394 = vld [vmem:[%s261 + $0x1e8] sm:$0xf]
        %v395 = vld [vmem:[%s261 + $0x1ec] sm:$0xf]
        %v396 = vld [vmem:[%s261 + $0x1f0] sm:$0xf]
        %v397 = vld [vmem:[%s261 + $0x1f4] sm:$0xf]
        %v398 = vld [vmem:[%s261 + $0x1f8] sm:$0xf]
        %v399 = vld [vmem:[%s261 + $0x1fc] sm:$0xf]
        %v400 = vld [vmem:[%s261 + $0x200] sm:$0xf]
        %v401 = vld [vmem:[%s261 + $0x204] sm:$0xf]
        %v402 = vld [vmem:[%s261 + $0x208] sm:$0xf]
        %v403 = vld [vmem:[%s261 + $0x20c] sm:$0xf]
        %v404 = vld [vmem:[%s261 + $0x210] sm:$0xf]
        %v405 = vld [vmem:[%s261 + $0x214] sm:$0xf]
        %v406 = vld [vmem:[%s261 + $0x218] sm:$0xf]
        %v407 = vld [vmem:[%s261 + $0x21c] sm:$0xf]
        %v408 = vld [vmem:[%s261 + $0x220] sm:$0xf]
        %v409 = vld [vmem:[%s261 + $0x224] sm:$0xf]
        %v410 = vld [vmem:[%s261 + $0x228] sm:$0xf]
        %v411 = vld [vmem:[%s261 + $0x22c] sm:$0xf]
        %v412 = vld [vmem:[%s261 + $0x230] sm:$0xf]
        %v413 = vld [vmem:[%s261 + $0x234] sm:$0xf]
        %v414 = vld [vmem:[%s261 + $0x238] sm:$0xf]
        %v415 = vld [vmem:[%s261 + $0x23c] sm:$0xf]
        %v416 = vld [vmem:[%s261 + $0x240] sm:$0xf]
        %v417 = vld [vmem:[%s261 + $0x244] sm:$0xf]
        %v418 = vld [vmem:[%s261 + $0x248] sm:$0xf]
        %v419 = vld [vmem:[%s261 + $0x24c] sm:$0xf]
        %v420 = vld [vmem:[%s261 + $0x250] sm:$0xf]
        %v421 = vld [vmem:[%s261 + $0x254] sm:$0xf]
        %v422 = vld [vmem:[%s261 + $0x258] sm:$0xf]
        %v423 = vld [vmem:[%s261 + $0x25c] sm:$0xf]
        %v424 = vld [vmem:[%s261 + $0x260] sm:$0xf]
        %v425 = vld [vmem:[%s261 + $0x264] sm:$0xf]
        %v426 = vld [vmem:[%s261 + $0x268] sm:$0xf]
        %v427 = vld [vmem:[%s261 + $0x26c] sm:$0xf]
        %v428 = vld [vmem:[%s261 + $0x270] sm:$0xf]
        %v429 = vld [vmem:[%s261 + $0x274] sm:$0xf]
        %v430 = vld [vmem:[%s261 + $0x278] sm:$0xf]
        %v431 = vld [vmem:[%s261 + $0x27c] sm:$0xf]
        %v432 = vld [vmem:[%s261 + $0x280] sm:$0xf]
        %v433 = vld [vmem:[%s261 + $0x284] sm:$0xf]
        %v434 = vld [vmem:[%s261 + $0x288] sm:$0xf]
        %v435 = vld [vmem:[%s261 + $0x28c] sm:$0xf]
        %v436 = vld [vmem:[%s261 + $0x290] sm:$0xf]
        %v437 = vld [vmem:[%s261 + $0x294] sm:$0xf]
        %v438 = vld [vmem:[%s261 + $0x298] sm:$0xf]
        %v439 = vld [vmem:[%s261 + $0x29c] sm:$0xf]
        %v440 = vld [vmem:[%s261 + $0x2a0] sm:$0xf]
        %v441 = vld [vmem:[%s261 + $0x2a4] sm:$0xf]
        %v442 = vld [vmem:[%s261 + $0x2a8] sm:$0xf]
        %v443 = vld [vmem:[%s261 + $0x2ac] sm:$0xf]
        %v444 = vld [vmem:[%s261 + $0x2b0] sm:$0xf]
        %v445 = vld [vmem:[%s261 + $0x2b4] sm:$0xf]
        %v446 = vld [vmem:[%s261 + $0x2b8] sm:$0xf]
        %v447 = vld [vmem:[%s261 + $0x2bc] sm:$0xf]
        %v448 = vld [vmem:[%s261 + $0x2c0] sm:$0xf]
        %v449 = vld [vmem:[%s261 + $0x2c4] sm:$0xf]
        %v450 = vld [vmem:[%s261 + $0x2c8] sm:$0xf]
        %v451 = vld [vmem:[%s261 + $0x2cc] sm:$0xf]
        %v452 = vld [vmem:[%s261 + $0x2d0] sm:$0xf]
        %v453 = vld [vmem:[%s261 + $0x2d4] sm:$0xf]
        %v454 = vld [vmem:[%s261 + $0x2d8] sm:$0xf]
        %v455 = vld [vmem:[%s261 + $0x2dc] sm:$0xf]
        %v456 = vld [vmem:[%s261 + $0x2e0] sm:$0xf]
        %v457 = vld [vmem:[%s261 + $0x2e4] sm:$0xf]
        %v458 = vld [vmem:[%s261 + $0x2e8] sm:$0xf]
        %v459 = vld [vmem:[%s261 + $0x2ec] sm:$0xf]
        %v460 = vld [vmem:[%s261 + $0x2f0] sm:$0xf]
        %v461 = vld [vmem:[%s261 + $0x2f4] sm:$0xf]
        %v462 = vld [vmem:[%s261 + $0x2f8] sm:$0xf]
        %v463 = vld [vmem:[%s261 + $0x2fc] sm:$0xf]
        %v464 = vld [vmem:[%s261 + $0x300] sm:$0xf]
        %v465 = vld [vmem:[%s261 + $0x304] sm:$0xf]
        %v466 = vld [vmem:[%s261 + $0x308] sm:$0xf]
        %v467 = vld [vmem:[%s261 + $0x30c] sm:$0xf]
        %v468 = vld [vmem:[%s261 + $0x310] sm:$0xf]
        %v469 = vld [vmem:[%s261 + $0x314] sm:$0xf]
        %v470 = vld [vmem:[%s261 + $0x318] sm:$0xf]
        %v471 = vld [vmem:[%s261 + $0x31c] sm:$0xf]
        %v472 = vld [vmem:[%s261 + $0x320] sm:$0xf]
        %v473 = vld [vmem:[%s261 + $0x324] sm:$0xf]
        %v474 = vld [vmem:[%s261 + $0x328] sm:$0xf]
        %v475 = vld [vmem:[%s261 + $0x32c] sm:$0xf]
        %v476 = vld [vmem:[%s261 + $0x330] sm:$0xf]
        %v477 = vld [vmem:[%s261 + $0x334] sm:$0xf]
        %v478 = vld [vmem:[%s261 + $0x338] sm:$0xf]
        %v479 = vld [vmem:[%s261 + $0x33c] sm:$0xf]
        %v480 = vld [vmem:[%s261 + $0x340] sm:$0xf]
        %v481 = vld [vmem:[%s261 + $0x344] sm:$0xf]
        %v482 = vld [vmem:[%s261 + $0x348] sm:$0xf]
        %v483 = vld [vmem:[%s261 + $0x34c] sm:$0xf]
        %v484 = vld [vmem:[%s261 + $0x350] sm:$0xf]
        %v485 = vld [vmem:[%s261 + $0x354] sm:$0xf]
        %v486 = vld [vmem:[%s261 + $0x358] sm:$0xf]
        %v487 = vld [vmem:[%s261 + $0x35c] sm:$0xf]
        %v488 = vld [vmem:[%s261 + $0x360] sm:$0xf]
        %v489 = vld [vmem:[%s261 + $0x364] sm:$0xf]
        %v490 = vld [vmem:[%s261 + $0x368] sm:$0xf]
        %v491 = vld [vmem:[%s261 + $0x36c] sm:$0xf]
        %v492 = vld [vmem:[%s261 + $0x370] sm:$0xf]
        %v493 = vld [vmem:[%s261 + $0x374] sm:$0xf]
        %v494 = vld [vmem:[%s261 + $0x378] sm:$0xf]
        %v495 = vld [vmem:[%s261 + $0x37c] sm:$0xf]
        %v496 = vld [vmem:[%s261 + $0x380] sm:$0xf]
        %v497 = vld [vmem:[%s261 + $0x384] sm:$0xf]
        %v498 = vld [vmem:[%s261 + $0x388] sm:$0xf]
        %v499 = vld [vmem:[%s261 + $0x38c] sm:$0xf]
        %v500 = vld [vmem:[%s261 + $0x390] sm:$0xf]
        %v501 = vld [vmem:[%s261 + $0x394] sm:$0xf]
        %v502 = vld [vmem:[%s261 + $0x398] sm:$0xf]
        %v503 = vld [vmem:[%s261 + $0x39c] sm:$0xf]
        %v504 = vld [vmem:[%s261 + $0x3a0] sm:$0xf]
        %v505 = vld [vmem:[%s261 + $0x3a4] sm:$0xf]
        %v506 = vld [vmem:[%s261 + $0x3a8] sm:$0xf]
        %v507 = vld [vmem:[%s261 + $0x3ac] sm:$0xf]
        %v508 = vld [vmem:[%s261 + $0x3b0] sm:$0xf]
        %v509 = vld [vmem:[%s261 + $0x3b4] sm:$0xf]
        %v510 = vld [vmem:[%s261 + $0x3b8] sm:$0xf]
        %v511 = vld [vmem:[%s261 + $0x3bc] sm:$0xf]
        %v512 = vld [vmem:[%s261 + $0x3c0] sm:$0xf]
        %v513 = vld [vmem:[%s261 + $0x3c4] sm:$0xf]
        %v514 = vld [vmem:[%s261 + $0x3c8] sm:$0xf]
        %v515 = vld [vmem:[%s261 + $0x3cc] sm:$0xf]
        %v516 = vld [vmem:[%s261 + $0x3d0] sm:$0xf]
        %v517 = vld [vmem:[%s261 + $0x3d4] sm:$0xf]
        %v518 = vld [vmem:[%s261 + $0x3d8] sm:$0xf]
        %v519 = vld [vmem:[%s261 + $0x3dc] sm:$0xf]
        %v520 = vld [vmem:[%s261 + $0x3e0] sm:$0xf]
        %v521 = vld [vmem:[%s261 + $0x3e4] sm:$0xf]
        %v522 = vld [vmem:[%s261 + $0x3e8] sm:$0xf]
        %v523 = vld [vmem:[%s261 + $0x3ec] sm:$0xf]
        %v524 = vld [vmem:[%s261 + $0x3f0] sm:$0xf]
        %v525 = vld [vmem:[%s261 + $0x3f4] sm:$0xf]
        %v526 = vld [vmem:[%s261 + $0x3f8] sm:$0xf]
        %v527 = vld [vmem:[%s261 + $0x3fc] sm:$0xf]
        %v530 = vcombine.high %v270, %v270
        %v532 = vunpack.c.l.s4 1966171168
        %v533 = vunpack.c.0.s8 %v532
        %v534 = vlaneseq
        %v535 = vshrl.u32 %v534, 7
        %v536 = vsub.s32 %v533, %v535
        %v537 = vrot.slane %v270, %v536
        %v539 = vunpack.c.l.s4 1966171168
        %v540 = vunpack.c.0.s8 %v539
        %v541 = vlaneseq
        %v542 = vshrl.u32 %v541, 7
        %v543 = vsub.s32 %v540, %v542
        %v544 = vrot.slane %v530, %v543
        %v545 = vcombine.high %v537, %v537
        %v546 = vcombine.high %v544, %v544
        %v548 = vunpack.c.l.s4 1966171168
        %v549 = vunpack.c.0.s8 %v548
        %v550 = vlaneseq
        %v551 = vshrl.u32 %v550, 7
        %v552 = vsub.s32 %v549, %v551
        %v553 = vrot.slane %v537, %v552
        %v555 = vunpack.c.l.s4 1966171168
        %v556 = vunpack.c.0.s8 %v555
        %v557 = vlaneseq
        %v558 = vshrl.u32 %v557, 7
        %v559 = vsub.s32 %v556, %v558
        %v560 = vrot.slane %v544, %v559
        %v562 = vunpack.c.l.s4 1966171168
        %v563 = vunpack.c.0.s8 %v562
        %v564 = vlaneseq
        %v565 = vshrl.u32 %v564, 7
        %v566 = vsub.s32 %v563, %v565
        %v567 = vrot.slane %v545, %v566
        %v569 = vunpack.c.l.s4 1966171168
        %v570 = vunpack.c.0.s8 %v569
        %v571 = vlaneseq
        %v572 = vshrl.u32 %v571, 7
        %v573 = vsub.s32 %v570, %v572
        %v574 = vrot.slane %v546, %v573
        %v575 = vcombine.high %v553, %v553
        %v576 = vcombine.high %v560, %v560
        %v577 = vcombine.high %v567, %v567
        %v578 = vcombine.high %v574, %v574
        %v579 = vcombine.high %v271, %v271
        %v581 = vunpack.c.l.s4 1966171168
        %v582 = vunpack.c.0.s8 %v581
        %v583 = vlaneseq
        %v584 = vshrl.u32 %v583, 7
        %v585 = vsub.s32 %v582, %v584
        %v586 = vrot.slane %v271, %v585
        %v588 = vunpack.c.l.s4 1966171168
        %v589 = vunpack.c.0.s8 %v588
        %v590 = vlaneseq
        %v591 = vshrl.u32 %v590, 7
        %v592 = vsub.s32 %v589, %v591
        %v593 = vrot.slane %v579, %v592
        %v594 = vcombine.high %v586, %v586
        %v595 = vcombine.high %v593, %v593
        %v597 = vunpack.c.l.s4 1966171168
        %v598 = vunpack.c.0.s8 %v597
        %v599 = vlaneseq
        %v600 = vshrl.u32 %v599, 7
        %v601 = vsub.s32 %v598, %v600
        %v602 = vrot.slane %v586, %v601
        %v604 = vunpack.c.l.s4 1966171168
        %v605 = vunpack.c.0.s8 %v604
        %v606 = vlaneseq
        %v607 = vshrl.u32 %v606, 7
        %v608 = vsub.s32 %v605, %v607
        %v609 = vrot.slane %v593, %v608
        %v611 = vunpack.c.l.s4 1966171168
        %v612 = vunpack.c.0.s8 %v611
        %v613 = vlaneseq
        %v614 = vshrl.u32 %v613, 7
        %v615 = vsub.s32 %v612, %v614
        %v616 = vrot.slane %v594, %v615
        %v618 = vunpack.c.l.s4 1966171168
        %v619 = vunpack.c.0.s8 %v618
        %v620 = vlaneseq
        %v621 = vshrl.u32 %v620, 7
        %v622 = vsub.s32 %v619, %v621
        %v623 = vrot.slane %v595, %v622
        %v624 = vcombine.high %v602, %v602
        %v625 = vcombine.high %v609, %v609
        %v626 = vcombine.high %v616, %v616
        %v627 = vcombine.high %v623, %v623
        %v900 = vunpack.c.l.b16 %v272
        %v901 = vunpack.c.l.b16 %v273
        %v902 = vunpack.c.l.b16 %v274
        %v903 = vunpack.c.l.b16 %v275
        %v904 = vunpack.c.l.b16 %v276
        %v905 = vunpack.c.l.b16 %v277
        %v906 = vunpack.c.l.b16 %v278
        %v907 = vunpack.c.l.b16 %v279
        %v908 = vunpack.c.l.b16 %v280
        %v909 = vunpack.c.l.b16 %v281
        %v910 = vunpack.c.l.b16 %v282
        %v911 = vunpack.c.l.b16 %v283
        %v912 = vunpack.c.l.b16 %v284
        %v913 = vunpack.c.l.b16 %v285
        %v914 = vunpack.c.l.b16 %v286
        %v915 = vunpack.c.l.b16 %v287
        %v916 = vunpack.c.l.b16 %v288
        %v917 = vunpack.c.l.b16 %v289
        %v918 = vunpack.c.l.b16 %v290
        %v919 = vunpack.c.l.b16 %v291
        %v920 = vunpack.c.l.b16 %v292
        %v921 = vunpack.c.l.b16 %v293
        %v922 = vunpack.c.l.b16 %v294
        %v923 = vunpack.c.l.b16 %v295
        %v924 = vunpack.c.l.b16 %v296
        %v925 = vunpack.c.l.b16 %v297
        %v926 = vunpack.c.l.b16 %v298
        %v927 = vunpack.c.l.b16 %v299
        %v928 = vunpack.c.l.b16 %v300
        %v929 = vunpack.c.l.b16 %v301
        %v930 = vunpack.c.l.b16 %v302
        %v931 = vunpack.c.l.b16 %v303
        %v932 = vunpack.c.l.b16 %v304
        %v933 = vunpack.c.l.b16 %v305
        %v934 = vunpack.c.l.b16 %v306
        %v935 = vunpack.c.l.b16 %v307
        %v936 = vunpack.c.l.b16 %v308
        %v937 = vunpack.c.l.b16 %v309
        %v938 = vunpack.c.l.b16 %v310
        %v939 = vunpack.c.l.b16 %v311
        %v940 = vunpack.c.l.b16 %v312
        %v941 = vunpack.c.l.b16 %v313
        %v942 = vunpack.c.l.b16 %v314
        %v943 = vunpack.c.l.b16 %v315
        %v944 = vunpack.c.l.b16 %v316
        %v945 = vunpack.c.l.b16 %v317
        %v946 = vunpack.c.l.b16 %v318
        %v947 = vunpack.c.l.b16 %v319
        %v948 = vunpack.c.l.b16 %v320
        %v949 = vunpack.c.l.b16 %v321
        %v950 = vunpack.c.l.b16 %v322
        %v951 = vunpack.c.l.b16 %v323
        %v952 = vunpack.c.l.b16 %v324
        %v953 = vunpack.c.l.b16 %v325
        %v954 = vunpack.c.l.b16 %v326
        %v955 = vunpack.c.l.b16 %v327
        %v956 = vunpack.c.l.b16 %v328
        %v957 = vunpack.c.l.b16 %v329
        %v958 = vunpack.c.l.b16 %v330
        %v959 = vunpack.c.l.b16 %v331
        %v960 = vunpack.c.l.b16 %v332
        %v961 = vunpack.c.l.b16 %v333
        %v962 = vunpack.c.l.b16 %v334
        %v963 = vunpack.c.l.b16 %v335
        %v964 = vunpack.c.l.b16 %v336
        %v965 = vunpack.c.l.b16 %v337
        %v966 = vunpack.c.l.b16 %v338
        %v967 = vunpack.c.l.b16 %v339
        %v968 = vunpack.c.l.b16 %v340
        %v969 = vunpack.c.l.b16 %v341
        %v970 = vunpack.c.l.b16 %v342
        %v971 = vunpack.c.l.b16 %v343
        %v972 = vunpack.c.l.b16 %v344
        %v973 = vunpack.c.l.b16 %v345
        %v974 = vunpack.c.l.b16 %v346
        %v975 = vunpack.c.l.b16 %v347
        %v976 = vunpack.c.l.b16 %v348
        %v977 = vunpack.c.l.b16 %v349
        %v978 = vunpack.c.l.b16 %v350
        %v979 = vunpack.c.l.b16 %v351
        %v980 = vunpack.c.l.b16 %v352
        %v981 = vunpack.c.l.b16 %v353
        %v982 = vunpack.c.l.b16 %v354
        %v983 = vunpack.c.l.b16 %v355
        %v984 = vunpack.c.l.b16 %v356
        %v985 = vunpack.c.l.b16 %v357
        %v986 = vunpack.c.l.b16 %v358
        %v987 = vunpack.c.l.b16 %v359
        %v988 = vunpack.c.l.b16 %v360
        %v989 = vunpack.c.l.b16 %v361
        %v990 = vunpack.c.l.b16 %v362
        %v991 = vunpack.c.l.b16 %v363
        %v992 = vunpack.c.l.b16 %v364
        %v993 = vunpack.c.l.b16 %v365
        %v994 = vunpack.c.l.b16 %v366
        %v995 = vunpack.c.l.b16 %v367
        %v996 = vunpack.c.l.b16 %v368
        %v997 = vunpack.c.l.b16 %v369
        %v998 = vunpack.c.l.b16 %v370
        %v999 = vunpack.c.l.b16 %v371
        %v1000 = vunpack.c.l.b16 %v372
        %v1001 = vunpack.c.l.b16 %v373
        %v1002 = vunpack.c.l.b16 %v374
        %v1003 = vunpack.c.l.b16 %v375
        %v1004 = vunpack.c.l.b16 %v376
        %v1005 = vunpack.c.l.b16 %v377
        %v1006 = vunpack.c.l.b16 %v378
        %v1007 = vunpack.c.l.b16 %v379
        %v1008 = vunpack.c.l.b16 %v380
        %v1009 = vunpack.c.l.b16 %v381
        %v1010 = vunpack.c.l.b16 %v382
        %v1011 = vunpack.c.l.b16 %v383
        %v1012 = vunpack.c.l.b16 %v384
        %v1013 = vunpack.c.l.b16 %v385
        %v1014 = vunpack.c.l.b16 %v386
        %v1015 = vunpack.c.l.b16 %v387
        %v1016 = vunpack.c.l.b16 %v388
        %v1017 = vunpack.c.l.b16 %v389
        %v1018 = vunpack.c.l.b16 %v390
        %v1019 = vunpack.c.l.b16 %v391
        %v1020 = vunpack.c.l.b16 %v392
        %v1021 = vunpack.c.l.b16 %v393
        %v1022 = vunpack.c.l.b16 %v394
        %v1023 = vunpack.c.l.b16 %v395
        %v1024 = vunpack.c.l.b16 %v396
        %v1025 = vunpack.c.l.b16 %v397
        %v1026 = vunpack.c.l.b16 %v398
        %v1027 = vunpack.c.l.b16 %v399
        %v1028 = vunpack.c.l.b16 %v400
        %v1029 = vunpack.c.l.b16 %v401
        %v1030 = vunpack.c.l.b16 %v402
        %v1031 = vunpack.c.l.b16 %v403
        %v1032 = vunpack.c.l.b16 %v404
        %v1033 = vunpack.c.l.b16 %v405
        %v1034 = vunpack.c.l.b16 %v406
        %v1035 = vunpack.c.l.b16 %v407
        %v1036 = vunpack.c.l.b16 %v408
        %v1037 = vunpack.c.l.b16 %v409
        %v1038 = vunpack.c.l.b16 %v410
        %v1039 = vunpack.c.l.b16 %v411
        %v1040 = vunpack.c.l.b16 %v412
        %v1041 = vunpack.c.l.b16 %v413
        %v1042 = vunpack.c.l.b16 %v414
        %v1043 = vunpack.c.l.b16 %v415
        %v1044 = vunpack.c.l.b16 %v416
        %v1045 = vunpack.c.l.b16 %v417
        %v1046 = vunpack.c.l.b16 %v418
        %v1047 = vunpack.c.l.b16 %v419
        %v1048 = vunpack.c.l.b16 %v420
        %v1049 = vunpack.c.l.b16 %v421
        %v1050 = vunpack.c.l.b16 %v422
        %v1051 = vunpack.c.l.b16 %v423
        %v1052 = vunpack.c.l.b16 %v424
        %v1053 = vunpack.c.l.b16 %v425
        %v1054 = vunpack.c.l.b16 %v426
        %v1055 = vunpack.c.l.b16 %v427
        %v1056 = vunpack.c.l.b16 %v428
        %v1057 = vunpack.c.l.b16 %v429
        %v1058 = vunpack.c.l.b16 %v430
        %v1059 = vunpack.c.l.b16 %v431
        %v1060 = vunpack.c.l.b16 %v432
        %v1061 = vunpack.c.l.b16 %v433
        %v1062 = vunpack.c.l.b16 %v434
        %v1063 = vunpack.c.l.b16 %v435
        %v1064 = vunpack.c.l.b16 %v436
        %v1065 = vunpack.c.l.b16 %v437
        %v1066 = vunpack.c.l.b16 %v438
        %v1067 = vunpack.c.l.b16 %v439
        %v1068 = vunpack.c.l.b16 %v440
        %v1069 = vunpack.c.l.b16 %v441
        %v1070 = vunpack.c.l.b16 %v442
        %v1071 = vunpack.c.l.b16 %v443
        %v1072 = vunpack.c.l.b16 %v444
        %v1073 = vunpack.c.l.b16 %v445
        %v1074 = vunpack.c.l.b16 %v446
        %v1075 = vunpack.c.l.b16 %v447
        %v1076 = vunpack.c.l.b16 %v448
        %v1077 = vunpack.c.l.b16 %v449
        %v1078 = vunpack.c.l.b16 %v450
        %v1079 = vunpack.c.l.b16 %v451
        %v1080 = vunpack.c.l.b16 %v452
        %v1081 = vunpack.c.l.b16 %v453
        %v1082 = vunpack.c.l.b16 %v454
        %v1083 = vunpack.c.l.b16 %v455
        %v1084 = vunpack.c.l.b16 %v456
        %v1085 = vunpack.c.l.b16 %v457
        %v1086 = vunpack.c.l.b16 %v458
        %v1087 = vunpack.c.l.b16 %v459
        %v1088 = vunpack.c.l.b16 %v460
        %v1089 = vunpack.c.l.b16 %v461
        %v1090 = vunpack.c.l.b16 %v462
        %v1091 = vunpack.c.l.b16 %v463
        %v1092 = vunpack.c.l.b16 %v464
        %v1093 = vunpack.c.l.b16 %v465
        %v1094 = vunpack.c.l.b16 %v466
        %v1095 = vunpack.c.l.b16 %v467
        %v1096 = vunpack.c.l.b16 %v468
        %v1097 = vunpack.c.l.b16 %v469
        %v1098 = vunpack.c.l.b16 %v470
        %v1099 = vunpack.c.l.b16 %v471
        %v1100 = vunpack.c.l.b16 %v472
        %v1101 = vunpack.c.l.b16 %v473
        %v1102 = vunpack.c.l.b16 %v474
        %v1103 = vunpack.c.l.b16 %v475
        %v1104 = vunpack.c.l.b16 %v476
        %v1105 = vunpack.c.l.b16 %v477
        %v1106 = vunpack.c.l.b16 %v478
        %v1107 = vunpack.c.l.b16 %v479
        %v1108 = vunpack.c.l.b16 %v480
        %v1109 = vunpack.c.l.b16 %v481
        %v1110 = vunpack.c.l.b16 %v482
        %v1111 = vunpack.c.l.b16 %v483
        %v1112 = vunpack.c.l.b16 %v484
        %v1113 = vunpack.c.l.b16 %v485
        %v1114 = vunpack.c.l.b16 %v486
        %v1115 = vunpack.c.l.b16 %v487
        %v1116 = vunpack.c.l.b16 %v488
        %v1117 = vunpack.c.l.b16 %v489
        %v1118 = vunpack.c.l.b16 %v490
        %v1119 = vunpack.c.l.b16 %v491
        %v1120 = vunpack.c.l.b16 %v492
        %v1121 = vunpack.c.l.b16 %v493
        %v1122 = vunpack.c.l.b16 %v494
        %v1123 = vunpack.c.l.b16 %v495
        %v1124 = vunpack.c.l.b16 %v496
        %v1125 = vunpack.c.l.b16 %v497
        %v1126 = vunpack.c.l.b16 %v498
        %v1127 = vunpack.c.l.b16 %v499
        %v1128 = vunpack.c.l.b16 %v500
        %v1129 = vunpack.c.l.b16 %v501
        %v1130 = vunpack.c.l.b16 %v502
        %v1131 = vunpack.c.l.b16 %v503
        %v1132 = vunpack.c.l.b16 %v504
        %v1133 = vunpack.c.l.b16 %v505
        %v1134 = vunpack.c.l.b16 %v506
        %v1135 = vunpack.c.l.b16 %v507
        %v1136 = vunpack.c.l.b16 %v508
        %v1137 = vunpack.c.l.b16 %v509
        %v1138 = vunpack.c.l.b16 %v510
        %v1139 = vunpack.c.l.b16 %v511
        %v1140 = vunpack.c.l.b16 %v512
        %v1141 = vunpack.c.l.b16 %v513
        %v1142 = vunpack.c.l.b16 %v514
        %v1143 = vunpack.c.l.b16 %v515
        %v1144 = vunpack.c.l.b16 %v516
        %v1145 = vunpack.c.l.b16 %v517
        %v1146 = vunpack.c.l.b16 %v518
        %v1147 = vunpack.c.l.b16 %v519
        %v1148 = vunpack.c.l.b16 %v520
        %v1149 = vunpack.c.l.b16 %v521
        %v1150 = vunpack.c.l.b16 %v522
        %v1151 = vunpack.c.l.b16 %v523
        %v1152 = vunpack.c.l.b16 %v524
        %v1153 = vunpack.c.l.b16 %v525
        %v1154 = vunpack.c.l.b16 %v526
        %v1155 = vunpack.c.l.b16 %v527
        %v1156 = vpack.c.b16 %v901, %v900
        %v1157 = vpack.c.b16 %v903, %v902
        %v1158 = vpack.c.b16 %v905, %v904
        %v1159 = vpack.c.b16 %v907, %v906
        %v1160 = vpack.c.b16 %v909, %v908
        %v1161 = vpack.c.b16 %v911, %v910
        %v1162 = vpack.c.b16 %v913, %v912
        %v1163 = vpack.c.b16 %v915, %v914
        %v1164 = vpack.c.b16 %v917, %v916
        %v1165 = vpack.c.b16 %v919, %v918
        %v1166 = vpack.c.b16 %v921, %v920
        %v1167 = vpack.c.b16 %v923, %v922
        %v1168 = vpack.c.b16 %v925, %v924
        %v1169 = vpack.c.b16 %v927, %v926
        %v1170 = vpack.c.b16 %v929, %v928
        %v1171 = vpack.c.b16 %v931, %v930
        %v1172 = vpack.c.b16 %v933, %v932
        %v1173 = vpack.c.b16 %v935, %v934
        %v1174 = vpack.c.b16 %v937, %v936
        %v1175 = vpack.c.b16 %v939, %v938
        %v1176 = vpack.c.b16 %v941, %v940
        %v1177 = vpack.c.b16 %v943, %v942
        %v1178 = vpack.c.b16 %v945, %v944
        %v1179 = vpack.c.b16 %v947, %v946
        %v1180 = vpack.c.b16 %v949, %v948
        %v1181 = vpack.c.b16 %v951, %v950
        %v1182 = vpack.c.b16 %v953, %v952
        %v1183 = vpack.c.b16 %v955, %v954
        %v1184 = vpack.c.b16 %v957, %v956
        %v1185 = vpack.c.b16 %v959, %v958
        %v1186 = vpack.c.b16 %v961, %v960
        %v1187 = vpack.c.b16 %v963, %v962
        %v1188 = vpack.c.b16 %v965, %v964
        %v1189 = vpack.c.b16 %v967, %v966
        %v1190 = vpack.c.b16 %v969, %v968
        %v1191 = vpack.c.b16 %v971, %v970
        %v1192 = vpack.c.b16 %v973, %v972
        %v1193 = vpack.c.b16 %v975, %v974
        %v1194 = vpack.c.b16 %v977, %v976
        %v1195 = vpack.c.b16 %v979, %v978
        %v1196 = vpack.c.b16 %v981, %v980
        %v1197 = vpack.c.b16 %v983, %v982
        %v1198 = vpack.c.b16 %v985, %v984
        %v1199 = vpack.c.b16 %v987, %v986
        %v1200 = vpack.c.b16 %v989, %v988
        %v1201 = vpack.c.b16 %v991, %v990
        %v1202 = vpack.c.b16 %v993, %v992
        %v1203 = vpack.c.b16 %v995, %v994
        %v1204 = vpack.c.b16 %v997, %v996
        %v1205 = vpack.c.b16 %v999, %v998
        %v1206 = vpack.c.b16 %v1001, %v1000
        %v1207 = vpack.c.b16 %v1003, %v1002
        %v1208 = vpack.c.b16 %v1005, %v1004
        %v1209 = vpack.c.b16 %v1007, %v1006
        %v1210 = vpack.c.b16 %v1009, %v1008
        %v1211 = vpack.c.b16 %v1011, %v1010
        %v1212 = vpack.c.b16 %v1013, %v1012
        %v1213 = vpack.c.b16 %v1015, %v1014
        %v1214 = vpack.c.b16 %v1017, %v1016
        %v1215 = vpack.c.b16 %v1019, %v1018
        %v1216 = vpack.c.b16 %v1021, %v1020
        %v1217 = vpack.c.b16 %v1023, %v1022
        %v1218 = vpack.c.b16 %v1025, %v1024
        %v1219 = vpack.c.b16 %v1027, %v1026
        %v1220 = vpack.c.b16 %v1029, %v1028
        %v1221 = vpack.c.b16 %v1031, %v1030
        %v1222 = vpack.c.b16 %v1033, %v1032
        %v1223 = vpack.c.b16 %v1035, %v1034
        %v1224 = vpack.c.b16 %v1037, %v1036
        %v1225 = vpack.c.b16 %v1039, %v1038
        %v1226 = vpack.c.b16 %v1041, %v1040
        %v1227 = vpack.c.b16 %v1043, %v1042
        %v1228 = vpack.c.b16 %v1045, %v1044
        %v1229 = vpack.c.b16 %v1047, %v1046
        %v1230 = vpack.c.b16 %v1049, %v1048
        %v1231 = vpack.c.b16 %v1051, %v1050
        %v1232 = vpack.c.b16 %v1053, %v1052
        %v1233 = vpack.c.b16 %v1055, %v1054
        %v1234 = vpack.c.b16 %v1057, %v1056
        %v1235 = vpack.c.b16 %v1059, %v1058
        %v1236 = vpack.c.b16 %v1061, %v1060
        %v1237 = vpack.c.b16 %v1063, %v1062
        %v1238 = vpack.c.b16 %v1065, %v1064
        %v1239 = vpack.c.b16 %v1067, %v1066
        %v1240 = vpack.c.b16 %v1069, %v1068
        %v1241 = vpack.c.b16 %v1071, %v1070
        %v1242 = vpack.c.b16 %v1073, %v1072
        %v1243 = vpack.c.b16 %v1075, %v1074
        %v1244 = vpack.c.b16 %v1077, %v1076
        %v1245 = vpack.c.b16 %v1079, %v1078
        %v1246 = vpack.c.b16 %v1081, %v1080
        %v1247 = vpack.c.b16 %v1083, %v1082
        %v1248 = vpack.c.b16 %v1085, %v1084
        %v1249 = vpack.c.b16 %v1087, %v1086
        %v1250 = vpack.c.b16 %v1089, %v1088
        %v1251 = vpack.c.b16 %v1091, %v1090
        %v1252 = vpack.c.b16 %v1093, %v1092
        %v1253 = vpack.c.b16 %v1095, %v1094
        %v1254 = vpack.c.b16 %v1097, %v1096
        %v1255 = vpack.c.b16 %v1099, %v1098
        %v1256 = vpack.c.b16 %v1101, %v1100
        %v1257 = vpack.c.b16 %v1103, %v1102
        %v1258 = vpack.c.b16 %v1105, %v1104
        %v1259 = vpack.c.b16 %v1107, %v1106
        %v1260 = vpack.c.b16 %v1109, %v1108
        %v1261 = vpack.c.b16 %v1111, %v1110
        %v1262 = vpack.c.b16 %v1113, %v1112
        %v1263 = vpack.c.b16 %v1115, %v1114
        %v1264 = vpack.c.b16 %v1117, %v1116
        %v1265 = vpack.c.b16 %v1119, %v1118
        %v1266 = vpack.c.b16 %v1121, %v1120
        %v1267 = vpack.c.b16 %v1123, %v1122
        %v1268 = vpack.c.b16 %v1125, %v1124
        %v1269 = vpack.c.b16 %v1127, %v1126
        %v1270 = vpack.c.b16 %v1129, %v1128
        %v1271 = vpack.c.b16 %v1131, %v1130
        %v1272 = vpack.c.b16 %v1133, %v1132
        %v1273 = vpack.c.b16 %v1135, %v1134
        %v1274 = vpack.c.b16 %v1137, %v1136
        %v1275 = vpack.c.b16 %v1139, %v1138
        %v1276 = vpack.c.b16 %v1141, %v1140
        %v1277 = vpack.c.b16 %v1143, %v1142
        %v1278 = vpack.c.b16 %v1145, %v1144
        %v1279 = vpack.c.b16 %v1147, %v1146
        %v1280 = vpack.c.b16 %v1149, %v1148
        %v1281 = vpack.c.b16 %v1151, %v1150
        %v1282 = vpack.c.b16 %v1153, %v1152
        %v1283 = vpack.c.b16 %v1155, %v1154
        %1412 = vmatprep.subr.bf16.mxu0 0
        %1413 = vmatpush1.bf16.msra.mxu0 %v1156
        %1414 = vmatprep.subr.bf16.mxu0 0
        %1415 = vmatpush1.bf16.msra.mxu0 %v1157
        %1416 = vmatprep.subr.bf16.mxu0 0
        %1417 = vmatpush1.bf16.msra.mxu0 %v1158
        %1418 = vmatprep.subr.bf16.mxu0 0
        %1419 = vmatpush1.bf16.msra.mxu0 %v1159
        %1420 = vmatprep.subr.bf16.mxu0 0
        %1421 = vmatpush1.bf16.msra.mxu0 %v1160
        %1422 = vmatprep.subr.bf16.mxu0 0
        %1423 = vmatpush1.bf16.msra.mxu0 %v1161
        %1424 = vmatprep.subr.bf16.mxu0 0
        %1425 = vmatpush1.bf16.msra.mxu0 %v1162
        %1426 = vmatprep.subr.bf16.mxu0 0
        %1427 = vmatpush1.bf16.msra.mxu0 %v1163
        %1428 = vmatprep.subr.bf16.mxu0 0
        %1429 = vmatpush1.bf16.msra.mxu0 %v1164
        %1430 = vmatprep.subr.bf16.mxu0 0
        %1431 = vmatpush1.bf16.msra.mxu0 %v1165
        %1432 = vmatprep.subr.bf16.mxu0 0
        %1433 = vmatpush1.bf16.msra.mxu0 %v1166
        %1434 = vmatprep.subr.bf16.mxu0 0
        %1435 = vmatpush1.bf16.msra.mxu0 %v1167
        %1436 = vmatprep.subr.bf16.mxu0 0
        %1437 = vmatpush1.bf16.msra.mxu0 %v1168
        %1438 = vmatprep.subr.bf16.mxu0 0
        %1439 = vmatpush1.bf16.msra.mxu0 %v1169
        %1440 = vmatprep.subr.bf16.mxu0 0
        %1441 = vmatpush1.bf16.msra.mxu0 %v1170
        %1442 = vmatprep.subr.bf16.mxu0 0
        %1443 = vmatpush1.bf16.msra.mxu0 %v1171
        %1444 = vmatprep.mubr.bf16.mxu0 %v567
        %1445 = vmatmul.mubr.bf16.gmra.mrb[0].mxu0 %v553
        %v1446 = vpop.f32.mrb[0].mxu0
        %v1447 = vadd.f32 0.0, %v1446
        %v1448 = vpop.f32.mrb[0].mxu0
        %v1449 = vpop.f32.mrb[0].mxu0
        %v1450 = vpop.f32.mrb[0].mxu0
        %1451 = vdwg.mxu0
        %1452 = vmatprep.subr.bf16.mxu0 0
        %1453 = vmatpush1.bf16.msra.mxu0 %v1172
        %1454 = vmatprep.subr.bf16.mxu0 0
        %1455 = vmatpush1.bf16.msra.mxu0 %v1173
        %1456 = vmatprep.subr.bf16.mxu0 0
        %1457 = vmatpush1.bf16.msra.mxu0 %v1174
        %1458 = vmatprep.subr.bf16.mxu0 0
        %1459 = vmatpush1.bf16.msra.mxu0 %v1175
        %1460 = vmatprep.subr.bf16.mxu0 0
        %1461 = vmatpush1.bf16.msra.mxu0 %v1176
        %1462 = vmatprep.subr.bf16.mxu0 0
        %1463 = vmatpush1.bf16.msra.mxu0 %v1177
        %1464 = vmatprep.subr.bf16.mxu0 0
        %1465 = vmatpush1.bf16.msra.mxu0 %v1178
        %1466 = vmatprep.subr.bf16.mxu0 0
        %1467 = vmatpush1.bf16.msra.mxu0 %v1179
        %1468 = vmatprep.subr.bf16.mxu0 0
        %1469 = vmatpush1.bf16.msra.mxu0 %v1180
        %1470 = vmatprep.subr.bf16.mxu0 0
        %1471 = vmatpush1.bf16.msra.mxu0 %v1181
        %1472 = vmatprep.subr.bf16.mxu0 0
        %1473 = vmatpush1.bf16.msra.mxu0 %v1182
        %1474 = vmatprep.subr.bf16.mxu0 0
        %1475 = vmatpush1.bf16.msra.mxu0 %v1183
        %1476 = vmatprep.subr.bf16.mxu0 0
        %1477 = vmatpush1.bf16.msra.mxu0 %v1184
        %1478 = vmatprep.subr.bf16.mxu0 0
        %1479 = vmatpush1.bf16.msra.mxu0 %v1185
        %1480 = vmatprep.subr.bf16.mxu0 0
        %1481 = vmatpush1.bf16.msra.mxu0 %v1186
        %1482 = vmatprep.subr.bf16.mxu0 0
        %1483 = vmatpush1.bf16.msra.mxu0 %v1187
        %1484 = vmatprep.mubr.bf16.mxu0 %v577
        %1485 = vmatmul.mubr.bf16.gmra.mrb[0].mxu0 %v575
        %v1486 = vpop.f32.mrb[0].mxu0
        %v1487 = vadd.f32 %v1447, %v1486
        %v1488 = vpop.f32.mrb[0].mxu0
        %v1489 = vpop.f32.mrb[0].mxu0
        %v1490 = vpop.f32.mrb[0].mxu0
        %1491 = vdwg.mxu0
        %1492 = vmatprep.subr.bf16.mxu0 0
        %1493 = vmatpush1.bf16.msra.mxu0 %v1188
        %1494 = vmatprep.subr.bf16.mxu0 0
        %1495 = vmatpush1.bf16.msra.mxu0 %v1189
        %1496 = vmatprep.subr.bf16.mxu0 0
        %1497 = vmatpush1.bf16.msra.mxu0 %v1190
        %1498 = vmatprep.subr.bf16.mxu0 0
        %1499 = vmatpush1.bf16.msra.mxu0 %v1191
        %1500 = vmatprep.subr.bf16.mxu0 0
        %1501 = vmatpush1.bf16.msra.mxu0 %v1192
        %1502 = vmatprep.subr.bf16.mxu0 0
        %1503 = vmatpush1.bf16.msra.mxu0 %v1193
        %1504 = vmatprep.subr.bf16.mxu0 0
        %1505 = vmatpush1.bf16.msra.mxu0 %v1194
        %1506 = vmatprep.subr.bf16.mxu0 0
        %1507 = vmatpush1.bf16.msra.mxu0 %v1195
        %1508 = vmatprep.subr.bf16.mxu0 0
        %1509 = vmatpush1.bf16.msra.mxu0 %v1196
        %1510 = vmatprep.subr.bf16.mxu0 0
        %1511 = vmatpush1.bf16.msra.mxu0 %v1197
        %1512 = vmatprep.subr.bf16.mxu0 0
        %1513 = vmatpush1.bf16.msra.mxu0 %v1198
        %1514 = vmatprep.subr.bf16.mxu0 0
        %1515 = vmatpush1.bf16.msra.mxu0 %v1199
        %1516 = vmatprep.subr.bf16.mxu0 0
        %1517 = vmatpush1.bf16.msra.mxu0 %v1200
        %1518 = vmatprep.subr.bf16.mxu0 0
        %1519 = vmatpush1.bf16.msra.mxu0 %v1201
        %1520 = vmatprep.subr.bf16.mxu0 0
        %1521 = vmatpush1.bf16.msra.mxu0 %v1202
        %1522 = vmatprep.subr.bf16.mxu0 0
        %1523 = vmatpush1.bf16.msra.mxu0 %v1203
        %1524 = vmatprep.mubr.bf16.mxu0 %v574
        %1525 = vmatmul.mubr.bf16.gmra.mrb[0].mxu0 %v560
        %v1526 = vpop.f32.mrb[0].mxu0
        %v1527 = vadd.f32 %v1487, %v1526
        %v1528 = vpop.f32.mrb[0].mxu0
        %v1529 = vpop.f32.mrb[0].mxu0
        %v1530 = vpop.f32.mrb[0].mxu0
        %1531 = vdwg.mxu0
        %1532 = vmatprep.subr.bf16.mxu0 0
        %1533 = vmatpush1.bf16.msra.mxu0 %v1204
        %1534 = vmatprep.subr.bf16.mxu0 0
        %1535 = vmatpush1.bf16.msra.mxu0 %v1205
        %1536 = vmatprep.subr.bf16.mxu0 0
        %1537 = vmatpush1.bf16.msra.mxu0 %v1206
        %1538 = vmatprep.subr.bf16.mxu0 0
        %1539 = vmatpush1.bf16.msra.mxu0 %v1207
        %1540 = vmatprep.subr.bf16.mxu0 0
        %1541 = vmatpush1.bf16.msra.mxu0 %v1208
        %1542 = vmatprep.subr.bf16.mxu0 0
        %1543 = vmatpush1.bf16.msra.mxu0 %v1209
        %1544 = vmatprep.subr.bf16.mxu0 0
        %1545 = vmatpush1.bf16.msra.mxu0 %v1210
        %1546 = vmatprep.subr.bf16.mxu0 0
        %1547 = vmatpush1.bf16.msra.mxu0 %v1211
        %1548 = vmatprep.subr.bf16.mxu0 0
        %1549 = vmatpush1.bf16.msra.mxu0 %v1212
        %1550 = vmatprep.subr.bf16.mxu0 0
        %1551 = vmatpush1.bf16.msra.mxu0 %v1213
        %1552 = vmatprep.subr.bf16.mxu0 0
        %1553 = vmatpush1.bf16.msra.mxu0 %v1214
        %1554 = vmatprep.subr.bf16.mxu0 0
        %1555 = vmatpush1.bf16.msra.mxu0 %v1215
        %1556 = vmatprep.subr.bf16.mxu0 0
        %1557 = vmatpush1.bf16.msra.mxu0 %v1216
        %1558 = vmatprep.subr.bf16.mxu0 0
        %1559 = vmatpush1.bf16.msra.mxu0 %v1217
        %1560 = vmatprep.subr.bf16.mxu0 0
        %1561 = vmatpush1.bf16.msra.mxu0 %v1218
        %1562 = vmatprep.subr.bf16.mxu0 0
        %1563 = vmatpush1.bf16.msra.mxu0 %v1219
        %1564 = vmatprep.mubr.bf16.mxu0 %v578
        %1565 = vmatmul.mubr.bf16.gmra.mrb[0].mxu0 %v576
        %v1566 = vpop.f32.mrb[0].mxu0
        %v1567 = vadd.f32 %v1527, %v1566
        %v1568 = vpop.f32.mrb[0].mxu0
        %v1569 = vpop.f32.mrb[0].mxu0
        %v1570 = vpop.f32.mrb[0].mxu0
        %1571 = vdwg.mxu0
        %1572 = vmatprep.subr.bf16.mxu0 0
        %1573 = vmatpush1.bf16.msra.mxu0 %v1220
        %1574 = vmatprep.subr.bf16.mxu0 0
        %1575 = vmatpush1.bf16.msra.mxu0 %v1221
        %1576 = vmatprep.subr.bf16.mxu0 0
        %1577 = vmatpush1.bf16.msra.mxu0 %v1222
        %1578 = vmatprep.subr.bf16.mxu0 0
        %1579 = vmatpush1.bf16.msra.mxu0 %v1223
        %1580 = vmatprep.subr.bf16.mxu0 0
        %1581 = vmatpush1.bf16.msra.mxu0 %v1224
        %1582 = vmatprep.subr.bf16.mxu0 0
        %1583 = vmatpush1.bf16.msra.mxu0 %v1225
        %1584 = vmatprep.subr.bf16.mxu0 0
        %1585 = vmatpush1.bf16.msra.mxu0 %v1226
        %1586 = vmatprep.subr.bf16.mxu0 0
        %1587 = vmatpush1.bf16.msra.mxu0 %v1227
        %1588 = vmatprep.subr.bf16.mxu0 0
        %1589 = vmatpush1.bf16.msra.mxu0 %v1228
        %1590 = vmatprep.subr.bf16.mxu0 0
        %1591 = vmatpush1.bf16.msra.mxu0 %v1229
        %1592 = vmatprep.subr.bf16.mxu0 0
        %1593 = vmatpush1.bf16.msra.mxu0 %v1230
        %1594 = vmatprep.subr.bf16.mxu0 0
        %1595 = vmatpush1.bf16.msra.mxu0 %v1231
        %1596 = vmatprep.subr.bf16.mxu0 0
        %1597 = vmatpush1.bf16.msra.mxu0 %v1232
        %1598 = vmatprep.subr.bf16.mxu0 0
        %1599 = vmatpush1.bf16.msra.mxu0 %v1233
        %1600 = vmatprep.subr.bf16.mxu0 0
        %1601 = vmatpush1.bf16.msra.mxu0 %v1234
        %1602 = vmatprep.subr.bf16.mxu0 0
        %1603 = vmatpush1.bf16.msra.mxu0 %v1235
        %1604 = vmatprep.mubr.bf16.mxu0 %v616
        %1605 = vmatmul.mubr.bf16.gmra.mrb[0].mxu0 %v602
        %v1606 = vpop.f32.mrb[0].mxu0
        %v1607 = vadd.f32 %v1567, %v1606
        %v1608 = vpop.f32.mrb[0].mxu0
        %v1609 = vpop.f32.mrb[0].mxu0
        %v1610 = vpop.f32.mrb[0].mxu0
        %1611 = vdwg.mxu0
        %1612 = vmatprep.subr.bf16.mxu0 0
        %1613 = vmatpush1.bf16.msra.mxu0 %v1236
        %1614 = vmatprep.subr.bf16.mxu0 0
        %1615 = vmatpush1.bf16.msra.mxu0 %v1237
        %1616 = vmatprep.subr.bf16.mxu0 0
        %1617 = vmatpush1.bf16.msra.mxu0 %v1238
        %1618 = vmatprep.subr.bf16.mxu0 0
        %1619 = vmatpush1.bf16.msra.mxu0 %v1239
        %1620 = vmatprep.subr.bf16.mxu0 0
        %1621 = vmatpush1.bf16.msra.mxu0 %v1240
        %1622 = vmatprep.subr.bf16.mxu0 0
        %1623 = vmatpush1.bf16.msra.mxu0 %v1241
        %1624 = vmatprep.subr.bf16.mxu0 0
        %1625 = vmatpush1.bf16.msra.mxu0 %v1242
        %1626 = vmatprep.subr.bf16.mxu0 0
        %1627 = vmatpush1.bf16.msra.mxu0 %v1243
        %1628 = vmatprep.subr.bf16.mxu0 0
        %1629 = vmatpush1.bf16.msra.mxu0 %v1244
        %1630 = vmatprep.subr.bf16.mxu0 0
        %1631 = vmatpush1.bf16.msra.mxu0 %v1245
        %1632 = vmatprep.subr.bf16.mxu0 0
        %1633 = vmatpush1.bf16.msra.mxu0 %v1246
        %1634 = vmatprep.subr.bf16.mxu0 0
        %1635 = vmatpush1.bf16.msra.mxu0 %v1247
        %1636 = vmatprep.subr.bf16.mxu0 0
        %1637 = vmatpush1.bf16.msra.mxu0 %v1248
        %1638 = vmatprep.subr.bf16.mxu0 0
        %1639 = vmatpush1.bf16.msra.mxu0 %v1249
        %1640 = vmatprep.subr.bf16.mxu0 0
        %1641 = vmatpush1.bf16.msra.mxu0 %v1250
        %1642 = vmatprep.subr.bf16.mxu0 0
        %1643 = vmatpush1.bf16.msra.mxu0 %v1251
        %1644 = vmatprep.mubr.bf16.mxu0 %v626
        %1645 = vmatmul.mubr.bf16.gmra.mrb[0].mxu0 %v624
        %v1646 = vpop.f32.mrb[0].mxu0
        %v1647 = vadd.f32 %v1607, %v1646
        %v1648 = vpop.f32.mrb[0].mxu0
        %v1649 = vpop.f32.mrb[0].mxu0
        %v1650 = vpop.f32.mrb[0].mxu0
        %1651 = vdwg.mxu0
        %1652 = vmatprep.subr.bf16.mxu0 0
        %1653 = vmatpush1.bf16.msra.mxu0 %v1252
        %1654 = vmatprep.subr.bf16.mxu0 0
        %1655 = vmatpush1.bf16.msra.mxu0 %v1253
        %1656 = vmatprep.subr.bf16.mxu0 0
        %1657 = vmatpush1.bf16.msra.mxu0 %v1254
        %1658 = vmatprep.subr.bf16.mxu0 0
        %1659 = vmatpush1.bf16.msra.mxu0 %v1255
        %1660 = vmatprep.subr.bf16.mxu0 0
        %1661 = vmatpush1.bf16.msra.mxu0 %v1256
        %1662 = vmatprep.subr.bf16.mxu0 0
        %1663 = vmatpush1.bf16.msra.mxu0 %v1257
        %1664 = vmatprep.subr.bf16.mxu0 0
        %1665 = vmatpush1.bf16.msra.mxu0 %v1258
        %1666 = vmatprep.subr.bf16.mxu0 0
        %1667 = vmatpush1.bf16.msra.mxu0 %v1259
        %1668 = vmatprep.subr.bf16.mxu0 0
        %1669 = vmatpush1.bf16.msra.mxu0 %v1260
        %1670 = vmatprep.subr.bf16.mxu0 0
        %1671 = vmatpush1.bf16.msra.mxu0 %v1261
        %1672 = vmatprep.subr.bf16.mxu0 0
        %1673 = vmatpush1.bf16.msra.mxu0 %v1262
        %1674 = vmatprep.subr.bf16.mxu0 0
        %1675 = vmatpush1.bf16.msra.mxu0 %v1263
        %1676 = vmatprep.subr.bf16.mxu0 0
        %1677 = vmatpush1.bf16.msra.mxu0 %v1264
        %1678 = vmatprep.subr.bf16.mxu0 0
        %1679 = vmatpush1.bf16.msra.mxu0 %v1265
        %1680 = vmatprep.subr.bf16.mxu0 0
        %1681 = vmatpush1.bf16.msra.mxu0 %v1266
        %1682 = vmatprep.subr.bf16.mxu0 0
        %1683 = vmatpush1.bf16.msra.mxu0 %v1267
        %1684 = vmatprep.mubr.bf16.mxu0 %v623
        %1685 = vmatmul.mubr.bf16.gmra.mrb[0].mxu0 %v609
        %v1686 = vpop.f32.mrb[0].mxu0
        %v1687 = vadd.f32 %v1647, %v1686
        %v1688 = vpop.f32.mrb[0].mxu0
        %v1689 = vpop.f32.mrb[0].mxu0
        %v1690 = vpop.f32.mrb[0].mxu0
        %1691 = vdwg.mxu0
        %1692 = vmatprep.subr.bf16.mxu0 0
        %1693 = vmatpush1.bf16.msra.mxu0 %v1268
        %1694 = vmatprep.subr.bf16.mxu0 0
        %1695 = vmatpush1.bf16.msra.mxu0 %v1269
        %1696 = vmatprep.subr.bf16.mxu0 0
        %1697 = vmatpush1.bf16.msra.mxu0 %v1270
        %1698 = vmatprep.subr.bf16.mxu0 0
        %1699 = vmatpush1.bf16.msra.mxu0 %v1271
        %1700 = vmatprep.subr.bf16.mxu0 0
        %1701 = vmatpush1.bf16.msra.mxu0 %v1272
        %1702 = vmatprep.subr.bf16.mxu0 0
        %1703 = vmatpush1.bf16.msra.mxu0 %v1273
        %1704 = vmatprep.subr.bf16.mxu0 0
        %1705 = vmatpush1.bf16.msra.mxu0 %v1274
        %1706 = vmatprep.subr.bf16.mxu0 0
        %1707 = vmatpush1.bf16.msra.mxu0 %v1275
        %1708 = vmatprep.subr.bf16.mxu0 0
        %1709 = vmatpush1.bf16.msra.mxu0 %v1276
        %1710 = vmatprep.subr.bf16.mxu0 0
        %1711 = vmatpush1.bf16.msra.mxu0 %v1277
        %1712 = vmatprep.subr.bf16.mxu0 0
        %1713 = vmatpush1.bf16.msra.mxu0 %v1278
        %1714 = vmatprep.subr.bf16.mxu0 0
        %1715 = vmatpush1.bf16.msra.mxu0 %v1279
        %1716 = vmatprep.subr.bf16.mxu0 0
        %1717 = vmatpush1.bf16.msra.mxu0 %v1280
        %1718 = vmatprep.subr.bf16.mxu0 0
        %1719 = vmatpush1.bf16.msra.mxu0 %v1281
        %1720 = vmatprep.subr.bf16.mxu0 0
        %1721 = vmatpush1.bf16.msra.mxu0 %v1282
        %1722 = vmatprep.subr.bf16.mxu0 0
        %1723 = vmatpush1.bf16.msra.mxu0 %v1283
        %1724 = vmatprep.mubr.bf16.mxu0 %v627
        %1725 = vmatmul.mubr.bf16.gmra.mrb[0].mxu0 %v625
        %v1726 = vpop.f32.mrb[0].mxu0
        %v1727 = vadd.f32 %v1687, %v1726
        %v1728 = vpop.f32.mrb[0].mxu0
        %v1729 = vpop.f32.mrb[0].mxu0
        %v1730 = vpop.f32.mrb[0].mxu0
        %1731 = vdwg.mxu0
        %v1732 = vadd.f32 %v269, %v1727
        %1733 = vst [vmem:[#allocation2] sm:$0x3] %v1732
        %p1734 = scmp.eq.s32.totalorder %s22, 3
        // Predicated region
        $region45: #{simple_cnn_forward.5} parent=39 // pred_check
          %p1735 = pneg %p1734
        $region46: #{simple_cnn_forward.5} parent=39 // pred_check_branch
          %1737 = sbr.rel (%p1735) target = $region48
        $region47: #{simple_cnn_forward.5} parent=39 // pred_region
          %v1738 = vld [vmem:[#allocation2] sm:$0x3]
          %v1739 = vld [vmem:[%s2] sm:$0x1]
          %v1741 = vlaneseq
          %v1742 = vshrl.u32 %v1741, 7
          %v1743 = vsub.s32 0, %v1742
          %v1744 = vrot.slane %v1739, %v1743
          %v1746 = vadd.f32 %v1738, %v1744
          %v1747 = vmax.f32 %v1746, 0.0
          %v1748 = vpack.c.bf16 %v1747, %v1747
          %v1749 = vld [vmem:[%s3] sm:$0xf]
          %v1750 = vld [vmem:[%s3 + $0x4] sm:$0xf]
          %v1751 = vld [vmem:[%s3 + $0x8] sm:$0xf]
          %v1752 = vld [vmem:[%s3 + $0xc] sm:$0xf]
          %v1753 = vld [vmem:[%s3 + $0x10] sm:$0xf]
          %v1754 = vld [vmem:[%s3 + $0x14] sm:$0xf]
          %v1755 = vld [vmem:[%s3 + $0x18] sm:$0xf]
          %v1756 = vld [vmem:[%s3 + $0x1c] sm:$0xf]
          %v1757 = vld [vmem:[%s3 + $0x20] sm:$0xf]
          %v1758 = vld [vmem:[%s3 + $0x24] sm:$0xf]
          %v1759 = vld [vmem:[%s3 + $0x28] sm:$0xf]
          %v1760 = vld [vmem:[%s3 + $0x2c] sm:$0xf]
          %v1761 = vld [vmem:[%s3 + $0x30] sm:$0xf]
          %v1762 = vld [vmem:[%s3 + $0x34] sm:$0xf]
          %v1763 = vld [vmem:[%s3 + $0x38] sm:$0xf]
          %v1764 = vld [vmem:[%s3 + $0x3c] sm:$0xf]
          %v1765 = vld [vmem:[%s4] sm:$0x1]
          %v1767 = vlaneseq
          %v1768 = vshrl.u32 %v1767, 7
          %v1769 = vsub.s32 0, %v1768
          %v1770 = vrot.slane %v1765, %v1769
          %v1788 = vunpack.c.l.b16 %v1749
          %v1789 = vunpack.c.l.b16 %v1750
          %v1790 = vunpack.c.l.b16 %v1751
          %v1791 = vunpack.c.l.b16 %v1752
          %v1792 = vunpack.c.l.b16 %v1753
          %v1793 = vunpack.c.l.b16 %v1754
          %v1794 = vunpack.c.l.b16 %v1755
          %v1795 = vunpack.c.l.b16 %v1756
          %v1796 = vunpack.c.l.b16 %v1757
          %v1797 = vunpack.c.l.b16 %v1758
          %v1798 = vunpack.c.l.b16 %v1759
          %v1799 = vunpack.c.l.b16 %v1760
          %v1800 = vunpack.c.l.b16 %v1761
          %v1801 = vunpack.c.l.b16 %v1762
          %v1802 = vunpack.c.l.b16 %v1763
          %v1803 = vunpack.c.l.b16 %v1764
          %v1804 = vpack.c.b16 %v1789, %v1788
          %v1805 = vpack.c.b16 %v1791, %v1790
          %v1806 = vpack.c.b16 %v1793, %v1792
          %v1807 = vpack.c.b16 %v1795, %v1794
          %v1808 = vpack.c.b16 %v1797, %v1796
          %v1809 = vpack.c.b16 %v1799, %v1798
          %v1810 = vpack.c.b16 %v1801, %v1800
          %v1811 = vpack.c.b16 %v1803, %v1802
          %1820 = vmatprep.subr.bf16.mxu0 0
          %1821 = vmatpush1.bf16.msra.mxu0 %v1804
          %1822 = vmatprep.subr.bf16.mxu0 0
          %1823 = vmatpush1.bf16.msra.mxu0 %v1805
          %1824 = vmatprep.subr.bf16.mxu0 0
          %1825 = vmatpush1.bf16.msra.mxu0 %v1806
          %1826 = vmatprep.subr.bf16.mxu0 0
          %1827 = vmatpush1.bf16.msra.mxu0 %v1807
          %1828 = vmatprep.subr.bf16.mxu0 0
          %1829 = vmatpush1.bf16.msra.mxu0 %v1808
          %1830 = vmatprep.subr.bf16.mxu0 0
          %1831 = vmatpush1.bf16.msra.mxu0 %v1809
          %1832 = vmatprep.subr.bf16.mxu0 0
          %1833 = vmatpush1.bf16.msra.mxu0 %v1810
          %1834 = vmatprep.subr.bf16.mxu0 0
          %1835 = vmatpush1.bf16.msra.mxu0 %v1811
          %1836 = vmatprep.subr.bf16.mxu0 0
          %1837 = vmatpush1.bf16.msra.mxu0 0
          %1838 = vmatprep.subr.bf16.mxu0 0
          %1839 = vmatpush1.bf16.msra.mxu0 0
          %1840 = vmatprep.subr.bf16.mxu0 0
          %1841 = vmatpush1.bf16.msra.mxu0 0
          %1842 = vmatprep.subr.bf16.mxu0 0
          %1843 = vmatpush1.bf16.msra.mxu0 0
          %1844 = vmatprep.subr.bf16.mxu0 0
          %1845 = vmatpush1.bf16.msra.mxu0 0
          %1846 = vmatprep.subr.bf16.mxu0 0
          %1847 = vmatpush1.bf16.msra.mxu0 0
          %1848 = vmatprep.subr.bf16.mxu0 0
          %1849 = vmatpush1.bf16.msra.mxu0 0
          %1850 = vmatprep.subr.bf16.mxu0 0
          %1851 = vmatpush1.bf16.msra.mxu0 0
          %1852 = vmatprep.mubr.bf16.mxu0 0
          %1853 = vmatmul.mubr.bf16.gmra.mrb[0].mxu0 %v1748
          %v1854 = vpop.f32.mrb[0].mxu0
          %v1855 = vadd.f32 %v1770, %v1854
          %v1856 = vpop.f32.mrb[0].mxu0
          %v1857 = vpop.f32.mrb[0].mxu0
          %v1858 = vpop.f32.mrb[0].mxu0
          %1859 = vdwg.mxu0
          %vm1860 = vcmask 50176
          %1861 = vst.msk [vmem:[#allocation3] sm:$0x3] %vm1860, %v1855
        $region48: #{simple_cnn_forward.5} parent=39 // pred_fallthru
          _
        // Predicated region
        $region49: #{simple_cnn_forward.5} parent=39 // pred_check
          %p1862 = pneg %p164
        $region50: #{simple_cnn_forward.5} parent=39 // pred_check_branch
          %1864 = sbr.rel (%p1862) target = $region52
        $region51: #{simple_cnn_forward.5} parent=39 // pred_region
          %s1866 = ssub.s32 32, 32
          %1867 = vsyncadd [#allocation4], %s1866
          %s1868 = smul.addr %s21, 32
          %s1869 = scalar_lea.hbm %s5, %s1868
          %s1871 = sshll.u32 [#allocation3], 4
          %s1872 = int_to_ptr.vmem [resolvable:$true] %s1871
          %1874 = dma.vmem_to_hbm [thread:$0]  %s1872, 32, %s1869, [#allocation4]
        $region52: #{simple_cnn_forward.5} parent=39 // pred_fallthru
          _
        // Predicated region
        $region53: #{simple_cnn_forward.5} parent=39 // pred_check
          %p1875 = pneg %p164
        $region54: #{simple_cnn_forward.5} parent=39 // pred_check_branch
          %1877 = sbr.rel (%p1875) target = $region56
        $region55: #{simple_cnn_forward.5} parent=39 // pred_region
          %1878 = dma.done [#allocation4], 32
        $region56: #{simple_cnn_forward.5} parent=39 // pred_fallthru
          _
      $region40: #{simple_cnn_forward.5} parent=5 // pred_fallthru
        _
      %p1879 = scmp.le.s32.totalorder 2, %s12
      // Predicated region
      $region57: #{simple_cnn_forward.5} parent=5 // pred_check
        %p1880 = pneg %p1879
      $region58: #{simple_cnn_forward.5} parent=5 // pred_check_branch
        %1882 = sbr.rel (%p1880) target = $region60
      $region59: #{simple_cnn_forward.5} parent=5 // pred_region
        %s1883 = ssub.s32 %s12, 2
      $region60: #{simple_cnn_forward.5} parent=5 // pred_fallthru
        _
    $region6: #{simple_cnn_forward.5} parent=1 // loop_footer
      %s16 = sadd.s32 1, %s12
    $region7: #{simple_cnn_forward.5} parent=1 // loop_footer_branch
      %11 = sbr.rel target = $region3
    $region8: #{simple_cnn_forward.5} parent=1 // loop_exit
      _
    %1884 = vsyncpa [#allocation4], 1
    %s1885 = scalar_lea.sflag [#allocation4], 1
    %1886 = vsyncpa %s1885, 1

</llo_original>
